<compile_context>
chip_gen: v7x
topology: tpu7x:2x2x1
jax: 0.10.0
libtpu: 0.0.40
codegen_flags: <defaults>
</compile_context>

<pallas_src>
import functools

import jax
import jax.numpy as jnp
from jax.experimental import pallas as pl
from jax.experimental.pallas import tpu as pltpu


def _round_up(x, m):
    return ((x + m - 1) // m) * m


def _cdiv(a, b):
    return -(-a // b)


def _pick_tile(rows, row_tile, mult=16):
    """Row tile: multiple of `mult`, <= row_tile, minimizes padded rows."""
    rows_m = _round_up(max(int(rows), 1), mult)
    if rows_m <= row_tile:
        return rows_m
    nsteps = _cdiv(rows_m, row_tile)
    return _round_up(_cdiv(rows_m, nsteps), mult)


# --------------------------------------------------------------------------
# Pallas kernel 1: fused (1x1 conv == matmul) + bias (+ optional ReLU).
# BN scale is pre-folded into the weight matrix; only the bias remains.
# bf16 inputs/weights, f32 accumulation, configurable output dtype.
# --------------------------------------------------------------------------
def _linear_bias_kernel(x_ref, w_ref, b_ref, o_ref, *, relu):
    y = jnp.dot(x_ref[...], w_ref[...], preferred_element_type=jnp.float32)
    y = y + b_ref[...]
    if relu:
        y = jnp.maximum(y, 0.0)
    o_ref[...] = y.astype(o_ref.dtype)


def linear_bias(x, w, b, *, relu=False, out_dtype=None, row_tile=2048):
    rows, cin = x.shape
    cout = w.shape[1]
    out_dtype = out_dtype or x.dtype
    tile = _pick_tile(rows, row_tile)
    rows_p = _round_up(rows, tile)
    xp = jnp.pad(x, ((0, rows_p - rows), (0, 0))) if rows_p != rows else x
    out = pl.pallas_call(
        functools.partial(_linear_bias_kernel, relu=relu),
        out_shape=jax.ShapeDtypeStruct((rows_p, cout), out_dtype),
        grid_spec=pltpu.PrefetchScalarGridSpec(
            num_scalar_prefetch=0,
            grid=(rows_p // tile,),
            in_specs=[
                pl.BlockSpec((tile, cin), lambda i: (i, 0)),
                pl.BlockSpec((cin, cout), lambda i: (0, 0)),
                pl.BlockSpec((1, cout), lambda i: (0, 0)),
            ],
            out_specs=pl.BlockSpec((tile, cout), lambda i: (i, 0)),
        ),
        compiler_params=pltpu.CompilerParams(dimension_semantics=("parallel",)),
    )(xp, w, b)
    return out[:rows] if rows_p != rows else out


# --------------------------------------------------------------------------
# Pallas kernel 2: fused neighbor pipeline (all arrays lane-dense / flat):
#   rel    = (grouped_xyz - new_xyz) * valid           (empty-ball masking)
#   pos    = rel @ kron(I_S, W_pos) + b_pos            (3->C MLP on the MXU)
#   feat   = relu(grouped_feat * valid + pos)          -> neighbor_features
#   pooled = max/mean over the nsample lane-groups     (f32 VMEM scratch)
#   out    = relu(pooled @ W_out + b_out)              (fused mlps_out)
# --------------------------------------------------------------------------
def _neighbor_kernel(gxyz_ref, gfeat_ref, ctr_ref, valid_ref,
                     wpos_ref, bpos_ref, wout_ref, bout_ref,
                     nxyz_ref, nfeat_ref, out_ref, feat_f32,
                     *, nsample, c_mid, pool_method):
    valid = valid_ref[...]                                          # (tm, 1) f32
    # relative coords, empty-ball rows zeroed; flat (tm, nsample*3)
    rel = (gxyz_ref[...] - ctr_ref[...]) * valid
    nxyz_ref[...] = rel.astype(nxyz_ref.dtype)
    # position MLP: kron-expanded weight keeps the flat lane-dense layout
    pos = jnp.dot(rel.astype(jnp.bfloat16), wpos_ref[...],
                  preferred_element_type=jnp.float32) + bpos_ref[...]
    feat = jnp.maximum(gfeat_ref[...].astype(jnp.float32) * valid + pos, 0.0)
    nfeat_ref[...] = feat.astype(nfeat_ref.dtype)
    # pooling over nsample lane-groups of width c_mid (f32 via VMEM scratch)
    feat_f32[...] = feat
    pooled = feat_f32[:, pl.ds(0, c_mid)]
    for s in range(1, nsample):
        blk = feat_f32[:, pl.ds(s * c_mid, c_mid)]
        if pool_method == "max_pool":
            pooled = jnp.maximum(pooled, blk)
        else:
            pooled = pooled + blk
    if pool_method != "max_pool":
        pooled = pooled * (1.0 / nsample)
    # fused mlps_out: Conv1d(C_mid->C_out,1) + folded BN + ReLU
    y = jnp.dot(pooled, wout_ref[...], preferred_element_type=jnp.float32) + bout_ref[...]
    out_ref[...] = jnp.maximum(y, 0.0).astype(out_ref.dtype)


def neighbor_fuse(gxyz_f, gfeat_f, ctr_rep, valid, wpos_big, bpos_rep, w_out, b_out,
                  *, nsample, c_mid, pool_method, row_tile=512):
    M = gxyz_f.shape[0]
    c_out = w_out.shape[1]
    s3 = 3 * nsample
    sc = nsample * c_mid
    tile = _pick_tile(M, row_tile)
    Mp = _round_up(M, tile)
    if Mp != M:
        pad = Mp - M
        gxyz_f = jnp.pad(gxyz_f, ((0, pad), (0, 0)))
        gfeat_f = jnp.pad(gfeat_f, ((0, pad), (0, 0)))
        ctr_rep = jnp.pad(ctr_rep, ((0, pad), (0, 0)))
        valid = jnp.pad(valid, ((0, pad), (0, 0)))
    # Per-tile VMEM (tile=512, S*C=512): ~1.5 MiB per buffer set; fits the default
    # scoped VMEM limit with double buffering on v5e/v6e/v7x.
    kernel = functools.partial(_neighbor_kernel, nsample=nsample, c_mid=c_mid,
                               pool_method=pool_method)
    nxyz, nfeat, out = pl.pallas_call(
        kernel,
        out_shape=(
            jax.ShapeDtypeStruct((Mp, s3), jnp.float32),
            jax.ShapeDtypeStruct((Mp, sc), jnp.bfloat16),
            jax.ShapeDtypeStruct((Mp, c_out), jnp.float32),
        ),
        grid_spec=pltpu.PrefetchScalarGridSpec(
            num_scalar_prefetch=0,
            grid=(Mp // tile,),
            in_specs=[
                pl.BlockSpec((tile, s3), lambda i: (i, 0)),
                pl.BlockSpec((tile, sc), lambda i: (i, 0)),
                pl.BlockSpec((tile, s3), lambda i: (i, 0)),
                pl.BlockSpec((tile, 1), lambda i: (i, 0)),
                pl.BlockSpec((s3, sc), lambda i: (0, 0)),
                pl.BlockSpec((1, sc), lambda i: (0, 0)),
                pl.BlockSpec((c_mid, c_out), lambda i: (0, 0)),
                pl.BlockSpec((1, c_out), lambda i: (0, 0)),
            ],
            out_specs=[
                pl.BlockSpec((tile, s3), lambda i: (i, 0)),
                pl.BlockSpec((tile, sc), lambda i: (i, 0)),
                pl.BlockSpec((tile, c_out), lambda i: (i, 0)),
            ],
            scratch_shapes=[pltpu.VMEM((tile, sc), jnp.float32)],
        ),
        compiler_params=pltpu.CompilerParams(dimension_semantics=("parallel",)),
    )(gxyz_f, gfeat_f, ctr_rep, valid, wpos_big, bpos_rep, w_out, b_out)
    if Mp != M:
        nxyz, nfeat, out = nxyz[:M], nfeat[:M], out[:M]
    return nxyz, nfeat, out


# --------------------------------------------------------------------------
# Glue: simplified JAX re-implementation of VoxelQueryAndGrouping.
# Dense candidate-window gather + radius test + first-nsample selection
# (batch_size == 1), followed by index gathers into FLAT grouped layouts.
# --------------------------------------------------------------------------
def voxel_query_and_group(new_coords_bxyz, xyz, new_xyz, feat_in, voxel2point,
                          max_range, radius, nsample):
    # TODO(synk): exact CUDA voxel_query padding / multi-batch offset semantics
    # are approximated (unfilled slots duplicate the first found neighbor;
    # batch offsets only exercised for batch_size == 1).
    B, Z, Y, X = voxel2point.shape
    rz, ry, rx = max_range
    K = (2 * rz + 1) * (2 * ry + 1) * (2 * rx + 1)
    assert nsample <= K, f"nsample={nsample} must be <= candidate window size {K}"
    dz = jnp.arange(-rz, rz + 1)
    dy = jnp.arange(-ry, ry + 1)
    dx = jnp.arange(-rx, rx + 1)
    offs = jnp.stack(jnp.meshgrid(dz, dy, dx, indexing="ij"), axis=-1).reshape(-1, 3)

    M = new_coords_bxyz.shape[0]
    b = new_coords_bxyz[:, 0]
    # after the [0,3,2,1] reorder, columns are (b, x, y, z)
    cz = new_coords_bxyz[:, 3][:, None] + offs[None, :, 0]
    cy = new_coords_bxyz[:, 2][:, None] + offs[None, :, 1]
    cx = new_coords_bxyz[:, 1][:, None] + offs[None, :, 2]
    in_bounds = (cz >= 0) & (cz < Z) & (cy >= 0) & (cy < Y) & (cx >= 0) & (cx < X)
    czc = jnp.clip(cz, 0, Z - 1)
    cyc = jnp.clip(cy, 0, Y - 1)
    cxc = jnp.clip(cx, 0, X - 1)
    pidx = voxel2point[b[:, None], czc, cyc, cxc]          # (M, K)
    valid = in_bounds & (pidx >= 0)
    cand_xyz = xyz[jnp.maximum(pidx, 0)]                   # (M, K, 3)
    d2 = jnp.sum((cand_xyz - new_xyz[:, None, :]) ** 2, axis=-1)
    valid = valid & (d2 < radius * radius)

    # first nsample valid candidates (window order) via top_k instead of argsort
    order_key = jnp.where(valid, jnp.arange(K, dtype=jnp.int32)[None, :], K)
    _, perm = jax.lax.top_k(-order_key, nsample)           # ascending order_key
    idx_sel = jnp.take_along_axis(pidx, perm, axis=1)
    valid_sel = jnp.take_along_axis(valid, perm, axis=1)
    empty = jnp.logical_not(jnp.any(valid, axis=1))
    idx_out = jnp.where(valid_sel, idx_sel, idx_sel[:, :1])
    idx_out = jnp.where(empty[:, None], 0, idx_out)

    # TODO(synk): these row gathers still materialize the grouped tensors once
    # in HBM via XLA; an in-kernel DMA gather would need per-row DMAs (TPU has no
    # efficient fine-grained HBM gather), so it is deliberately left to XLA.
    flat_idx = idx_out.reshape(-1)
    grouped_xyz = jnp.take(xyz, flat_idx, axis=0).reshape(M, nsample * 3)           # f32
    grouped_feat = jnp.take(feat_in, flat_idx, axis=0).reshape(M, nsample * feat_in.shape[1])
    valid_f = jnp.logical_not(empty).astype(jnp.float32)[:, None]   # (M, 1)
    return grouped_feat, grouped_xyz, valid_f


# --------------------------------------------------------------------------
# Module
# --------------------------------------------------------------------------
def _kaiming(key, fan_in, shape):
    return jax.random.normal(key, shape, jnp.float32) * jnp.sqrt(2.0 / fan_in)


def _bn_fold(c, eps=1e-5):
    gamma = jnp.ones((1, c), jnp.float32)
    beta = jnp.zeros((1, c), jnp.float32)
    mean = jnp.zeros((1, c), jnp.float32)
    var = jnp.ones((1, c), jnp.float32)
    scale = gamma / jnp.sqrt(var + eps)
    bias = beta - mean * scale
    return scale, bias


class NeighborVoxelSAModuleMSGPallas:
    def __init__(self, *, query_ranges, radii, nsamples, mlps,
                 use_xyz=True, pool_method="max_pool", key=None):
        assert len(query_ranges) == len(nsamples) == len(mlps) == len(radii)
        assert pool_method in ("max_pool", "avg_pool")
        self.query_ranges = query_ranges
        self.radii = radii
        self.nsamples = nsamples
        self.pool_method = pool_method
        self.params = []
        keys = jax.random.split(key, 3 * len(mlps))
        w_in_list, b_in_list = [], []
        for i, spec in enumerate(mlps):
            c0, c1, c2 = spec
            nsample = nsamples[i]
            in_s, in_b = _bn_fold(c1)
            pos_s, pos_b = _bn_fold(c1)
            out_s, out_b = _bn_fold(c2)
            # BN scale folded into the conv weights (inference-mode fold).
            w_in = _kaiming(keys[3 * i + 0], c0, (c0, c1)) * in_s
            w_pos = _kaiming(keys[3 * i + 1], 3, (3, c1)) * pos_s
            w_out = _kaiming(keys[3 * i + 2], c1, (c1, c2)) * out_s
            w_in_list.append(w_in.astype(jnp.bfloat16))
            b_in_list.append(in_b)
            # Flat-layout position weights: rel is laid out (nsample*3,) per row,
            # so the 3->c1 projection becomes kron(I_nsample, w_pos).
            wpos_big = jnp.kron(jnp.eye(nsample, dtype=jnp.float32), w_pos)
            self.params.append(dict(
                c1=c1, c2=c2,
                w_pos=w_pos, b_pos=pos_b,
                wpos_big=wpos_big.astype(jnp.bfloat16),
                bpos_rep=jnp.tile(pos_b, (1, nsample)),
                w_out=w_out, b_out=out_b,
            ))
        # mlps_in of all scales fused into ONE bf16 matmul over `features`.
        self.w_in_all = jnp.concatenate(w_in_list, axis=1)   # (c0, sum c1) bf16
        self.b_in_all = jnp.concatenate(b_in_list, axis=1)   # (1, sum c1)  f32

    def __call__(self, xyz, xyz_batch_cnt, new_xyz, new_xyz_batch_cnt,
                 new_coords, features, voxel2point_indices):
        # TODO(synk): batch offsets (xyz_batch_cnt / new_xyz_batch_cnt) only
        # exercised for batch_size == 1 in the simplified JAX voxel query.
        new_coords = new_coords[:, jnp.array([0, 3, 2, 1])]   # (b, x, y, z)
        M = new_xyz.shape[0]

        # mlps_in of every scale: one fused bf16 Pallas matmul over `features`.
        feat_in_all = linear_bias(features.astype(jnp.bfloat16),
                                  self.w_in_all, self.b_in_all,
                                  relu=False, out_dtype=jnp.bfloat16)

        # TODO(synk): when all scales share (nsample, C1), the per-scale grouped
        # tensors could be stacked along a leading grid axis and handled by a
        # single pallas_call (halves launch overhead, doubles grid length).
        new_features_list = []
        neighbor_feature_list = []
        neighbor_xyz_list = []
        off = 0
        for k, p in enumerate(self.params):
            c1, S = p["c1"], self.nsamples[k]
            feat_in = feat_in_all[:, off:off + c1]
            off += c1
            gfeat_f, gxyz_f, valid_f = voxel_query_and_group(
                new_coords, xyz, new_xyz, feat_in, voxel2point_indices,
                self.query_ranges[k], self.radii[k], S)
            ctr_rep = jnp.tile(new_xyz, (1, S))                      # (M, S*3)
            nxyz_f, nfeat_f, out = neighbor_fuse(
                gxyz_f, gfeat_f, ctr_rep, valid_f,
                p["wpos_big"], p["bpos_rep"], p["w_out"], p["b_out"],
                nsample=S, c_mid=c1, pool_method=self.pool_method)
            new_features_list.append(out)
            neighbor_feature_list.append(nfeat_f.reshape(M, S, c1))
            neighbor_xyz_list.append(nxyz_f.reshape(M, S, 3))

        new_features = jnp.concatenate(new_features_list, axis=1)           # (M, sum C_out) f32
        neighbor_features = jnp.concatenate(neighbor_feature_list, axis=1)  # (M, sum S, C_mid) bf16
        neighbor_xyz = jnp.concatenate(neighbor_xyz_list, axis=1)           # (M, sum S, 3) f32
        return new_features, neighbor_features, neighbor_xyz


# --------------------------------------------------------------------------
# Pure-JAX f32 reference (same voxel-query glue, plain jnp math).
# --------------------------------------------------------------------------
def _reference_forward(module, xyz, new_xyz, new_coords, features, v2p):
    new_coords_r = new_coords[:, jnp.array([0, 3, 2, 1])]
    M = new_xyz.shape[0]
    outs, nfeats, nxyzs = [], [], []
    off = 0
    for k, p in enumerate(module.params):
        c1, S = p["c1"], module.nsamples[k]
        w_in = module.w_in_all[:, off:off + c1].astype(jnp.float32)
        b_in = module.b_in_all[:, off:off + c1]
        off += c1
        feat_in = features @ w_in + b_in
        gfeat_f, gxyz_f, valid = voxel_query_and_group(
            new_coords_r, xyz, new_xyz, feat_in, v2p,
            module.query_ranges[k], module.radii[k], S)
        gfeat = gfeat_f.reshape(M, S, c1)
        gxyz = gxyz_f.reshape(M, S, 3)
        rel = (gxyz - new_xyz[:, None, :]) * valid[:, :, None]
        pos = jnp.einsum("msk,kc->msc", rel, p["w_pos"]) + p["b_pos"]
        feat = jnp.maximum(gfeat * valid[:, :, None] + pos, 0.0)
        pooled = feat.max(axis=1) if module.pool_method == "max_pool" else feat.mean(axis=1)
        out = jnp.maximum(pooled @ p["w_out"] + p["b_out"], 0.0)
        outs.append(out)
        nfeats.append(feat)
        nxyzs.append(rel)
    return (jnp.concatenate(outs, axis=1),
            jnp.concatenate(nfeats, axis=1),
            jnp.concatenate(nxyzs, axis=1))


if __name__ == "__main__":
    key = jax.random.PRNGKey(0)
    k_xyz, k_feat, k_param = jax.random.split(key, 3)

    B = 1
    Z, Y, X = 8, 16, 16
    N, M, C_in = 256, 128, 16

    # points uniformly in the voxel grid box (unit voxel size)
    xyz = jax.random.uniform(k_xyz, (N, 3), jnp.float32) * jnp.array(
        [X, Y, Z], jnp.float32)
    vx = jnp.floor(xyz[:, 0]).astype(jnp.int32)
    vy = jnp.floor(xyz[:, 1]).astype(jnp.int32)
    vz = jnp.floor(xyz[:, 2]).astype(jnp.int32)
    voxel2point = jnp.full((B, Z, Y, X), -1, jnp.int32)
    voxel2point = voxel2point.at[0, vz, vy, vx].set(jnp.arange(N, dtype=jnp.int32))

    new_xyz = xyz[:M]
    new_coords = jnp.stack(
        [jnp.zeros((M,), jnp.int32), vz[:M], vy[:M], vx[:M]], axis=1)  # (b, z, y, x)
    features = jax.random.normal(k_feat, (N, C_in), jnp.float32)
    xyz_batch_cnt = jnp.array([N], jnp.int32)
    new_xyz_batch_cnt = jnp.array([M], jnp.int32)

    module = NeighborVoxelSAModuleMSGPallas(
        query_ranges=[[2, 2, 2], [1, 1, 1]],
        radii=[2.0, 1.5],
        nsamples=[16, 16],
        mlps=[[C_in, 32, 64], [C_in, 32, 32]],
        pool_method="max_pool",
        key=k_param)

    @jax.jit
    def run(xyz, xyz_cnt, new_xyz, new_xyz_cnt, new_coords, features, v2p):
        return module(xyz, xyz_cnt, new_xyz, new_xyz_cnt, new_coords, features, v2p)

    new_features, neighbor_features, neighbor_xyz = run(
        xyz, xyz_batch_cnt, new_xyz, new_xyz_batch_cnt,
        new_coords, features, voxel2point)
    jax.block_until_ready((new_features, neighbor_features, neighbor_xyz))

    assert new_features.shape == (M, 64 + 32)
    assert neighbor_features.shape == (M, 16 + 16, 32)
    assert neighbor_xyz.shape == (M, 16 + 16, 3)

    # correctness guard vs. pure-JAX f32 reference (bf16 streams -> loose tol)
    ref_new, ref_nf, ref_nx = _reference_forward(
        module, xyz, new_xyz, new_coords, features, voxel2point)

    def _check(name, got, ref, tol):
        got = got.astype(jnp.float32)
        err = float(jnp.max(jnp.abs(got - ref)))
        lim = tol * (float(jnp.max(jnp.abs(ref))) + 1.0)
        assert err <= lim, f"{name}: max abs err {err:.4f} > {lim:.4f}"

    _check("new_features", new_features, ref_new, 0.08)
    _check("neighbor_features", neighbor_features, ref_nf, 0.08)
    _check("neighbor_xyz", neighbor_xyz, ref_nx, 0.02)
    print("KERNEL_OK")
</pallas_src>

<mosaic_0001>
module attributes {stable_mosaic.version = 11 : i64} {
  func.func private @main(%arg0: i32) attributes {dimension_semantics = [#tpu.dimension_semantics<core_parallel>], iteration_bounds = array<i64: 2>, tpu.core_type = #tpu.core_type<sc_scalar_subcore>, window_params = []} {
    return
  }
}

module attributes {stable_mosaic.version = 11 : i64} {
  func.func private @main(%arg0: i32) attributes {dimension_semantics = [#tpu.dimension_semantics<core_parallel>], iteration_bounds = array<i64: 2>, tpu.core_type = #tpu.core_type<sc_scalar_subcore>, window_params = []} {
    return
  }
}

module attributes {stable_mosaic.version = 11 : i64} {
  func.func @_linear_bias_kernel(%arg0: i32, %arg1: memref<256x16xbf16, #tpu.memory_space<vmem>>, %arg2: memref<16x64xbf16, #tpu.memory_space<vmem>>, %arg3: memref<1x64xf32, #tpu.memory_space<vmem>>, %arg4: memref<256x64xbf16, #tpu.memory_space<vmem>>) attributes {dimension_semantics = [#tpu.dimension_semantics<parallel>], iteration_bounds = array<i64: 1>, scalar_prefetch = 0 : i64, scratch_operands = 0 : i64, tpu.core_type = #tpu.core_type<tc>, window_params = [{transform_indices = @transform_0, window_bounds = array<i64: 256, 16>}, {pipeline_mode = #tpu.pipeline_mode<synchronous>, transform_indices = @transform_1, window_bounds = array<i64: 16, 64>}, {pipeline_mode = #tpu.pipeline_mode<synchronous>, transform_indices = @transform_2, window_bounds = array<i64: 1, 64>}, {transform_indices = @transform_3, window_bounds = array<i64: 256, 64>}]} {
    %c0 = arith.constant 0 : index
    %c0_0 = arith.constant 0 : index
    %0 = vector.load %arg1[%c0, %c0_0] : memref<256x16xbf16, #tpu.memory_space<vmem>>, vector<256x16xbf16>
    %c0_1 = arith.constant 0 : index
    %c0_2 = arith.constant 0 : index
    %1 = vector.load %arg2[%c0_1, %c0_2] : memref<16x64xbf16, #tpu.memory_space<vmem>>, vector<16x64xbf16>
    %cst = arith.constant dense<0.000000e+00> : vector<256x64xf32>
    %2 = tpu.matmul %0, %1, %cst {dimension_numbers = #tpu.dot_dimension_numbers<[1], [0], [0], [1], [0, 0, 1, 1], [], []>} : vector<256x16xbf16>, vector<16x64xbf16>, vector<256x64xf32> -> vector<256x64xf32>
    %c0_3 = arith.constant 0 : index
    %c0_4 = arith.constant 0 : index
    %3 = vector.load %arg3[%c0_3, %c0_4] : memref<1x64xf32, #tpu.memory_space<vmem>>, vector<1x64xf32>
    %4 = vector.broadcast %3 : vector<1x64xf32> to vector<256x64xf32>
    %5 = arith.addf %2, %4 : vector<256x64xf32>
    %6 = arith.truncf %5 : vector<256x64xf32> to vector<256x64xbf16>
    %c0_5 = arith.constant 0 : index
    %c0_6 = arith.constant 0 : index
    %7 = vector.load %arg4[%c0_5, %c0_6] : memref<256x64xbf16, #tpu.memory_space<vmem>>, vector<256x64xbf16>
    tpu.vector_store %arg4[%c0_5, %c0_6], %6 {strides = array<i32>} : memref<256x64xbf16, #tpu.memory_space<vmem>>, vector<256x64xbf16>,
    return
  }
  func.func @transform_0(%arg0: i32) -> (i32, i32) {
    %c0_i32 = arith.constant 0 : i32
    %c0_i32_0 = arith.constant 0 : i32
    return %arg0, %c0_i32 : i32, i32
  }
  func.func @transform_1(%arg0: i32) -> (i32, i32) {
    %c0_i32 = arith.constant 0 : i32
    %c0_i32_0 = arith.constant 0 : i32
    %c0_i32_1 = arith.constant 0 : i32
    return %c0_i32, %c0_i32_0 : i32, i32
  }
  func.func @transform_2(%arg0: i32) -> (i32, i32) {
    %c0_i32 = arith.constant 0 : i32
    %c0_i32_0 = arith.constant 0 : i32
    %c0_i32_1 = arith.constant 0 : i32
    return %c0_i32, %c0_i32_0 : i32, i32
  }
  func.func @transform_3(%arg0: i32) -> (i32, i32) {
    %c0_i32 = arith.constant 0 : i32
    %c0_i32_0 = arith.constant 0 : i32
    return %arg0, %c0_i32 : i32, i32
  }
}

module attributes {stable_mosaic.version = 11 : i64} {
  func.func @_neighbor_kernel(%arg0: i32, %arg1: memref<128x48xf32, #tpu.memory_space<vmem>>, %arg2: memref<128x512xbf16, #tpu.memory_space<vmem>>, %arg3: memref<128x48xf32, #tpu.memory_space<vmem>>, %arg4: memref<128x1xf32, #tpu.memory_space<vmem>>, %arg5: memref<48x512xbf16, #tpu.memory_space<vmem>>, %arg6: memref<1x512xf32, #tpu.memory_space<vmem>>, %arg7: memref<32x64xf32, #tpu.memory_space<vmem>>, %arg8: memref<1x64xf32, #tpu.memory_space<vmem>>, %arg9: memref<128x48xf32, #tpu.memory_space<vmem>>, %arg10: memref<128x512xbf16, #tpu.memory_space<vmem>>, %arg11: memref<128x64xf32, #tpu.memory_space<vmem>>, %arg12: memref<128x512xf32, #tpu.memory_space<vmem>>) attributes {dimension_semantics = [#tpu.dimension_semantics<parallel>], iteration_bounds = array<i64: 1>, scalar_prefetch = 0 : i64, scratch_operands = 1 : i64, tpu.core_type = #tpu.core_type<tc>, window_params = [{transform_indices = @transform_0, window_bounds = array<i64: 128, 48>}, {transform_indices = @transform_1, window_bounds = array<i64: 128, 512>}, {transform_indices = @transform_2, window_bounds = array<i64: 128, 48>}, {transform_indices = @transform_3, window_bounds = array<i64: 128, 1>}, {pipeline_mode = #tpu.pipeline_mode<synchronous>, transform_indices = @transform_4, window_bounds = array<i64: 48, 512>}, {pipeline_mode = #tpu.pipeline_mode<synchronous>, transform_indices = @transform_5, window_bounds = array<i64: 1, 512>}, {pipeline_mode = #tpu.pipeline_mode<synchronous>, transform_indices = @transform_6, window_bounds = array<i64: 32, 64>}, {pipeline_mode = #tpu.pipeline_mode<synchronous>, transform_indices = @transform_7, window_bounds = array<i64: 1, 64>}, {transform_indices = @transform_8, window_bounds = array<i64: 128, 48>}, {transform_indices = @transform_9, window_bounds = array<i64: 128, 512>}, {transform_indices = @transform_10, window_bounds = array<i64: 128, 64>}]} {
    %c0 = arith.constant 0 : index
    %c0_0 = arith.constant 0 : index
    %0 = vector.load %arg4[%c0, %c0_0] : memref<128x1xf32, #tpu.memory_space<vmem>>, vector<128x1xf32>
    %c0_1 = arith.constant 0 : index
    %c0_2 = arith.constant 0 : index
    %1 = vector.load %arg1[%c0_1, %c0_2] : memref<128x48xf32, #tpu.memory_space<vmem>>, vector<128x48xf32>
    %c0_3 = arith.constant 0 : index
    %c0_4 = arith.constant 0 : index
    %2 = vector.load %arg3[%c0_3, %c0_4] : memref<128x48xf32, #tpu.memory_space<vmem>>, vector<128x48xf32>
    %3 = arith.subf %1, %2 : vector<128x48xf32>
    %4 = vector.broadcast %0 : vector<128x1xf32> to vector<128x48xf32>
    %5 = arith.mulf %3, %4 : vector<128x48xf32>
    %c0_5 = arith.constant 0 : index
    %c0_6 = arith.constant 0 : index
    %6 = vector.load %arg9[%c0_5, %c0_6] : memref<128x48xf32, #tpu.memory_space<vmem>>, vector<128x48xf32>
    tpu.vector_store %arg9[%c0_5, %c0_6], %5 {strides = array<i32>} : memref<128x48xf32, #tpu.memory_space<vmem>>, vector<128x48xf32>,
    %7 = arith.truncf %5 : vector<128x48xf32> to vector<128x48xbf16>
    %c0_7 = arith.constant 0 : index
    %c0_8 = arith.constant 0 : index
    %8 = vector.load %arg5[%c0_7, %c0_8] : memref<48x512xbf16, #tpu.memory_space<vmem>>, vector<48x512xbf16>
    %cst = arith.constant dense<0.000000e+00> : vector<128x512xf32>
    %9 = tpu.matmul %7, %8, %cst {dimension_numbers = #tpu.dot_dimension_numbers<[1], [0], [0], [1], [0, 0, 1, 1], [], []>} : vector<128x48xbf16>, vector<48x512xbf16>, vector<128x512xf32> -> vector<128x512xf32>
    %c0_9 = arith.constant 0 : index
    %c0_10 = arith.constant 0 : index
    %10 = vector.load %arg6[%c0_9, %c0_10] : memref<1x512xf32, #tpu.memory_space<vmem>>, vector<1x512xf32>
    %11 = vector.broadcast %10 : vector<1x512xf32> to vector<128x512xf32>
    %12 = arith.addf %9, %11 : vector<128x512xf32>
    %c0_11 = arith.constant 0 : index
    %c0_12 = arith.constant 0 : index
    %13 = vector.load %arg2[%c0_11, %c0_12] : memref<128x512xbf16, #tpu.memory_space<vmem>>, vector<128x512xbf16>
    %14 = arith.extf %13 : vector<128x512xbf16> to vector<128x512xf32>
    %15 = vector.broadcast %0 : vector<128x1xf32> to vector<128x512xf32>
    %16 = arith.mulf %14, %15 : vector<128x512xf32>
    %17 = arith.addf %16, %12 : vector<128x512xf32>
    %cst_13 = arith.constant 0.000000e+00 : f32
    %18 = vector.broadcast %cst_13 : f32 to vector<128x512xf32>
    %19 = arith.maximumf %17, %18 : vector<128x512xf32>
    %20 = arith.truncf %19 : vector<128x512xf32> to vector<128x512xbf16>
    %c0_14 = arith.constant 0 : index
    %c0_15 = arith.constant 0 : index
    %21 = vector.load %arg10[%c0_14, %c0_15] : memref<128x512xbf16, #tpu.memory_space<vmem>>, vector<128x512xbf16>
    tpu.vector_store %arg10[%c0_14, %c0_15], %20 {strides = array<i32>} : memref<128x512xbf16, #tpu.memory_space<vmem>>, vector<128x512xbf16>,
    %c0_16 = arith.constant 0 : index
    %c0_17 = arith.constant 0 : index
    %22 = vector.load %arg12[%c0_16, %c0_17] : memref<128x512xf32, #tpu.memory_space<vmem>>, vector<128x512xf32>
    tpu.vector_store %arg12[%c0_16, %c0_17], %19 {strides = array<i32>} : memref<128x512xf32, #tpu.memory_space<vmem>>, vector<128x512xf32>,
    %c0_18 = arith.constant 0 : index
    %c0_19 = arith.constant 0 : index
    %23 = vector.load %arg12[%c0_18, %c0_19] : memref<128x512xf32, #tpu.memory_space<vmem>>, vector<128x32xf32>
    %c0_20 = arith.constant 0 : index
    %c32 = arith.constant 32 : index
    %24 = vector.load %arg12[%c0_20, %c32] : memref<128x512xf32, #tpu.memory_space<vmem>>, vector<128x32xf32>
    %25 = arith.maximumf %23, %24 : vector<128x32xf32>
    %c0_21 = arith.constant 0 : index
    %c64 = arith.constant 64 : index
    %26 = vector.load %arg12[%c0_21, %c64] : memref<128x512xf32, #tpu.memory_space<vmem>>, vector<128x32xf32>
    %27 = arith.maximumf %25, %26 : vector<128x32xf32>
    %c0_22 = arith.constant 0 : index
    %c96 = arith.constant 96 : index
    %28 = vector.load %arg12[%c0_22, %c96] : memref<128x512xf32, #tpu.memory_space<vmem>>, vector<128x32xf32>
    %29 = arith.maximumf %27, %28 : vector<128x32xf32>
    %c0_23 = arith.constant 0 : index
    %c128 = arith.constant 128 : index
    %30 = vector.load %arg12[%c0_23, %c128] : memref<128x512xf32, #tpu.memory_space<vmem>>, vector<128x32xf32>
    %31 = arith.maximumf %29, %30 : vector<128x32xf32>
    %c0_24 = arith.constant 0 : index
    %c160 = arith.constant 160 : index
    %32 = vector.load %arg12[%c0_24, %c160] : memref<128x512xf32, #tpu.memory_space<vmem>>, vector<128x32xf32>
    %33 = arith.maximumf %31, %32 : vector<128x32xf32>
    %c0_25 = arith.constant 0 : index
    %c192 = arith.constant 192 : index
    %34 = vector.load %arg12[%c0_25, %c192] : memref<128x512xf32, #tpu.memory_space<vmem>>, vector<128x32xf32>
    %35 = arith.maximumf %33, %34 : vector<128x32xf32>
    %c0_26 = arith.constant 0 : index
    %c224 = arith.constant 224 : index
    %36 = vector.load %arg12[%c0_26, %c224] : memref<128x512xf32, #tpu.memory_space<vmem>>, vector<128x32xf32>
    %37 = arith.maximumf %35, %36 : vector<128x32xf32>
    %c0_27 = arith.constant 0 : index
    %c256 = arith.constant 256 : index
    %38 = vector.load %arg12[%c0_27, %c256] : memref<128x512xf32, #tpu.memory_space<vmem>>, vector<128x32xf32>
    %39 = arith.maximumf %37, %38 : vector<128x32xf32>
    %c0_28 = arith.constant 0 : index
    %c288 = arith.constant 288 : index
    %40 = vector.load %arg12[%c0_28, %c288] : memref<128x512xf32, #tpu.memory_space<vmem>>, vector<128x32xf32>
    %41 = arith.maximumf %39, %40 : vector<128x32xf32>
    %c0_29 = arith.constant 0 : index
    %c320 = arith.constant 320 : index
    %42 = vector.load %arg12[%c0_29, %c320] : memref<128x512xf32, #tpu.memory_space<vmem>>, vector<128x32xf32>
    %43 = arith.maximumf %41, %42 : vector<128x32xf32>
    %c0_30 = arith.constant 0 : index
    %c352 = arith.constant 352 : index
    %44 = vector.load %arg12[%c0_30, %c352] : memref<128x512xf32, #tpu.memory_space<vmem>>, vector<128x32xf32>
    %45 = arith.maximumf %43, %44 : vector<128x32xf32>
    %c0_31 = arith.constant 0 : index
    %c384 = arith.constant 384 : index
    %46 = vector.load %arg12[%c0_31, %c384] : memref<128x512xf32, #tpu.memory_space<vmem>>, vector<128x32xf32>
    %47 = arith.maximumf %45, %46 : vector<128x32xf32>
    %c0_32 = arith.constant 0 : index
    %c416 = arith.constant 416 : index
    %48 = vector.load %arg12[%c0_32, %c416] : memref<128x512xf32, #tpu.memory_space<vmem>>, vector<128x32xf32>
    %49 = arith.maximumf %47, %48 : vector<128x32xf32>
    %c0_33 = arith.constant 0 : index
    %c448 = arith.constant 448 : index
    %50 = vector.load %arg12[%c0_33, %c448] : memref<128x512xf32, #tpu.memory_space<vmem>>, vector<128x32xf32>
    %51 = arith.maximumf %49, %50 : vector<128x32xf32>
    %c0_34 = arith.constant 0 : index
    %c480 = arith.constant 480 : index
    %52 = vector.load %arg12[%c0_34, %c480] : memref<128x512xf32, #tpu.memory_space<vmem>>, vector<128x32xf32>
    %53 = arith.maximumf %51, %52 : vector<128x32xf32>
    %c0_35 = arith.constant 0 : index
    %c0_36 = arith.constant 0 : index
    %54 = vector.load %arg7[%c0_35, %c0_36] : memref<32x64xf32, #tpu.memory_space<vmem>>, vector<32x64xf32>
    %cst_37 = arith.constant dense<0.000000e+00> : vector<128x64xf32>
    %55 = tpu.matmul %53, %54, %cst_37 {dimension_numbers = #tpu.dot_dimension_numbers<[1], [0], [0], [1], [0, 0, 1, 1], [], []>} : vector<128x32xf32>, vector<32x64xf32>, vector<128x64xf32> -> vector<128x64xf32>
    %c0_38 = arith.constant 0 : index
    %c0_39 = arith.constant 0 : index
    %56 = vector.load %arg8[%c0_38, %c0_39] : memref<1x64xf32, #tpu.memory_space<vmem>>, vector<1x64xf32>
    %57 = vector.broadcast %56 : vector<1x64xf32> to vector<128x64xf32>
    %58 = arith.addf %55, %57 : vector<128x64xf32>
    %cst_40 = arith.constant 0.000000e+00 : f32
    %59 = vector.broadcast %cst_40 : f32 to vector<128x64xf32>
    %60 = arith.maximumf %58, %59 : vector<128x64xf32>
    %c0_41 = arith.constant 0 : index
    %c0_42 = arith.constant 0 : index
    %61 = vector.load %arg11[%c0_41, %c0_42] : memref<128x64xf32, #tpu.memory_space<vmem>>, vector<128x64xf32>
    tpu.vector_store %arg11[%c0_41, %c0_42], %60 {strides = array<i32>} : memref<128x64xf32, #tpu.memory_space<vmem>>, vector<128x64xf32>,
    return
  }
  func.func @transform_0(%arg0: i32) -> (i32, i32) {
    %c0_i32 = arith.constant 0 : i32
    %c0_i32_0 = arith.constant 0 : i32
    return %arg0, %c0_i32 : i32, i32
  }
  func.func @transform_1(%arg0: i32) -> (i32, i32) {
    %c0_i32 = arith.constant 0 : i32
    %c0_i32_0 = arith.constant 0 : i32
    return %arg0, %c0_i32 : i32, i32
  }
  func.func @transform_2(%arg0: i32) -> (i32, i32) {
    %c0_i32 = arith.constant 0 : i32
    %c0_i32_0 = arith.constant 0 : i32
    return %arg0, %c0_i32 : i32, i32
  }
  func.func @transform_3(%arg0: i32) -> (i32, i32) {
    %c0_i32 = arith.constant 0 : i32
    %c0_i32_0 = arith.constant 0 : i32
    return %arg0, %c0_i32 : i32, i32
  }
  func.func @transform_4(%arg0: i32) -> (i32, i32) {
    %c0_i32 = arith.constant 0 : i32
    %c0_i32_0 = arith.constant 0 : i32
    %c0_i32_1 = arith.constant 0 : i32
    return %c0_i32, %c0_i32_0 : i32, i32
  }
  func.func @transform_5(%arg0: i32) -> (i32, i32) {
    %c0_i32 = arith.constant 0 : i32
    %c0_i32_0 = arith.constant 0 : i32
    %c0_i32_1 = arith.constant 0 : i32
    return %c0_i32, %c0_i32_0 : i32, i32
  }
  func.func @transform_6(%arg0: i32) -> (i32, i32) {
    %c0_i32 = arith.constant 0 : i32
    %c0_i32_0 = arith.constant 0 : i32
    %c0_i32_1 = arith.constant 0 : i32
    return %c0_i32, %c0_i32_0 : i32, i32
  }
  func.func @transform_7(%arg0: i32) -> (i32, i32) {
    %c0_i32 = arith.constant 0 : i32
    %c0_i32_0 = arith.constant 0 : i32
    %c0_i32_1 = arith.constant 0 : i32
    return %c0_i32, %c0_i32_0 : i32, i32
  }
  func.func @transform_8(%arg0: i32) -> (i32, i32) {
    %c0_i32 = arith.constant 0 : i32
    %c0_i32_0 = arith.constant 0 : i32
    return %arg0, %c0_i32 : i32, i32
  }
  func.func @transform_9(%arg0: i32) -> (i32, i32) {
    %c0_i32 = arith.constant 0 : i32
    %c0_i32_0 = arith.constant 0 : i32
    return %arg0, %c0_i32 : i32, i32
  }
  func.func @transform_10(%arg0: i32) -> (i32, i32) {
    %c0_i32 = arith.constant 0 : i32
    %c0_i32_0 = arith.constant 0 : i32
    return %arg0, %c0_i32 : i32, i32
  }
}

module attributes {stable_mosaic.version = 11 : i64} {
  func.func @_neighbor_kernel(%arg0: i32, %arg1: memref<128x48xf32, #tpu.memory_space<vmem>>, %arg2: memref<128x512xbf16, #tpu.memory_space<vmem>>, %arg3: memref<128x48xf32, #tpu.memory_space<vmem>>, %arg4: memref<128x1xf32, #tpu.memory_space<vmem>>, %arg5: memref<48x512xbf16, #tpu.memory_space<vmem>>, %arg6: memref<1x512xf32, #tpu.memory_space<vmem>>, %arg7: memref<32x32xf32, #tpu.memory_space<vmem>>, %arg8: memref<1x32xf32, #tpu.memory_space<vmem>>, %arg9: memref<128x48xf32, #tpu.memory_space<vmem>>, %arg10: memref<128x512xbf16, #tpu.memory_space<vmem>>, %arg11: memref<128x32xf32, #tpu.memory_space<vmem>>, %arg12: memref<128x512xf32, #tpu.memory_space<vmem>>) attributes {dimension_semantics = [#tpu.dimension_semantics<parallel>], iteration_bounds = array<i64: 1>, scalar_prefetch = 0 : i64, scratch_operands = 1 : i64, tpu.core_type = #tpu.core_type<tc>, window_params = [{transform_indices = @transform_0, window_bounds = array<i64: 128, 48>}, {transform_indices = @transform_1, window_bounds = array<i64: 128, 512>}, {transform_indices = @transform_2, window_bounds = array<i64: 128, 48>}, {transform_indices = @transform_3, window_bounds = array<i64: 128, 1>}, {pipeline_mode = #tpu.pipeline_mode<synchronous>, transform_indices = @transform_4, window_bounds = array<i64: 48, 512>}, {pipeline_mode = #tpu.pipeline_mode<synchronous>, transform_indices = @transform_5, window_bounds = array<i64: 1, 512>}, {pipeline_mode = #tpu.pipeline_mode<synchronous>, transform_indices = @transform_6, window_bounds = array<i64: 32, 32>}, {pipeline_mode = #tpu.pipeline_mode<synchronous>, transform_indices = @transform_7, window_bounds = array<i64: 1, 32>}, {transform_indices = @transform_8, window_bounds = array<i64: 128, 48>}, {transform_indices = @transform_9, window_bounds = array<i64: 128, 512>}, {transform_indices = @transform_10, window_bounds = array<i64: 128, 32>}]} {
    %c0 = arith.constant 0 : index
    %c0_0 = arith.constant 0 : index
    %0 = vector.load %arg4[%c0, %c0_0] : memref<128x1xf32, #tpu.memory_space<vmem>>, vector<128x1xf32>
    %c0_1 = arith.constant 0 : index
    %c0_2 = arith.constant 0 : index
    %1 = vector.load %arg1[%c0_1, %c0_2] : memref<128x48xf32, #tpu.memory_space<vmem>>, vector<128x48xf32>
    %c0_3 = arith.constant 0 : index
    %c0_4 = arith.constant 0 : index
    %2 = vector.load %arg3[%c0_3, %c0_4] : memref<128x48xf32, #tpu.memory_space<vmem>>, vector<128x48xf32>
    %3 = arith.subf %1, %2 : vector<128x48xf32>
    %4 = vector.broadcast %0 : vector<128x1xf32> to vector<128x48xf32>
    %5 = arith.mulf %3, %4 : vector<128x48xf32>
    %c0_5 = arith.constant 0 : index
    %c0_6 = arith.constant 0 : index
    %6 = vector.load %arg9[%c0_5, %c0_6] : memref<128x48xf32, #tpu.memory_space<vmem>>, vector<128x48xf32>
    tpu.vector_store %arg9[%c0_5, %c0_6], %5 {strides = array<i32>} : memref<128x48xf32, #tpu.memory_space<vmem>>, vector<128x48xf32>,
    %7 = arith.truncf %5 : vector<128x48xf32> to vector<128x48xbf16>
    %c0_7 = arith.constant 0 : index
    %c0_8 = arith.constant 0 : index
    %8 = vector.load %arg5[%c0_7, %c0_8] : memref<48x512xbf16, #tpu.memory_space<vmem>>, vector<48x512xbf16>
    %cst = arith.constant dense<0.000000e+00> : vector<128x512xf32>
    %9 = tpu.matmul %7, %8, %cst {dimension_numbers = #tpu.dot_dimension_numbers<[1], [0], [0], [1], [0, 0, 1, 1], [], []>} : vector<128x48xbf16>, vector<48x512xbf16>, vector<128x512xf32> -> vector<128x512xf32>
    %c0_9 = arith.constant 0 : index
    %c0_10 = arith.constant 0 : index
    %10 = vector.load %arg6[%c0_9, %c0_10] : memref<1x512xf32, #tpu.memory_space<vmem>>, vector<1x512xf32>
    %11 = vector.broadcast %10 : vector<1x512xf32> to vector<128x512xf32>
    %12 = arith.addf %9, %11 : vector<128x512xf32>
    %c0_11 = arith.constant 0 : index
    %c0_12 = arith.constant 0 : index
    %13 = vector.load %arg2[%c0_11, %c0_12] : memref<128x512xbf16, #tpu.memory_space<vmem>>, vector<128x512xbf16>
    %14 = arith.extf %13 : vector<128x512xbf16> to vector<128x512xf32>
    %15 = vector.broadcast %0 : vector<128x1xf32> to vector<128x512xf32>
    %16 = arith.mulf %14, %15 : vector<128x512xf32>
    %17 = arith.addf %16, %12 : vector<128x512xf32>
    %cst_13 = arith.constant 0.000000e+00 : f32
    %18 = vector.broadcast %cst_13 : f32 to vector<128x512xf32>
    %19 = arith.maximumf %17, %18 : vector<128x512xf32>
    %20 = arith.truncf %19 : vector<128x512xf32> to vector<128x512xbf16>
    %c0_14 = arith.constant 0 : index
    %c0_15 = arith.constant 0 : index
    %21 = vector.load %arg10[%c0_14, %c0_15] : memref<128x512xbf16, #tpu.memory_space<vmem>>, vector<128x512xbf16>
    tpu.vector_store %arg10[%c0_14, %c0_15], %20 {strides = array<i32>} : memref<128x512xbf16, #tpu.memory_space<vmem>>, vector<128x512xbf16>,
    %c0_16 = arith.constant 0 : index
    %c0_17 = arith.constant 0 : index
    %22 = vector.load %arg12[%c0_16, %c0_17] : memref<128x512xf32, #tpu.memory_space<vmem>>, vector<128x512xf32>
    tpu.vector_store %arg12[%c0_16, %c0_17], %19 {strides = array<i32>} : memref<128x512xf32, #tpu.memory_space<vmem>>, vector<128x512xf32>,
    %c0_18 = arith.constant 0 : index
    %c0_19 = arith.constant 0 : index
    %23 = vector.load %arg12[%c0_18, %c0_19] : memref<128x512xf32, #tpu.memory_space<vmem>>, vector<128x32xf32>
    %c0_20 = arith.constant 0 : index
    %c32 = arith.constant 32 : index
    %24 = vector.load %arg12[%c0_20, %c32] : memref<128x512xf32, #tpu.memory_space<vmem>>, vector<128x32xf32>
    %25 = arith.maximumf %23, %24 : vector<128x32xf32>
    %c0_21 = arith.constant 0 : index
    %c64 = arith.constant 64 : index
    %26 = vector.load %arg12[%c0_21, %c64] : memref<128x512xf32, #tpu.memory_space<vmem>>, vector<128x32xf32>
    %27 = arith.maximumf %25, %26 : vector<128x32xf32>
    %c0_22 = arith.constant 0 : index
    %c96 = arith.constant 96 : index
    %28 = vector.load %arg12[%c0_22, %c96] : memref<128x512xf32, #tpu.memory_space<vmem>>, vector<128x32xf32>
    %29 = arith.maximumf %27, %28 : vector<128x32xf32>
    %c0_23 = arith.constant 0 : index
    %c128 = arith.constant 128 : index
    %30 = vector.load %arg12[%c0_23, %c128] : memref<128x512xf32, #tpu.memory_space<vmem>>, vector<128x32xf32>
    %31 = arith.maximumf %29, %30 : vector<128x32xf32>
    %c0_24 = arith.constant 0 : index
    %c160 = arith.constant 160 : index
    %32 = vector.load %arg12[%c0_24, %c160] : memref<128x512xf32, #tpu.memory_space<vmem>>, vector<128x32xf32>
    %33 = arith.maximumf %31, %32 : vector<128x32xf32>
    %c0_25 = arith.constant 0 : index
    %c192 = arith.constant 192 : index
    %34 = vector.load %arg12[%c0_25, %c192] : memref<128x512xf32, #tpu.memory_space<vmem>>, vector<128x32xf32>
    %35 = arith.maximumf %33, %34 : vector<128x32xf32>
    %c0_26 = arith.constant 0 : index
    %c224 = arith.constant 224 : index
    %36 = vector.load %arg12[%c0_26, %c224] : memref<128x512xf32, #tpu.memory_space<vmem>>, vector<128x32xf32>
    %37 = arith.maximumf %35, %36 : vector<128x32xf32>
    %c0_27 = arith.constant 0 : index
    %c256 = arith.constant 256 : index
    %38 = vector.load %arg12[%c0_27, %c256] : memref<128x512xf32, #tpu.memory_space<vmem>>, vector<128x32xf32>
    %39 = arith.maximumf %37, %38 : vector<128x32xf32>
    %c0_28 = arith.constant 0 : index
    %c288 = arith.constant 288 : index
    %40 = vector.load %arg12[%c0_28, %c288] : memref<128x512xf32, #tpu.memory_space<vmem>>, vector<128x32xf32>
    %41 = arith.maximumf %39, %40 : vector<128x32xf32>
    %c0_29 = arith.constant 0 : index
    %c320 = arith.constant 320 : index
    %42 = vector.load %arg12[%c0_29, %c320] : memref<128x512xf32, #tpu.memory_space<vmem>>, vector<128x32xf32>
    %43 = arith.maximumf %41, %42 : vector<128x32xf32>
    %c0_30 = arith.constant 0 : index
    %c352 = arith.constant 352 : index
    %44 = vector.load %arg12[%c0_30, %c352] : memref<128x512xf32, #tpu.memory_space<vmem>>, vector<128x32xf32>
    %45 = arith.maximumf %43, %44 : vector<128x32xf32>
    %c0_31 = arith.constant 0 : index
    %c384 = arith.constant 384 : index
    %46 = vector.load %arg12[%c0_31, %c384] : memref<128x512xf32, #tpu.memory_space<vmem>>, vector<128x32xf32>
    %47 = arith.maximumf %45, %46 : vector<128x32xf32>
    %c0_32 = arith.constant 0 : index
    %c416 = arith.constant 416 : index
    %48 = vector.load %arg12[%c0_32, %c416] : memref<128x512xf32, #tpu.memory_space<vmem>>, vector<128x32xf32>
    %49 = arith.maximumf %47, %48 : vector<128x32xf32>
    %c0_33 = arith.constant 0 : index
    %c448 = arith.constant 448 : index
    %50 = vector.load %arg12[%c0_33, %c448] : memref<128x512xf32, #tpu.memory_space<vmem>>, vector<128x32xf32>
    %51 = arith.maximumf %49, %50 : vector<128x32xf32>
    %c0_34 = arith.constant 0 : index
    %c480 = arith.constant 480 : index
    %52 = vector.load %arg12[%c0_34, %c480] : memref<128x512xf32, #tpu.memory_space<vmem>>, vector<128x32xf32>
    %53 = arith.maximumf %51, %52 : vector<128x32xf32>
    %c0_35 = arith.constant 0 : index
    %c0_36 = arith.constant 0 : index
    %54 = vector.load %arg7[%c0_35, %c0_36] : memref<32x32xf32, #tpu.memory_space<vmem>>, vector<32x32xf32>
    %cst_37 = arith.constant dense<0.000000e+00> : vector<128x32xf32>
    %55 = tpu.matmul %53, %54, %cst_37 {dimension_numbers = #tpu.dot_dimension_numbers<[1], [0], [0], [1], [0, 0, 1, 1], [], []>} : vector<128x32xf32>, vector<32x32xf32>, vector<128x32xf32> -> vector<128x32xf32>
    %c0_38 = arith.constant 0 : index
    %c0_39 = arith.constant 0 : index
    %56 = vector.load %arg8[%c0_38, %c0_39] : memref<1x32xf32, #tpu.memory_space<vmem>>, vector<1x32xf32>
    %57 = vector.broadcast %56 : vector<1x32xf32> to vector<128x32xf32>
    %58 = arith.addf %55, %57 : vector<128x32xf32>
    %cst_40 = arith.constant 0.000000e+00 : f32
    %59 = vector.broadcast %cst_40 : f32 to vector<128x32xf32>
    %60 = arith.maximumf %58, %59 : vector<128x32xf32>
    %c0_41 = arith.constant 0 : index
    %c0_42 = arith.constant 0 : index
    %61 = vector.load %arg11[%c0_41, %c0_42] : memref<128x32xf32, #tpu.memory_space<vmem>>, vector<128x32xf32>
    tpu.vector_store %arg11[%c0_41, %c0_42], %60 {strides = array<i32>} : memref<128x32xf32, #tpu.memory_space<vmem>>, vector<128x32xf32>,
    return
  }
  func.func @transform_0(%arg0: i32) -> (i32, i32) {
    %c0_i32 = arith.constant 0 : i32
    %c0_i32_0 = arith.constant 0 : i32
    return %arg0, %c0_i32 : i32, i32
  }
  func.func @transform_1(%arg0: i32) -> (i32, i32) {
    %c0_i32 = arith.constant 0 : i32
    %c0_i32_0 = arith.constant 0 : i32
    return %arg0, %c0_i32 : i32, i32
  }
  func.func @transform_2(%arg0: i32) -> (i32, i32) {
    %c0_i32 = arith.constant 0 : i32
    %c0_i32_0 = arith.constant 0 : i32
    return %arg0, %c0_i32 : i32, i32
  }
  func.func @transform_3(%arg0: i32) -> (i32, i32) {
    %c0_i32 = arith.constant 0 : i32
    %c0_i32_0 = arith.constant 0 : i32
    return %arg0, %c0_i32 : i32, i32
  }
  func.func @transform_4(%arg0: i32) -> (i32, i32) {
    %c0_i32 = arith.constant 0 : i32
    %c0_i32_0 = arith.constant 0 : i32
    %c0_i32_1 = arith.constant 0 : i32
    return %c0_i32, %c0_i32_0 : i32, i32
  }
  func.func @transform_5(%arg0: i32) -> (i32, i32) {
    %c0_i32 = arith.constant 0 : i32
    %c0_i32_0 = arith.constant 0 : i32
    %c0_i32_1 = arith.constant 0 : i32
    return %c0_i32, %c0_i32_0 : i32, i32
  }
  func.func @transform_6(%arg0: i32) -> (i32, i32) {
    %c0_i32 = arith.constant 0 : i32
    %c0_i32_0 = arith.constant 0 : i32
    %c0_i32_1 = arith.constant 0 : i32
    return %c0_i32, %c0_i32_0 : i32, i32
  }
  func.func @transform_7(%arg0: i32) -> (i32, i32) {
    %c0_i32 = arith.constant 0 : i32
    %c0_i32_0 = arith.constant 0 : i32
    %c0_i32_1 = arith.constant 0 : i32
    return %c0_i32, %c0_i32_0 : i32, i32
  }
  func.func @transform_8(%arg0: i32) -> (i32, i32) {
    %c0_i32 = arith.constant 0 : i32
    %c0_i32_0 = arith.constant 0 : i32
    return %arg0, %c0_i32 : i32, i32
  }
  func.func @transform_9(%arg0: i32) -> (i32, i32) {
    %c0_i32 = arith.constant 0 : i32
    %c0_i32_0 = arith.constant 0 : i32
    return %arg0, %c0_i32 : i32, i32
  }
  func.func @transform_10(%arg0: i32) -> (i32, i32) {
    %c0_i32 = arith.constant 0 : i32
    %c0_i32_0 = arith.constant 0 : i32
    return %arg0, %c0_i32 : i32, i32
  }
}

</mosaic_0001>

<llo_original>
// kernel: tile.14
$region0: #{tile.14}
  %s0 = inlined_call_operand.vmem [shape: f32[128,16,3], index: 0, kind: input, shape index: {}]
  %s1 = inlined_call_operand.vmem [shape: f32[128,48], index: 1, kind: output, shape index: {}]
  $region1: #{tile.14} parent=0
    #allocation0 [shape = 'u8[65536]{0}', space=vmem, size = 0x10000, scoped, tag = 'scoped mem for input reshape']
    %s3 = sshllo.u32 0, 4
    %s4 = smul.addr 4, 15
    %s5 = scalar_lea.vmem %s0, %s4
    %v6 = vld [vmem:[%s5] sm:%s3]
    %s7 = scalar_lea.vmem [#allocation0], 120
    %8 = vst [vmem:[%s7] sm:%s3] %v6
    %s9 = smul.addr 4, 14
    %s10 = scalar_lea.vmem %s0, %s9
    %v11 = vld [vmem:[%s10] sm:%s3]
    %s12 = scalar_lea.vmem [#allocation0], 112
    %13 = vst [vmem:[%s12] sm:%s3] %v11
    %s14 = smul.addr 4, 13
    %s15 = scalar_lea.vmem %s0, %s14
    %v16 = vld [vmem:[%s15] sm:%s3]
    %s17 = scalar_lea.vmem [#allocation0], 104
    %18 = vst [vmem:[%s17] sm:%s3] %v16
    %s19 = smul.addr 4, 12
    %s20 = scalar_lea.vmem %s0, %s19
    %v21 = vld [vmem:[%s20] sm:%s3]
    %s22 = scalar_lea.vmem [#allocation0], 96
    %23 = vst [vmem:[%s22] sm:%s3] %v21
    %s24 = smul.addr 4, 11
    %s25 = scalar_lea.vmem %s0, %s24
    %v26 = vld [vmem:[%s25] sm:%s3]
    %s27 = scalar_lea.vmem [#allocation0], 88
    %28 = vst [vmem:[%s27] sm:%s3] %v26
    %s29 = smul.addr 4, 10
    %s30 = scalar_lea.vmem %s0, %s29
    %v31 = vld [vmem:[%s30] sm:%s3]
    %s32 = scalar_lea.vmem [#allocation0], 80
    %33 = vst [vmem:[%s32] sm:%s3] %v31
    %s34 = smul.addr 4, 9
    %s35 = scalar_lea.vmem %s0, %s34
    %v36 = vld [vmem:[%s35] sm:%s3]
    %s37 = scalar_lea.vmem [#allocation0], 72
    %38 = vst [vmem:[%s37] sm:%s3] %v36
    %s39 = smul.addr 4, 8
    %s40 = scalar_lea.vmem %s0, %s39
    %v41 = vld [vmem:[%s40] sm:%s3]
    %s42 = scalar_lea.vmem [#allocation0], 64
    %43 = vst [vmem:[%s42] sm:%s3] %v41
    %s44 = smul.addr 4, 7
    %s45 = scalar_lea.vmem %s0, %s44
    %v46 = vld [vmem:[%s45] sm:%s3]
    %s47 = scalar_lea.vmem [#allocation0], 56
    %48 = vst [vmem:[%s47] sm:%s3] %v46
    %s49 = smul.addr 4, 6
    %s50 = scalar_lea.vmem %s0, %s49
    %v51 = vld [vmem:[%s50] sm:%s3]
    %s52 = scalar_lea.vmem [#allocation0], 48
    %53 = vst [vmem:[%s52] sm:%s3] %v51
    %s54 = smul.addr 4, 5
    %s55 = scalar_lea.vmem %s0, %s54
    %v56 = vld [vmem:[%s55] sm:%s3]
    %s57 = scalar_lea.vmem [#allocation0], 40
    %58 = vst [vmem:[%s57] sm:%s3] %v56
    %s59 = smul.addr 4, 4
    %s60 = scalar_lea.vmem %s0, %s59
    %v61 = vld [vmem:[%s60] sm:%s3]
    %s62 = scalar_lea.vmem [#allocation0], 32
    %63 = vst [vmem:[%s62] sm:%s3] %v61
    %s64 = smul.addr 4, 3
    %s65 = scalar_lea.vmem %s0, %s64
    %v66 = vld [vmem:[%s65] sm:%s3]
    %s67 = scalar_lea.vmem [#allocation0], 24
    %68 = vst [vmem:[%s67] sm:%s3] %v66
    %s69 = smul.addr 4, 2
    %s70 = scalar_lea.vmem %s0, %s69
    %v71 = vld [vmem:[%s70] sm:%s3]
    %s72 = scalar_lea.vmem [#allocation0], 16
    %73 = vst [vmem:[%s72] sm:%s3] %v71
    %s74 = scalar_lea.vmem %s0, 4
    %v75 = vld [vmem:[%s74] sm:%s3]
    %s76 = scalar_lea.vmem [#allocation0], 8
    %77 = vst [vmem:[%s76] sm:%s3] %v75
    %v78 = vld [vmem:[%s0] sm:%s3]
    %79 = vst [vmem:[#allocation0] sm:%s3] %v78
    %v80 = vld [vmem:[#allocation0] sm:$0x7]
    %81 = vst [vmem:[%s1] sm:$0x7] %v80
    %s82 = scalar_lea.vmem [#allocation0], 8
    %v83 = vld [vmem:[%s82] sm:$0x7]
    %s84 = scalar_lea.vmem %s1, 3
    %85 = vst [vmem:[%s84] sm:$0x7] %v83
    %s86 = scalar_lea.vmem [#allocation0], 16
    %v87 = vld [vmem:[%s86] sm:$0x7]
    %s88 = scalar_lea.vmem %s1, 6
    %89 = vst [vmem:[%s88] sm:$0x7] %v87
    %s90 = scalar_lea.vmem [#allocation0], 24
    %v91 = vld [vmem:[%s90] sm:$0x7]
    %s92 = scalar_lea.vmem %s1, 9
    %93 = vst [vmem:[%s92] sm:$0x7] %v91
    %s94 = scalar_lea.vmem [#allocation0], 32
    %v95 = vld [vmem:[%s94] sm:$0x7]
    %s96 = scalar_lea.vmem %s1, 12
    %97 = vst [vmem:[%s96] sm:$0x7] %v95
    %s98 = scalar_lea.vmem [#allocation0], 40
    %v99 = vld [vmem:[%s98] sm:$0x7]
    %s100 = scalar_lea.vmem %s1, 15
    %101 = vst [vmem:[%s100] sm:$0x7] %v99
    %s102 = scalar_lea.vmem [#allocation0], 48
    %v103 = vld [vmem:[%s102] sm:$0x7]
    %s104 = scalar_lea.vmem %s1, 18
    %105 = vst [vmem:[%s104] sm:$0x7] %v103
    %s106 = scalar_lea.vmem [#allocation0], 56
    %v107 = vld [vmem:[%s106] sm:$0x7]
    %s108 = scalar_lea.vmem %s1, 21
    %109 = vst [vmem:[%s108] sm:$0x7] %v107
    %s110 = scalar_lea.vmem [#allocation0], 64
    %v111 = vld [vmem:[%s110] sm:$0x7]
    %s112 = scalar_lea.vmem %s1, 24
    %113 = vst [vmem:[%s112] sm:$0x7] %v111
    %s114 = scalar_lea.vmem [#allocation0], 72
    %v115 = vld [vmem:[%s114] sm:$0x7]
    %s116 = scalar_lea.vmem %s1, 27
    %117 = vst [vmem:[%s116] sm:$0x7] %v115
    %s118 = scalar_lea.vmem [#allocation0], 80
    %v119 = vld [vmem:[%s118] sm:$0x7]
    %s120 = scalar_lea.vmem %s1, 30
    %121 = vst [vmem:[%s120] sm:$0x7] %v119
    %s122 = scalar_lea.vmem [#allocation0], 88
    %v123 = vld [vmem:[%s122] sm:$0x7]
    %s124 = scalar_lea.vmem %s1, 33
    %125 = vst [vmem:[%s124] sm:$0x7] %v123
    %s126 = scalar_lea.vmem [#allocation0], 96
    %v127 = vld [vmem:[%s126] sm:$0x7]
    %s128 = scalar_lea.vmem %s1, 36
    %129 = vst [vmem:[%s128] sm:$0x7] %v127
    %s130 = scalar_lea.vmem [#allocation0], 104
    %v131 = vld [vmem:[%s130] sm:$0x7]
    %s132 = scalar_lea.vmem %s1, 39
    %133 = vst [vmem:[%s132] sm:$0x7] %v131
    %s134 = scalar_lea.vmem [#allocation0], 112
    %v135 = vld [vmem:[%s134] sm:$0x7]
    %s136 = scalar_lea.vmem %s1, 42
    %137 = vst [vmem:[%s136] sm:$0x7] %v135
    %s138 = scalar_lea.vmem [#allocation0], 120
    %v139 = vld [vmem:[%s138] sm:$0x7]
    %s140 = scalar_lea.vmem %s1, 45
    %141 = vst [vmem:[%s140] sm:$0x7] %v139

// kernel: run.3
$region0: #{run.3}
  #allocation0 [shape = 'u32[]', space=smem, size = 0x4, offset = 0x4, fixed_abs, tag = 'smem constant byte address 0x4 - core index']
  #allocation1 [shape = 'u32[144,128]{1,0:T(1,128)}', space=vmem, size = 0x12000, scoped, tag = 'internal scratch']
  %s0 = inlined_call_operand.vmem [shape: bf16[256,16], index: 0, kind: input, shape index: {}]
  %s1 = inlined_call_operand.vmem [shape: bf16[16,64], index: 1, kind: input, shape index: {}]
  %s2 = inlined_call_operand.vmem [shape: f32[1,64], index: 2, kind: input, shape index: {}]
  %s3 = inlined_call_operand.vmem [shape: bf16[256,64], index: 3, kind: output, shape index: {}]
  %s4 = sld [smem:[#allocation0]]
  $region22: #{run.3} parent=0
    _
  %s6 = ssub.s32 1, %s4
  %s7 = scalar_select 0, %s6, %s4
  // Predicated region
  $region2: #{run.3} parent=0 // pred_check
    _
  $region3: #{run.3} parent=0 // pred_check_branch
    %9 = sbr.rel (0) target = $region5
  $region4: #{run.3} parent=0 // pred_region
    _
  $region5: #{run.3} parent=0 // pred_fallthru
    _
  // Predicated region
  $region6: #{run.3} parent=0 // pred_check
    _
  $region7: #{run.3} parent=0 // pred_check_branch
    %11 = sbr.rel (0) target = $region9
  $region8: #{run.3} parent=0 // pred_region
    _
  $region9: #{run.3} parent=0 // pred_fallthru
    _
  // Predicated region
  $region10: #{run.3} parent=0 // pred_check
    _
  $region11: #{run.3} parent=0 // pred_check_branch
    %13 = sbr.rel (0) target = $region13
  $region12: #{run.3} parent=0 // pred_region
    _
  $region13: #{run.3} parent=0 // pred_fallthru
    _
  %v15 = vld [vmem:[%s0] sm:$0xf]
  %v16 = vld [vmem:[%s0 + $0x4] sm:$0xf]
  %v17 = vld [vmem:[%s0 + $0x8] sm:$0xf]
  %v18 = vld [vmem:[%s0 + $0xc] sm:$0xf]
  %v19 = vld [vmem:[%s0 + $0x10] sm:$0xf]
  %v20 = vld [vmem:[%s0 + $0x14] sm:$0xf]
  %v21 = vld [vmem:[%s0 + $0x18] sm:$0xf]
  %v22 = vld [vmem:[%s0 + $0x1c] sm:$0xf]
  %v23 = vld [vmem:[%s0 + $0x20] sm:$0xf]
  %v24 = vld [vmem:[%s0 + $0x24] sm:$0xf]
  %v25 = vld [vmem:[%s0 + $0x28] sm:$0xf]
  %v26 = vld [vmem:[%s0 + $0x2c] sm:$0xf]
  %v27 = vld [vmem:[%s0 + $0x30] sm:$0xf]
  %v28 = vld [vmem:[%s0 + $0x34] sm:$0xf]
  %v29 = vld [vmem:[%s0 + $0x38] sm:$0xf]
  %v30 = vld [vmem:[%s0 + $0x3c] sm:$0xf]
  %v31 = vld [vmem:[%s0 + $0x40] sm:$0xf]
  %v32 = vld [vmem:[%s0 + $0x44] sm:$0xf]
  %v33 = vld [vmem:[%s0 + $0x48] sm:$0xf]
  %v34 = vld [vmem:[%s0 + $0x4c] sm:$0xf]
  %v35 = vld [vmem:[%s0 + $0x50] sm:$0xf]
  %v36 = vld [vmem:[%s0 + $0x54] sm:$0xf]
  %v37 = vld [vmem:[%s0 + $0x58] sm:$0xf]
  %v38 = vld [vmem:[%s0 + $0x5c] sm:$0xf]
  %v39 = vld [vmem:[%s0 + $0x60] sm:$0xf]
  %v40 = vld [vmem:[%s0 + $0x64] sm:$0xf]
  %v41 = vld [vmem:[%s0 + $0x68] sm:$0xf]
  %v42 = vld [vmem:[%s0 + $0x6c] sm:$0xf]
  %v43 = vld [vmem:[%s0 + $0x70] sm:$0xf]
  %v44 = vld [vmem:[%s0 + $0x74] sm:$0xf]
  %v45 = vld [vmem:[%s0 + $0x78] sm:$0xf]
  %v46 = vld [vmem:[%s0 + $0x7c] sm:$0xf]
  %v47 = vld [vmem:[%s1] sm:$0xf]
  %v48 = vld [vmem:[%s1 + $0x4] sm:$0xf]
  %v49 = vld [vmem:[%s2] sm:$0x1]
  %v51 = vlaneseq
  %v52 = vshrl.u32 %v51, 7
  %v53 = vsub.s32 0, %v52
  %v54 = vrot.slane %v49, %v53
  %v88 = vunpack.c.l.b16 %v15
  %v89 = vunpack.c.l.b16 %v16
  %v90 = vunpack.c.l.b16 %v17
  %v91 = vunpack.c.l.b16 %v18
  %v92 = vunpack.c.l.b16 %v19
  %v93 = vunpack.c.l.b16 %v20
  %v94 = vunpack.c.l.b16 %v21
  %v95 = vunpack.c.l.b16 %v22
  %v96 = vunpack.c.l.b16 %v23
  %v97 = vunpack.c.l.b16 %v24
  %v98 = vunpack.c.l.b16 %v25
  %v99 = vunpack.c.l.b16 %v26
  %v100 = vunpack.c.l.b16 %v27
  %v101 = vunpack.c.l.b16 %v28
  %v102 = vunpack.c.l.b16 %v29
  %v103 = vunpack.c.l.b16 %v30
  %v104 = vunpack.c.l.b16 %v31
  %v105 = vunpack.c.l.b16 %v32
  %v106 = vunpack.c.l.b16 %v33
  %v107 = vunpack.c.l.b16 %v34
  %v108 = vunpack.c.l.b16 %v35
  %v109 = vunpack.c.l.b16 %v36
  %v110 = vunpack.c.l.b16 %v37
  %v111 = vunpack.c.l.b16 %v38
  %v112 = vunpack.c.l.b16 %v39
  %v113 = vunpack.c.l.b16 %v40
  %v114 = vunpack.c.l.b16 %v41
  %v115 = vunpack.c.l.b16 %v42
  %v116 = vunpack.c.l.b16 %v43
  %v117 = vunpack.c.l.b16 %v44
  %v118 = vunpack.c.l.b16 %v45
  %v119 = vunpack.c.l.b16 %v46
  %v120 = vpack.c.b16 %v89, %v88
  %v121 = vpack.c.b16 %v91, %v90
  %v122 = vpack.c.b16 %v93, %v92
  %v123 = vpack.c.b16 %v95, %v94
  %v124 = vpack.c.b16 %v97, %v96
  %v125 = vpack.c.b16 %v99, %v98
  %v126 = vpack.c.b16 %v101, %v100
  %v127 = vpack.c.b16 %v103, %v102
  %v128 = vpack.c.b16 %v105, %v104
  %v129 = vpack.c.b16 %v107, %v106
  %v130 = vpack.c.b16 %v109, %v108
  %v131 = vpack.c.b16 %v111, %v110
  %v132 = vpack.c.b16 %v113, %v112
  %v133 = vpack.c.b16 %v115, %v114
  %v134 = vpack.c.b16 %v117, %v116
  %v135 = vpack.c.b16 %v119, %v118
  %v138 = vunpack.c.l.b16 %v47
  %v139 = vunpack.c.l.b16 %v48
  %v140 = vpack.c.b16 %v139, %v138
  %vm142 = vcmask 130048
  %v144 = vsel %vm142, %v120, 0
  %v147 = vsel %vm142, %v121, 0
  %v150 = vsel %vm142, %v122, 0
  %v153 = vsel %vm142, %v123, 0
  %v156 = vsel %vm142, %v124, 0
  %v159 = vsel %vm142, %v125, 0
  %v162 = vsel %vm142, %v126, 0
  %v165 = vsel %vm142, %v127, 0
  %v168 = vsel %vm142, %v128, 0
  %v171 = vsel %vm142, %v129, 0
  %v174 = vsel %vm142, %v130, 0
  %v177 = vsel %vm142, %v131, 0
  %v180 = vsel %vm142, %v132, 0
  %v183 = vsel %vm142, %v133, 0
  %v186 = vsel %vm142, %v134, 0
  %v189 = vsel %vm142, %v135, 0
  %191 = vmatprep.subr.bf16.mxu0 0
  %192 = vmatpush1.bf16.msra.mxu0 %v140
  %193 = vmatprep.subr.bf16.mxu0 0
  %194 = vmatpush1.bf16.msra.mxu0 0
  %195 = vmatprep.subr.bf16.mxu0 0
  %196 = vmatpush1.bf16.msra.mxu0 0
  %197 = vmatprep.subr.bf16.mxu0 0
  %198 = vmatpush1.bf16.msra.mxu0 0
  %199 = vmatprep.subr.bf16.mxu0 0
  %200 = vmatpush1.bf16.msra.mxu0 0
  %201 = vmatprep.subr.bf16.mxu0 0
  %202 = vmatpush1.bf16.msra.mxu0 0
  %203 = vmatprep.subr.bf16.mxu0 0
  %204 = vmatpush1.bf16.msra.mxu0 0
  %205 = vmatprep.subr.bf16.mxu0 0
  %206 = vmatpush1.bf16.msra.mxu0 0
  %207 = vmatprep.subr.bf16.mxu0 0
  %208 = vmatpush1.bf16.msra.mxu0 0
  %209 = vmatprep.subr.bf16.mxu0 0
  %210 = vmatpush1.bf16.msra.mxu0 0
  %211 = vmatprep.subr.bf16.mxu0 0
  %212 = vmatpush1.bf16.msra.mxu0 0
  %213 = vmatprep.subr.bf16.mxu0 0
  %214 = vmatpush1.bf16.msra.mxu0 0
  %215 = vmatprep.subr.bf16.mxu0 0
  %216 = vmatpush1.bf16.msra.mxu0 0
  %217 = vmatprep.subr.bf16.mxu0 0
  %218 = vmatpush1.bf16.msra.mxu0 0
  %219 = vmatprep.subr.bf16.mxu0 0
  %220 = vmatpush1.bf16.msra.mxu0 0
  %221 = vmatprep.subr.bf16.mxu0 0
  %222 = vmatpush1.bf16.msra.mxu0 0
  %223 = vmatprep.mubr.bf16.mxu0 0
  %224 = vmatmul.mubr.bf16.gmra.mrb[0].mxu0 %v144
  %v225 = vpop.f32.mrb[0].mxu0
  %v226 = vadd.f32 %v54, %v225
  %v227 = vpop.f32.mrb[0].mxu0
  %v228 = vpop.f32.mrb[0].mxu0
  %v229 = vadd.f32 %v54, %v228
  %v230 = vpop.f32.mrb[0].mxu0
  %231 = vmatprep.mubr.bf16.mxu0 0
  %232 = vmatmul.mubr.bf16.gmra.mrb[0].mxu0 %v147
  %v233 = vpop.f32.mrb[0].mxu0
  %v234 = vadd.f32 %v54, %v233
  %v235 = vpop.f32.mrb[0].mxu0
  %v236 = vpop.f32.mrb[0].mxu0
  %v237 = vadd.f32 %v54, %v236
  %v238 = vpop.f32.mrb[0].mxu0
  %239 = vmatprep.mubr.bf16.mxu0 0
  %240 = vmatmul.mubr.bf16.gmra.mrb[0].mxu0 %v150
  %v241 = vpop.f32.mrb[0].mxu0
  %v242 = vadd.f32 %v54, %v241
  %v243 = vpop.f32.mrb[0].mxu0
  %v244 = vpop.f32.mrb[0].mxu0
  %v245 = vadd.f32 %v54, %v244
  %v246 = vpop.f32.mrb[0].mxu0
  %247 = vmatprep.mubr.bf16.mxu0 0
  %248 = vmatmul.mubr.bf16.gmra.mrb[0].mxu0 %v153
  %v249 = vpop.f32.mrb[0].mxu0
  %v250 = vadd.f32 %v54, %v249
  %v251 = vpop.f32.mrb[0].mxu0
  %v252 = vpop.f32.mrb[0].mxu0
  %v253 = vadd.f32 %v54, %v252
  %v254 = vpop.f32.mrb[0].mxu0
  %255 = vmatprep.mubr.bf16.mxu0 0
  %256 = vmatmul.mubr.bf16.gmra.mrb[0].mxu0 %v156
  %v257 = vpop.f32.mrb[0].mxu0
  %v258 = vadd.f32 %v54, %v257
  %v259 = vpop.f32.mrb[0].mxu0
  %v260 = vpop.f32.mrb[0].mxu0
  %v261 = vadd.f32 %v54, %v260
  %v262 = vpop.f32.mrb[0].mxu0
  %263 = vmatprep.mubr.bf16.mxu0 0
  %264 = vmatmul.mubr.bf16.gmra.mrb[0].mxu0 %v159
  %v265 = vpop.f32.mrb[0].mxu0
  %v266 = vadd.f32 %v54, %v265
  %v267 = vpop.f32.mrb[0].mxu0
  %v268 = vpop.f32.mrb[0].mxu0
  %v269 = vadd.f32 %v54, %v268
  %v270 = vpop.f32.mrb[0].mxu0
  %271 = vmatprep.mubr.bf16.mxu0 0
  %272 = vmatmul.mubr.bf16.gmra.mrb[0].mxu0 %v162
  %v273 = vpop.f32.mrb[0].mxu0
  %v274 = vadd.f32 %v54, %v273
  %v275 = vpop.f32.mrb[0].mxu0
  %v276 = vpop.f32.mrb[0].mxu0
  %v277 = vadd.f32 %v54, %v276
  %v278 = vpop.f32.mrb[0].mxu0
  %279 = vmatprep.mubr.bf16.mxu0 0
  %280 = vmatmul.mubr.bf16.gmra.mrb[0].mxu0 %v165
  %v281 = vpop.f32.mrb[0].mxu0
  %v282 = vadd.f32 %v54, %v281
  %v283 = vpop.f32.mrb[0].mxu0
  %v284 = vpop.f32.mrb[0].mxu0
  %v285 = vadd.f32 %v54, %v284
  %v286 = vpop.f32.mrb[0].mxu0
  %287 = vmatprep.mubr.bf16.mxu0 0
  %288 = vmatmul.mubr.bf16.gmra.mrb[0].mxu0 %v168
  %v289 = vpop.f32.mrb[0].mxu0
  %v290 = vadd.f32 %v54, %v289
  %v291 = vpop.f32.mrb[0].mxu0
  %v292 = vpop.f32.mrb[0].mxu0
  %v293 = vadd.f32 %v54, %v292
  %v294 = vpop.f32.mrb[0].mxu0
  %295 = vmatprep.mubr.bf16.mxu0 0
  %296 = vmatmul.mubr.bf16.gmra.mrb[0].mxu0 %v171
  %v297 = vpop.f32.mrb[0].mxu0
  %v298 = vadd.f32 %v54, %v297
  %v299 = vpop.f32.mrb[0].mxu0
  %v300 = vpop.f32.mrb[0].mxu0
  %v301 = vadd.f32 %v54, %v300
  %v302 = vpop.f32.mrb[0].mxu0
  %303 = vmatprep.mubr.bf16.mxu0 0
  %304 = vmatmul.mubr.bf16.gmra.mrb[0].mxu0 %v174
  %v305 = vpop.f32.mrb[0].mxu0
  %v306 = vadd.f32 %v54, %v305
  %v307 = vpop.f32.mrb[0].mxu0
  %v308 = vpop.f32.mrb[0].mxu0
  %v309 = vadd.f32 %v54, %v308
  %v310 = vpop.f32.mrb[0].mxu0
  %311 = vmatprep.mubr.bf16.mxu0 0
  %312 = vmatmul.mubr.bf16.gmra.mrb[0].mxu0 %v177
  %v313 = vpop.f32.mrb[0].mxu0
  %v314 = vadd.f32 %v54, %v313
  %v315 = vpop.f32.mrb[0].mxu0
  %v316 = vpop.f32.mrb[0].mxu0
  %v317 = vadd.f32 %v54, %v316
  %v318 = vpop.f32.mrb[0].mxu0
  %319 = vmatprep.mubr.bf16.mxu0 0
  %320 = vmatmul.mubr.bf16.gmra.mrb[0].mxu0 %v180
  %v321 = vpop.f32.mrb[0].mxu0
  %v322 = vadd.f32 %v54, %v321
  %v323 = vpop.f32.mrb[0].mxu0
  %v324 = vpop.f32.mrb[0].mxu0
  %v325 = vadd.f32 %v54, %v324
  %v326 = vpop.f32.mrb[0].mxu0
  %327 = vmatprep.mubr.bf16.mxu0 0
  %328 = vmatmul.mubr.bf16.gmra.mrb[0].mxu0 %v183
  %v329 = vpop.f32.mrb[0].mxu0
  %v330 = vadd.f32 %v54, %v329
  %v331 = vpop.f32.mrb[0].mxu0
  %v332 = vpop.f32.mrb[0].mxu0
  %v333 = vadd.f32 %v54, %v332
  %v334 = vpop.f32.mrb[0].mxu0
  %335 = vmatprep.mubr.bf16.mxu0 0
  %336 = vmatmul.mubr.bf16.gmra.mrb[0].mxu0 %v186
  %v337 = vpop.f32.mrb[0].mxu0
  %v338 = vadd.f32 %v54, %v337
  %v339 = vpop.f32.mrb[0].mxu0
  %v340 = vpop.f32.mrb[0].mxu0
  %v341 = vadd.f32 %v54, %v340
  %v342 = vpop.f32.mrb[0].mxu0
  %343 = vmatprep.mubr.bf16.mxu0 0
  %344 = vmatmul.mubr.bf16.gmra.mrb[0].mxu0 %v189
  %v345 = vpop.f32.mrb[0].mxu0
  %v346 = vadd.f32 %v54, %v345
  %v347 = vpop.f32.mrb[0].mxu0
  %v348 = vpop.f32.mrb[0].mxu0
  %v349 = vadd.f32 %v54, %v348
  %v350 = vpop.f32.mrb[0].mxu0
  %351 = vdwg.mxu0
  %v352 = vpack.c.bf16 %v229, %v226
  %v353 = vpack.c.bf16 %v237, %v234
  %v354 = vpack.c.bf16 %v245, %v242
  %v355 = vpack.c.bf16 %v253, %v250
  %v356 = vpack.c.bf16 %v261, %v258
  %v357 = vpack.c.bf16 %v269, %v266
  %v358 = vpack.c.bf16 %v277, %v274
  %v359 = vpack.c.bf16 %v285, %v282
  %v360 = vpack.c.bf16 %v293, %v290
  %v361 = vpack.c.bf16 %v301, %v298
  %v362 = vpack.c.bf16 %v309, %v306
  %v363 = vpack.c.bf16 %v317, %v314
  %v364 = vpack.c.bf16 %v325, %v322
  %v365 = vpack.c.bf16 %v333, %v330
  %v366 = vpack.c.bf16 %v341, %v338
  %v367 = vpack.c.bf16 %v349, %v346
  %v384 = vunpack.c.l.b16 %v352
  %v385 = vunpack.c.h.b16 %v352
  %v386 = vunpack.c.l.b16 %v353
  %v387 = vunpack.c.h.b16 %v353
  %v388 = vunpack.c.l.b16 %v354
  %v389 = vunpack.c.h.b16 %v354
  %v390 = vunpack.c.l.b16 %v355
  %v391 = vunpack.c.h.b16 %v355
  %v392 = vunpack.c.l.b16 %v356
  %v393 = vunpack.c.h.b16 %v356
  %v394 = vunpack.c.l.b16 %v357
  %v395 = vunpack.c.h.b16 %v357
  %v396 = vunpack.c.l.b16 %v358
  %v397 = vunpack.c.h.b16 %v358
  %v398 = vunpack.c.l.b16 %v359
  %v399 = vunpack.c.h.b16 %v359
  %v400 = vunpack.c.l.b16 %v360
  %v401 = vunpack.c.h.b16 %v360
  %v402 = vunpack.c.l.b16 %v361
  %v403 = vunpack.c.h.b16 %v361
  %v404 = vunpack.c.l.b16 %v362
  %v405 = vunpack.c.h.b16 %v362
  %v406 = vunpack.c.l.b16 %v363
  %v407 = vunpack.c.h.b16 %v363
  %v408 = vunpack.c.l.b16 %v364
  %v409 = vunpack.c.h.b16 %v364
  %v410 = vunpack.c.l.b16 %v365
  %v411 = vunpack.c.h.b16 %v365
  %v412 = vunpack.c.l.b16 %v366
  %v413 = vunpack.c.h.b16 %v366
  %v414 = vunpack.c.l.b16 %v367
  %v415 = vunpack.c.h.b16 %v367
  %v416 = vpack.c.b16 %v384, %v384
  %v417 = vpack.c.b16 %v385, %v385
  %v418 = vpack.c.b16 %v386, %v386
  %v419 = vpack.c.b16 %v387, %v387
  %v420 = vpack.c.b16 %v388, %v388
  %v421 = vpack.c.b16 %v389, %v389
  %v422 = vpack.c.b16 %v390, %v390
  %v423 = vpack.c.b16 %v391, %v391
  %v424 = vpack.c.b16 %v392, %v392
  %v425 = vpack.c.b16 %v393, %v393
  %v426 = vpack.c.b16 %v394, %v394
  %v427 = vpack.c.b16 %v395, %v395
  %v428 = vpack.c.b16 %v396, %v396
  %v429 = vpack.c.b16 %v397, %v397
  %v430 = vpack.c.b16 %v398, %v398
  %v431 = vpack.c.b16 %v399, %v399
  %v432 = vpack.c.b16 %v400, %v400
  %v433 = vpack.c.b16 %v401, %v401
  %v434 = vpack.c.b16 %v402, %v402
  %v435 = vpack.c.b16 %v403, %v403
  %v436 = vpack.c.b16 %v404, %v404
  %v437 = vpack.c.b16 %v405, %v405
  %v438 = vpack.c.b16 %v406, %v406
  %v439 = vpack.c.b16 %v407, %v407
  %v440 = vpack.c.b16 %v408, %v408
  %v441 = vpack.c.b16 %v409, %v409
  %v442 = vpack.c.b16 %v410, %v410
  %v443 = vpack.c.b16 %v411, %v411
  %v444 = vpack.c.b16 %v412, %v412
  %v445 = vpack.c.b16 %v413, %v413
  %v446 = vpack.c.b16 %v414, %v414
  %v447 = vpack.c.b16 %v415, %v415
  %vm480 = vcmask 519168
  %481 = vst.msk [vmem:[%s3] sm:$0xf] %vm480, %v416
  %482 = vst.msk [vmem:[%s3 + $0x4] sm:$0xf] %vm480, %v417
  %483 = vst.msk [vmem:[%s3 + $0x8] sm:$0xf] %vm480, %v418
  %484 = vst.msk [vmem:[%s3 + $0xc] sm:$0xf] %vm480, %v419
  %485 = vst.msk [vmem:[%s3 + $0x10] sm:$0xf] %vm480, %v420
  %486 = vst.msk [vmem:[%s3 + $0x14] sm:$0xf] %vm480, %v421
  %487 = vst.msk [vmem:[%s3 + $0x18] sm:$0xf] %vm480, %v422
  %488 = vst.msk [vmem:[%s3 + $0x1c] sm:$0xf] %vm480, %v423
  %489 = vst.msk [vmem:[%s3 + $0x20] sm:$0xf] %vm480, %v424
  %490 = vst.msk [vmem:[%s3 + $0x24] sm:$0xf] %vm480, %v425
  %491 = vst.msk [vmem:[%s3 + $0x28] sm:$0xf] %vm480, %v426
  %492 = vst.msk [vmem:[%s3 + $0x2c] sm:$0xf] %vm480, %v427
  %493 = vst.msk [vmem:[%s3 + $0x30] sm:$0xf] %vm480, %v428
  %494 = vst.msk [vmem:[%s3 + $0x34] sm:$0xf] %vm480, %v429
  %495 = vst.msk [vmem:[%s3 + $0x38] sm:$0xf] %vm480, %v430
  %496 = vst.msk [vmem:[%s3 + $0x3c] sm:$0xf] %vm480, %v431
  %497 = vst.msk [vmem:[%s3 + $0x40] sm:$0xf] %vm480, %v432
  %498 = vst.msk [vmem:[%s3 + $0x44] sm:$0xf] %vm480, %v433
  %499 = vst.msk [vmem:[%s3 + $0x48] sm:$0xf] %vm480, %v434
  %500 = vst.msk [vmem:[%s3 + $0x4c] sm:$0xf] %vm480, %v435
  %501 = vst.msk [vmem:[%s3 + $0x50] sm:$0xf] %vm480, %v436
  %502 = vst.msk [vmem:[%s3 + $0x54] sm:$0xf] %vm480, %v437
  %503 = vst.msk [vmem:[%s3 + $0x58] sm:$0xf] %vm480, %v438
  %504 = vst.msk [vmem:[%s3 + $0x5c] sm:$0xf] %vm480, %v439
  %505 = vst.msk [vmem:[%s3 + $0x60] sm:$0xf] %vm480, %v440
  %506 = vst.msk [vmem:[%s3 + $0x64] sm:$0xf] %vm480, %v441
  %507 = vst.msk [vmem:[%s3 + $0x68] sm:$0xf] %vm480, %v442
  %508 = vst.msk [vmem:[%s3 + $0x6c] sm:$0xf] %vm480, %v443
  %509 = vst.msk [vmem:[%s3 + $0x70] sm:$0xf] %vm480, %v444
  %510 = vst.msk [vmem:[%s3 + $0x74] sm:$0xf] %vm480, %v445
  %511 = vst.msk [vmem:[%s3 + $0x78] sm:$0xf] %vm480, %v446
  %512 = vst.msk [vmem:[%s3 + $0x7c] sm:$0xf] %vm480, %v447
  // Predicated region
  $region14: #{run.3} parent=0 // pred_check
    _
  $region15: #{run.3} parent=0 // pred_check_branch
    %514 = sbr.rel (0) target = $region17
  $region16: #{run.3} parent=0 // pred_region
    _
  $region17: #{run.3} parent=0 // pred_fallthru
    _
  // Predicated region
  $region18: #{run.3} parent=0 // pred_check
    _
  $region19: #{run.3} parent=0 // pred_check_branch
    %516 = sbr.rel (0) target = $region21
  $region20: #{run.3} parent=0 // pred_region
    _
  $region21: #{run.3} parent=0 // pred_fallthru
    _

// kernel: run.4
$region0: #{run.4}
  #allocation0 [shape = 'u32[]', space=smem, size = 0x4, offset = 0x4, fixed_abs, tag = 'smem constant byte address 0x4 - core index']
  #allocation1 [shape = 'u32[144,128]{1,0:T(1,128)}', space=vmem, size = 0x12000, scoped, tag = 'internal scratch']
  #allocation2 [shape = 'f32[128,512]{1,0:T(8,128)}', space=vmem, size = 0x40000, scoped, tag = 'scratch operand']
  %s0 = inlined_call_operand.vmem [shape: f32[128,48], index: 0, kind: input, shape index: {}]
  %s1 = inlined_call_operand.vmem [shape: bf16[128,512], index: 1, kind: input, shape index: {}]
  %s2 = inlined_call_operand.vmem [shape: f32[128,48], index: 2, kind: input, shape index: {}]
  %s3 = inlined_call_operand.vmem [shape: f32[128,1], index: 3, kind: input, shape index: {}]
  %s4 = inlined_call_operand.vmem [shape: bf16[48,512], index: 4, kind: input, shape index: {}]
  %s5 = inlined_call_operand.vmem [shape: f32[1,512], index: 5, kind: input, shape index: {}]
  %s6 = inlined_call_operand.vmem [shape: f32[32,64], index: 6, kind: input, shape index: {}]
  %s7 = inlined_call_operand.vmem [shape: f32[1,64], index: 7, kind: input, shape index: {}]
  %s8 = inlined_call_operand.vmem [shape: f32[128,48], index: 8, kind: output, shape index: {0}]
  %s9 = inlined_call_operand.vmem [shape: bf16[128,512], index: 9, kind: output, shape index: {1}]
  %s10 = inlined_call_operand.vmem [shape: f32[128,64], index: 10, kind: output, shape index: {2}]
  %11 = xla_tuple %s8, %s9, %s10
  %s12 = sld [smem:[#allocation0]]
  $region58: #{run.4} parent=0
    _
  %s14 = ssub.s32 1, %s12
  %s15 = scalar_select 0, %s14, %s12
  // Predicated region
  $region2: #{run.4} parent=0 // pred_check
    _
  $region3: #{run.4} parent=0 // pred_check_branch
    %17 = sbr.rel (0) target = $region5
  $region4: #{run.4} parent=0 // pred_region
    _
  $region5: #{run.4} parent=0 // pred_fallthru
    _
  // Predicated region
  $region6: #{run.4} parent=0 // pred_check
    _
  $region7: #{run.4} parent=0 // pred_check_branch
    %19 = sbr.rel (0) target = $region9
  $region8: #{run.4} parent=0 // pred_region
    _
  $region9: #{run.4} parent=0 // pred_fallthru
    _
  // Predicated region
  $region10: #{run.4} parent=0 // pred_check
    _
  $region11: #{run.4} parent=0 // pred_check_branch
    %21 = sbr.rel (0) target = $region13
  $region12: #{run.4} parent=0 // pred_region
    _
  $region13: #{run.4} parent=0 // pred_fallthru
    _
  // Predicated region
  $region14: #{run.4} parent=0 // pred_check
    _
  $region15: #{run.4} parent=0 // pred_check_branch
    %23 = sbr.rel (0) target = $region17
  $region16: #{run.4} parent=0 // pred_region
    _
  $region17: #{run.4} parent=0 // pred_fallthru
    _
  // Predicated region
  $region18: #{run.4} parent=0 // pred_check
    _
  $region19: #{run.4} parent=0 // pred_check_branch
    %25 = sbr.rel (0) target = $region21
  $region20: #{run.4} parent=0 // pred_region
    _
  $region21: #{run.4} parent=0 // pred_fallthru
    _
  // Predicated region
  $region22: #{run.4} parent=0 // pred_check
    _
  $region23: #{run.4} parent=0 // pred_check_branch
    %27 = sbr.rel (0) target = $region25
  $region24: #{run.4} parent=0 // pred_region
    _
  $region25: #{run.4} parent=0 // pred_fallthru
    _
  // Predicated region
  $region26: #{run.4} parent=0 // pred_check
    _
  $region27: #{run.4} parent=0 // pred_check_branch
    %29 = sbr.rel (0) target = $region29
  $region28: #{run.4} parent=0 // pred_region
    _
  $region29: #{run.4} parent=0 // pred_fallthru
    _
  // Predicated region
  $region30: #{run.4} parent=0 // pred_check
    _
  $region31: #{run.4} parent=0 // pred_check_branch
    %31 = sbr.rel (0) target = $region33
  $region32: #{run.4} parent=0 // pred_region
    _
  $region33: #{run.4} parent=0 // pred_fallthru
    _
  %v33 = vld [vmem:[%s3] sm:$0xff]
  %v34 = vld [vmem:[%s3 + $0x8] sm:$0xff]
  %v35 = vld [vmem:[%s3 + $0x10] sm:$0xff]
  %v36 = vld [vmem:[%s3 + $0x18] sm:$0xff]
  %v37 = vld [vmem:[%s3 + $0x20] sm:$0xff]
  %v38 = vld [vmem:[%s3 + $0x28] sm:$0xff]
  %v39 = vld [vmem:[%s3 + $0x30] sm:$0xff]
  %v40 = vld [vmem:[%s3 + $0x38] sm:$0xff]
  %v41 = vld [vmem:[%s3 + $0x40] sm:$0xff]
  %v42 = vld [vmem:[%s3 + $0x48] sm:$0xff]
  %v43 = vld [vmem:[%s3 + $0x50] sm:$0xff]
  %v44 = vld [vmem:[%s3 + $0x58] sm:$0xff]
  %v45 = vld [vmem:[%s3 + $0x60] sm:$0xff]
  %v46 = vld [vmem:[%s3 + $0x68] sm:$0xff]
  %v47 = vld [vmem:[%s3 + $0x70] sm:$0xff]
  %v48 = vld [vmem:[%s3 + $0x78] sm:$0xff]
  %v49 = vld [vmem:[%s0] sm:$0xff]
  %v50 = vld [vmem:[%s0 + $0x8] sm:$0xff]
  %v51 = vld [vmem:[%s0 + $0x10] sm:$0xff]
  %v52 = vld [vmem:[%s0 + $0x18] sm:$0xff]
  %v53 = vld [vmem:[%s0 + $0x20] sm:$0xff]
  %v54 = vld [vmem:[%s0 + $0x28] sm:$0xff]
  %v55 = vld [vmem:[%s0 + $0x30] sm:$0xff]
  %v56 = vld [vmem:[%s0 + $0x38] sm:$0xff]
  %v57 = vld [vmem:[%s0 + $0x40] sm:$0xff]
  %v58 = vld [vmem:[%s0 + $0x48] sm:$0xff]
  %v59 = vld [vmem:[%s0 + $0x50] sm:$0xff]
  %v60 = vld [vmem:[%s0 + $0x58] sm:$0xff]
  %v61 = vld [vmem:[%s0 + $0x60] sm:$0xff]
  %v62 = vld [vmem:[%s0 + $0x68] sm:$0xff]
  %v63 = vld [vmem:[%s0 + $0x70] sm:$0xff]
  %v64 = vld [vmem:[%s0 + $0x78] sm:$0xff]
  %v65 = vld [vmem:[%s2] sm:$0xff]
  %v66 = vld [vmem:[%s2 + $0x8] sm:$0xff]
  %v67 = vld [vmem:[%s2 + $0x10] sm:$0xff]
  %v68 = vld [vmem:[%s2 + $0x18] sm:$0xff]
  %v69 = vld [vmem:[%s2 + $0x20] sm:$0xff]
  %v70 = vld [vmem:[%s2 + $0x28] sm:$0xff]
  %v71 = vld [vmem:[%s2 + $0x30] sm:$0xff]
  %v72 = vld [vmem:[%s2 + $0x38] sm:$0xff]
  %v73 = vld [vmem:[%s2 + $0x40] sm:$0xff]
  %v74 = vld [vmem:[%s2 + $0x48] sm:$0xff]
  %v75 = vld [vmem:[%s2 + $0x50] sm:$0xff]
  %v76 = vld [vmem:[%s2 + $0x58] sm:$0xff]
  %v77 = vld [vmem:[%s2 + $0x60] sm:$0xff]
  %v78 = vld [vmem:[%s2 + $0x68] sm:$0xff]
  %v79 = vld [vmem:[%s2 + $0x70] sm:$0xff]
  %v80 = vld [vmem:[%s2 + $0x78] sm:$0xff]
  %v81 = vsub.f32 %v49, %v65
  %v82 = vsub.f32 %v50, %v66
  %v83 = vsub.f32 %v51, %v67
  %v84 = vsub.f32 %v52, %v68
  %v85 = vsub.f32 %v53, %v69
  %v86 = vsub.f32 %v54, %v70
  %v87 = vsub.f32 %v55, %v71
  %v88 = vsub.f32 %v56, %v72
  %v89 = vsub.f32 %v57, %v73
  %v90 = vsub.f32 %v58, %v74
  %v91 = vsub.f32 %v59, %v75
  %v92 = vsub.f32 %v60, %v76
  %v93 = vsub.f32 %v61, %v77
  %v94 = vsub.f32 %v62, %v78
  %v95 = vsub.f32 %v63, %v79
  %v96 = vsub.f32 %v64, %v80
  %98 = vset.pattern.permute.xlu0 0
  %99 = vperm.xlu0 %98, %v33
  %v100 = vpop.permute.xlu0 %99
  %103 = vset.pattern.permute.xlu0 0
  %104 = vperm.xlu0 %103, %v34
  %v105 = vpop.permute.xlu0 %104
  %108 = vset.pattern.permute.xlu0 0
  %109 = vperm.xlu0 %108, %v35
  %v110 = vpop.permute.xlu0 %109
  %113 = vset.pattern.permute.xlu0 0
  %114 = vperm.xlu0 %113, %v36
  %v115 = vpop.permute.xlu0 %114
  %118 = vset.pattern.permute.xlu0 0
  %119 = vperm.xlu0 %118, %v37
  %v120 = vpop.permute.xlu0 %119
  %123 = vset.pattern.permute.xlu0 0
  %124 = vperm.xlu0 %123, %v38
  %v125 = vpop.permute.xlu0 %124
  %128 = vset.pattern.permute.xlu0 0
  %129 = vperm.xlu0 %128, %v39
  %v130 = vpop.permute.xlu0 %129
  %133 = vset.pattern.permute.xlu0 0
  %134 = vperm.xlu0 %133, %v40
  %v135 = vpop.permute.xlu0 %134
  %138 = vset.pattern.permute.xlu0 0
  %139 = vperm.xlu0 %138, %v41
  %v140 = vpop.permute.xlu0 %139
  %143 = vset.pattern.permute.xlu0 0
  %144 = vperm.xlu0 %143, %v42
  %v145 = vpop.permute.xlu0 %144
  %148 = vset.pattern.permute.xlu0 0
  %149 = vperm.xlu0 %148, %v43
  %v150 = vpop.permute.xlu0 %149
  %153 = vset.pattern.permute.xlu0 0
  %154 = vperm.xlu0 %153, %v44
  %v155 = vpop.permute.xlu0 %154
  %158 = vset.pattern.permute.xlu0 0
  %159 = vperm.xlu0 %158, %v45
  %v160 = vpop.permute.xlu0 %159
  %163 = vset.pattern.permute.xlu0 0
  %164 = vperm.xlu0 %163, %v46
  %v165 = vpop.permute.xlu0 %164
  %168 = vset.pattern.permute.xlu0 0
  %169 = vperm.xlu0 %168, %v47
  %v170 = vpop.permute.xlu0 %169
  %173 = vset.pattern.permute.xlu0 0
  %174 = vperm.xlu0 %173, %v48
  %v175 = vpop.permute.xlu0 %174
  %v177 = vmul.f32 %v81, %v100
  %v178 = vmul.f32 %v82, %v105
  %v179 = vmul.f32 %v83, %v110
  %v180 = vmul.f32 %v84, %v115
  %v181 = vmul.f32 %v85, %v120
  %v182 = vmul.f32 %v86, %v125
  %v183 = vmul.f32 %v87, %v130
  %v184 = vmul.f32 %v88, %v135
  %v185 = vmul.f32 %v89, %v140
  %v186 = vmul.f32 %v90, %v145
  %v187 = vmul.f32 %v91, %v150
  %v188 = vmul.f32 %v92, %v155
  %v189 = vmul.f32 %v93, %v160
  %v190 = vmul.f32 %v94, %v165
  %v191 = vmul.f32 %v95, %v170
  %v192 = vmul.f32 %v96, %v175
  %vm193 = vcmask 392192
  %194 = vst.msk [vmem:[%s8] sm:$0xff] %vm193, %v177
  %195 = vst.msk [vmem:[%s8 + $0x8] sm:$0xff] %vm193, %v178
  %196 = vst.msk [vmem:[%s8 + $0x10] sm:$0xff] %vm193, %v179
  %197 = vst.msk [vmem:[%s8 + $0x18] sm:$0xff] %vm193, %v180
  %198 = vst.msk [vmem:[%s8 + $0x20] sm:$0xff] %vm193, %v181
  %199 = vst.msk [vmem:[%s8 + $0x28] sm:$0xff] %vm193, %v182
  %200 = vst.msk [vmem:[%s8 + $0x30] sm:$0xff] %vm193, %v183
  %201 = vst.msk [vmem:[%s8 + $0x38] sm:$0xff] %vm193, %v184
  %202 = vst.msk [vmem:[%s8 + $0x40] sm:$0xff] %vm193, %v185
  %203 = vst.msk [vmem:[%s8 + $0x48] sm:$0xff] %vm193, %v186
  %204 = vst.msk [vmem:[%s8 + $0x50] sm:$0xff] %vm193, %v187
  %205 = vst.msk [vmem:[%s8 + $0x58] sm:$0xff] %vm193, %v188
  %206 = vst.msk [vmem:[%s8 + $0x60] sm:$0xff] %vm193, %v189
  %207 = vst.msk [vmem:[%s8 + $0x68] sm:$0xff] %vm193, %v190
  %208 = vst.msk [vmem:[%s8 + $0x70] sm:$0xff] %vm193, %v191
  %209 = vst.msk [vmem:[%s8 + $0x78] sm:$0xff] %vm193, %v192
  %v210 = vpack.c.bf16 %v178, %v177
  %v211 = vpack.c.bf16 %v180, %v179
  %v212 = vpack.c.bf16 %v182, %v181
  %v213 = vpack.c.bf16 %v184, %v183
  %v214 = vpack.c.bf16 %v186, %v185
  %v215 = vpack.c.bf16 %v188, %v187
  %v216 = vpack.c.bf16 %v190, %v189
  %v217 = vpack.c.bf16 %v192, %v191
  %v218 = vld [vmem:[%s4] sm:$0xff]
  %v219 = vld [vmem:[%s4 + $0x8] sm:$0xff]
  %v220 = vld [vmem:[%s4 + $0x10] sm:$0xff]
  %v221 = vld [vmem:[%s4 + $0x18] sm:$0xff]
  %v222 = vld [vmem:[%s4 + $0x20] sm:$0xff]
  %v223 = vld [vmem:[%s4 + $0x28] sm:$0xff]
  %v224 = vld [vmem:[%s4 + $0x30] sm:$0xff]
  %v225 = vld [vmem:[%s4 + $0x38] sm:$0xff]
  %v226 = vld [vmem:[%s4 + $0x40] sm:$0xff]
  %v227 = vld [vmem:[%s4 + $0x48] sm:$0xff]
  %v228 = vld [vmem:[%s4 + $0x50] sm:$0xff]
  %v229 = vld [vmem:[%s4 + $0x58] sm:$0xff]
  %v230 = vld [vmem:[%s5] sm:$0xf]
  %v232 = vlaneseq
  %v233 = vshrl.u32 %v232, 7
  %v234 = vsub.s32 0, %v233
  %v235 = vrot.slane %v230, %v234
  %v236 = vlaneseq
  %v237 = vshrl.u32 %v236, 7
  %v238 = vsub.s32 1, %v237
  %v239 = vrot.slane %v230, %v238
  %v240 = vlaneseq
  %v241 = vshrl.u32 %v240, 7
  %v242 = vsub.s32 2, %v241
  %v243 = vrot.slane %v230, %v242
  %v244 = vlaneseq
  %v245 = vshrl.u32 %v244, 7
  %v246 = vsub.s32 3, %v245
  %v247 = vrot.slane %v230, %v246
  %v264 = vunpack.c.l.b16 %v218
  %v265 = vunpack.c.h.b16 %v218
  %v266 = vunpack.c.l.b16 %v219
  %v267 = vunpack.c.h.b16 %v219
  %v268 = vunpack.c.l.b16 %v220
  %v269 = vunpack.c.h.b16 %v220
  %v270 = vunpack.c.l.b16 %v221
  %v271 = vunpack.c.h.b16 %v221
  %v272 = vunpack.c.l.b16 %v222
  %v273 = vunpack.c.h.b16 %v222
  %v274 = vunpack.c.l.b16 %v223
  %v275 = vunpack.c.h.b16 %v223
  %v276 = vunpack.c.l.b16 %v224
  %v277 = vunpack.c.h.b16 %v224
  %v278 = vunpack.c.l.b16 %v225
  %v279 = vunpack.c.h.b16 %v225
  %v280 = vunpack.c.l.b16 %v226
  %v281 = vunpack.c.h.b16 %v226
  %v282 = vunpack.c.l.b16 %v227
  %v283 = vunpack.c.h.b16 %v227
  %v284 = vunpack.c.l.b16 %v228
  %v285 = vunpack.c.h.b16 %v228
  %v286 = vunpack.c.l.b16 %v229
  %v287 = vunpack.c.h.b16 %v229
  %v288 = vpack.c.b16 %v268, %v264
  %v289 = vpack.c.b16 %v269, %v265
  %v290 = vpack.c.b16 %v270, %v266
  %v291 = vpack.c.b16 %v271, %v267
  %v292 = vpack.c.b16 %v276, %v272
  %v293 = vpack.c.b16 %v277, %v273
  %v294 = vpack.c.b16 %v278, %v274
  %v295 = vpack.c.b16 %v279, %v275
  %v296 = vpack.c.b16 %v284, %v280
  %v297 = vpack.c.b16 %v285, %v281
  %v298 = vpack.c.b16 %v286, %v282
  %v299 = vpack.c.b16 %v287, %v283
  %v313 = vsel %vm193, %v210, 0
  %v316 = vsel %vm193, %v211, 0
  %v319 = vsel %vm193, %v212, 0
  %v322 = vsel %vm193, %v213, 0
  %v325 = vsel %vm193, %v214, 0
  %v328 = vsel %vm193, %v215, 0
  %v331 = vsel %vm193, %v216, 0
  %v334 = vsel %vm193, %v217, 0
  %336 = vmatprep.subr.bf16.mxu0 %v289
  %337 = vmatpush1.bf16.msra.mxu0 %v288
  %338 = vmatprep.subr.bf16.mxu0 %v293
  %339 = vmatpush1.bf16.msra.mxu0 %v292
  %340 = vmatprep.subr.bf16.mxu0 %v297
  %341 = vmatpush1.bf16.msra.mxu0 %v296
  %342 = vmatprep.subr.bf16.mxu0 0
  %343 = vmatpush1.bf16.msra.mxu0 0
  %344 = vmatprep.subr.bf16.mxu0 0
  %345 = vmatpush1.bf16.msra.mxu0 0
  %346 = vmatprep.subr.bf16.mxu0 0
  %347 = vmatpush1.bf16.msra.mxu0 0
  %348 = vmatprep.subr.bf16.mxu0 0
  %349 = vmatpush1.bf16.msra.mxu0 0
  %350 = vmatprep.subr.bf16.mxu0 0
  %351 = vmatpush1.bf16.msra.mxu0 0
  %352 = vmatprep.subr.bf16.mxu0 0
  %353 = vmatpush1.bf16.msra.mxu0 0
  %354 = vmatprep.subr.bf16.mxu0 0
  %355 = vmatpush1.bf16.msra.mxu0 0
  %356 = vmatprep.subr.bf16.mxu0 0
  %357 = vmatpush1.bf16.msra.mxu0 0
  %358 = vmatprep.subr.bf16.mxu0 0
  %359 = vmatpush1.bf16.msra.mxu0 0
  %360 = vmatprep.subr.bf16.mxu0 0
  %361 = vmatpush1.bf16.msra.mxu0 0
  %362 = vmatprep.subr.bf16.mxu0 0
  %363 = vmatpush1.bf16.msra.mxu0 0
  %364 = vmatprep.subr.bf16.mxu0 0
  %365 = vmatpush1.bf16.msra.mxu0 0
  %366 = vmatprep.subr.bf16.mxu0 0
  %367 = vmatpush1.bf16.msra.mxu0 0
  %368 = vmatprep.mubr.bf16.mxu0 0
  %369 = vmatmul.mubr.bf16.gmra.mrb[0].mxu0 %v313
  %v370 = vpop.f32.mrb[0].mxu0
  %v371 = vadd.f32 %v235, %v370
  %v372 = vpop.f32.mrb[0].mxu0
  %v373 = vadd.f32 %v239, %v372
  %v374 = vpop.f32.mrb[0].mxu0
  %v375 = vadd.f32 %v235, %v374
  %v376 = vpop.f32.mrb[0].mxu0
  %v377 = vadd.f32 %v239, %v376
  %378 = vmatprep.mubr.bf16.mxu0 0
  %379 = vmatmul.mubr.bf16.gmra.mrb[0].mxu0 %v316
  %v380 = vpop.f32.mrb[0].mxu0
  %v381 = vadd.f32 %v235, %v380
  %v382 = vpop.f32.mrb[0].mxu0
  %v383 = vadd.f32 %v239, %v382
  %v384 = vpop.f32.mrb[0].mxu0
  %v385 = vadd.f32 %v235, %v384
  %v386 = vpop.f32.mrb[0].mxu0
  %v387 = vadd.f32 %v239, %v386
  %388 = vmatprep.mubr.bf16.mxu0 0
  %389 = vmatmul.mubr.bf16.gmra.mrb[0].mxu0 %v319
  %v390 = vpop.f32.mrb[0].mxu0
  %v391 = vadd.f32 %v235, %v390
  %v392 = vpop.f32.mrb[0].mxu0
  %v393 = vadd.f32 %v239, %v392
  %v394 = vpop.f32.mrb[0].mxu0
  %v395 = vadd.f32 %v235, %v394
  %v396 = vpop.f32.mrb[0].mxu0
  %v397 = vadd.f32 %v239, %v396
  %398 = vmatprep.mubr.bf16.mxu0 0
  %399 = vmatmul.mubr.bf16.gmra.mrb[0].mxu0 %v322
  %v400 = vpop.f32.mrb[0].mxu0
  %v401 = vadd.f32 %v235, %v400
  %v402 = vpop.f32.mrb[0].mxu0
  %v403 = vadd.f32 %v239, %v402
  %v404 = vpop.f32.mrb[0].mxu0
  %v405 = vadd.f32 %v235, %v404
  %v406 = vpop.f32.mrb[0].mxu0
  %v407 = vadd.f32 %v239, %v406
  %408 = vmatprep.mubr.bf16.mxu0 0
  %409 = vmatmul.mubr.bf16.gmra.mrb[0].mxu0 %v325
  %v410 = vpop.f32.mrb[0].mxu0
  %v411 = vadd.f32 %v235, %v410
  %v412 = vpop.f32.mrb[0].mxu0
  %v413 = vadd.f32 %v239, %v412
  %v414 = vpop.f32.mrb[0].mxu0
  %v415 = vadd.f32 %v235, %v414
  %v416 = vpop.f32.mrb[0].mxu0
  %v417 = vadd.f32 %v239, %v416
  %418 = vmatprep.mubr.bf16.mxu0 0
  %419 = vmatmul.mubr.bf16.gmra.mrb[0].mxu0 %v328
  %v420 = vpop.f32.mrb[0].mxu0
  %v421 = vadd.f32 %v235, %v420
  %v422 = vpop.f32.mrb[0].mxu0
  %v423 = vadd.f32 %v239, %v422
  %v424 = vpop.f32.mrb[0].mxu0
  %v425 = vadd.f32 %v235, %v424
  %v426 = vpop.f32.mrb[0].mxu0
  %v427 = vadd.f32 %v239, %v426
  %428 = vmatprep.mubr.bf16.mxu0 0
  %429 = vmatmul.mubr.bf16.gmra.mrb[0].mxu0 %v331
  %v430 = vpop.f32.mrb[0].mxu0
  %v431 = vadd.f32 %v235, %v430
  %v432 = vpop.f32.mrb[0].mxu0
  %v433 = vadd.f32 %v239, %v432
  %v434 = vpop.f32.mrb[0].mxu0
  %v435 = vadd.f32 %v235, %v434
  %v436 = vpop.f32.mrb[0].mxu0
  %v437 = vadd.f32 %v239, %v436
  %438 = vmatprep.mubr.bf16.mxu0 0
  %439 = vmatmul.mubr.bf16.gmra.mrb[0].mxu0 %v334
  %v440 = vpop.f32.mrb[0].mxu0
  %v441 = vadd.f32 %v235, %v440
  %v442 = vpop.f32.mrb[0].mxu0
  %v443 = vadd.f32 %v239, %v442
  %v444 = vpop.f32.mrb[0].mxu0
  %v445 = vadd.f32 %v235, %v444
  %v446 = vpop.f32.mrb[0].mxu0
  %v447 = vadd.f32 %v239, %v446
  %448 = vdwg.mxu0
  %449 = vmatprep.subr.bf16.mxu0 %v291
  %450 = vmatpush1.bf16.msra.mxu0 %v290
  %451 = vmatprep.subr.bf16.mxu0 %v295
  %452 = vmatpush1.bf16.msra.mxu0 %v294
  %453 = vmatprep.subr.bf16.mxu0 %v299
  %454 = vmatpush1.bf16.msra.mxu0 %v298
  %455 = vmatprep.subr.bf16.mxu0 0
  %456 = vmatpush1.bf16.msra.mxu0 0
  %457 = vmatprep.subr.bf16.mxu0 0
  %458 = vmatpush1.bf16.msra.mxu0 0
  %459 = vmatprep.subr.bf16.mxu0 0
  %460 = vmatpush1.bf16.msra.mxu0 0
  %461 = vmatprep.subr.bf16.mxu0 0
  %462 = vmatpush1.bf16.msra.mxu0 0
  %463 = vmatprep.subr.bf16.mxu0 0
  %464 = vmatpush1.bf16.msra.mxu0 0
  %465 = vmatprep.subr.bf16.mxu0 0
  %466 = vmatpush1.bf16.msra.mxu0 0
  %467 = vmatprep.subr.bf16.mxu0 0
  %468 = vmatpush1.bf16.msra.mxu0 0
  %469 = vmatprep.subr.bf16.mxu0 0
  %470 = vmatpush1.bf16.msra.mxu0 0
  %471 = vmatprep.subr.bf16.mxu0 0
  %472 = vmatpush1.bf16.msra.mxu0 0
  %473 = vmatprep.subr.bf16.mxu0 0
  %474 = vmatpush1.bf16.msra.mxu0 0
  %475 = vmatprep.subr.bf16.mxu0 0
  %476 = vmatpush1.bf16.msra.mxu0 0
  %477 = vmatprep.subr.bf16.mxu0 0
  %478 = vmatpush1.bf16.msra.mxu0 0
  %479 = vmatprep.subr.bf16.mxu0 0
  %480 = vmatpush1.bf16.msra.mxu0 0
  %481 = vmatprep.mubr.bf16.mxu0 0
  %482 = vmatmul.mubr.bf16.gmra.mrb[0].mxu0 %v313
  %v483 = vpop.f32.mrb[0].mxu0
  %v484 = vadd.f32 %v243, %v483
  %v485 = vpop.f32.mrb[0].mxu0
  %v486 = vadd.f32 %v247, %v485
  %v487 = vpop.f32.mrb[0].mxu0
  %v488 = vadd.f32 %v243, %v487
  %v489 = vpop.f32.mrb[0].mxu0
  %v490 = vadd.f32 %v247, %v489
  %491 = vmatprep.mubr.bf16.mxu0 0
  %492 = vmatmul.mubr.bf16.gmra.mrb[0].mxu0 %v316
  %v493 = vpop.f32.mrb[0].mxu0
  %v494 = vadd.f32 %v243, %v493
  %v495 = vpop.f32.mrb[0].mxu0
  %v496 = vadd.f32 %v247, %v495
  %v497 = vpop.f32.mrb[0].mxu0
  %v498 = vadd.f32 %v243, %v497
  %v499 = vpop.f32.mrb[0].mxu0
  %v500 = vadd.f32 %v247, %v499
  %501 = vmatprep.mubr.bf16.mxu0 0
  %502 = vmatmul.mubr.bf16.gmra.mrb[0].mxu0 %v319
  %v503 = vpop.f32.mrb[0].mxu0
  %v504 = vadd.f32 %v243, %v503
  %v505 = vpop.f32.mrb[0].mxu0
  %v506 = vadd.f32 %v247, %v505
  %v507 = vpop.f32.mrb[0].mxu0
  %v508 = vadd.f32 %v243, %v507
  %v509 = vpop.f32.mrb[0].mxu0
  %v510 = vadd.f32 %v247, %v509
  %511 = vmatprep.mubr.bf16.mxu0 0
  %512 = vmatmul.mubr.bf16.gmra.mrb[0].mxu0 %v322
  %v513 = vpop.f32.mrb[0].mxu0
  %v514 = vadd.f32 %v243, %v513
  %v515 = vpop.f32.mrb[0].mxu0
  %v516 = vadd.f32 %v247, %v515
  %v517 = vpop.f32.mrb[0].mxu0
  %v518 = vadd.f32 %v243, %v517
  %v519 = vpop.f32.mrb[0].mxu0
  %v520 = vadd.f32 %v247, %v519
  %521 = vmatprep.mubr.bf16.mxu0 0
  %522 = vmatmul.mubr.bf16.gmra.mrb[0].mxu0 %v325
  %v523 = vpop.f32.mrb[0].mxu0
  %v524 = vadd.f32 %v243, %v523
  %v525 = vpop.f32.mrb[0].mxu0
  %v526 = vadd.f32 %v247, %v525
  %v527 = vpop.f32.mrb[0].mxu0
  %v528 = vadd.f32 %v243, %v527
  %v529 = vpop.f32.mrb[0].mxu0
  %v530 = vadd.f32 %v247, %v529
  %531 = vmatprep.mubr.bf16.mxu0 0
  %532 = vmatmul.mubr.bf16.gmra.mrb[0].mxu0 %v328
  %v533 = vpop.f32.mrb[0].mxu0
  %v534 = vadd.f32 %v243, %v533
  %v535 = vpop.f32.mrb[0].mxu0
  %v536 = vadd.f32 %v247, %v535
  %v537 = vpop.f32.mrb[0].mxu0
  %v538 = vadd.f32 %v243, %v537
  %v539 = vpop.f32.mrb[0].mxu0
  %v540 = vadd.f32 %v247, %v539
  %541 = vmatprep.mubr.bf16.mxu0 0
  %542 = vmatmul.mubr.bf16.gmra.mrb[0].mxu0 %v331
  %v543 = vpop.f32.mrb[0].mxu0
  %v544 = vadd.f32 %v243, %v543
  %v545 = vpop.f32.mrb[0].mxu0
  %v546 = vadd.f32 %v247, %v545
  %v547 = vpop.f32.mrb[0].mxu0
  %v548 = vadd.f32 %v243, %v547
  %v549 = vpop.f32.mrb[0].mxu0
  %v550 = vadd.f32 %v247, %v549
  %551 = vmatprep.mubr.bf16.mxu0 0
  %552 = vmatmul.mubr.bf16.gmra.mrb[0].mxu0 %v334
  %v553 = vpop.f32.mrb[0].mxu0
  %v554 = vadd.f32 %v243, %v553
  %v555 = vpop.f32.mrb[0].mxu0
  %v556 = vadd.f32 %v247, %v555
  %v557 = vpop.f32.mrb[0].mxu0
  %v558 = vadd.f32 %v243, %v557
  %v559 = vpop.f32.mrb[0].mxu0
  %v560 = vadd.f32 %v247, %v559
  %561 = vdwg.mxu0
  %v562 = vld [vmem:[%s1] sm:$0xff]
  %v563 = vld [vmem:[%s1 + $0x8] sm:$0xff]
  %v564 = vld [vmem:[%s1 + $0x10] sm:$0xff]
  %v565 = vld [vmem:[%s1 + $0x18] sm:$0xff]
  %v566 = vld [vmem:[%s1 + $0x20] sm:$0xff]
  %v567 = vld [vmem:[%s1 + $0x28] sm:$0xff]
  %v568 = vld [vmem:[%s1 + $0x30] sm:$0xff]
  %v569 = vld [vmem:[%s1 + $0x38] sm:$0xff]
  %v570 = vld [vmem:[%s1 + $0x40] sm:$0xff]
  %v571 = vld [vmem:[%s1 + $0x48] sm:$0xff]
  %v572 = vld [vmem:[%s1 + $0x50] sm:$0xff]
  %v573 = vld [vmem:[%s1 + $0x58] sm:$0xff]
  %v574 = vld [vmem:[%s1 + $0x60] sm:$0xff]
  %v575 = vld [vmem:[%s1 + $0x68] sm:$0xff]
  %v576 = vld [vmem:[%s1 + $0x70] sm:$0xff]
  %v577 = vld [vmem:[%s1 + $0x78] sm:$0xff]
  %v578 = vld [vmem:[%s1 + $0x80] sm:$0xff]
  %v579 = vld [vmem:[%s1 + $0x88] sm:$0xff]
  %v580 = vld [vmem:[%s1 + $0x90] sm:$0xff]
  %v581 = vld [vmem:[%s1 + $0x98] sm:$0xff]
  %v582 = vld [vmem:[%s1 + $0xa0] sm:$0xff]
  %v583 = vld [vmem:[%s1 + $0xa8] sm:$0xff]
  %v584 = vld [vmem:[%s1 + $0xb0] sm:$0xff]
  %v585 = vld [vmem:[%s1 + $0xb8] sm:$0xff]
  %v586 = vld [vmem:[%s1 + $0xc0] sm:$0xff]
  %v587 = vld [vmem:[%s1 + $0xc8] sm:$0xff]
  %v588 = vld [vmem:[%s1 + $0xd0] sm:$0xff]
  %v589 = vld [vmem:[%s1 + $0xd8] sm:$0xff]
  %v590 = vld [vmem:[%s1 + $0xe0] sm:$0xff]
  %v591 = vld [vmem:[%s1 + $0xe8] sm:$0xff]
  %v592 = vld [vmem:[%s1 + $0xf0] sm:$0xff]
  %v593 = vld [vmem:[%s1 + $0xf8] sm:$0xff]
  %v594 = vunpack.c.l.bf16 %v562
  %v595 = vunpack.c.h.bf16 %v562
  %v596 = vunpack.c.l.bf16 %v563
  %v597 = vunpack.c.h.bf16 %v563
  %v598 = vunpack.c.l.bf16 %v564
  %v599 = vunpack.c.h.bf16 %v564
  %v600 = vunpack.c.l.bf16 %v565
  %v601 = vunpack.c.h.bf16 %v565
  %v602 = vunpack.c.l.bf16 %v566
  %v603 = vunpack.c.h.bf16 %v566
  %v604 = vunpack.c.l.bf16 %v567
  %v605 = vunpack.c.h.bf16 %v567
  %v606 = vunpack.c.l.bf16 %v568
  %v607 = vunpack.c.h.bf16 %v568
  %v608 = vunpack.c.l.bf16 %v569
  %v609 = vunpack.c.h.bf16 %v569
  %v610 = vunpack.c.l.bf16 %v570
  %v611 = vunpack.c.h.bf16 %v570
  %v612 = vunpack.c.l.bf16 %v571
  %v613 = vunpack.c.h.bf16 %v571
  %v614 = vunpack.c.l.bf16 %v572
  %v615 = vunpack.c.h.bf16 %v572
  %v616 = vunpack.c.l.bf16 %v573
  %v617 = vunpack.c.h.bf16 %v573
  %v618 = vunpack.c.l.bf16 %v574
  %v619 = vunpack.c.h.bf16 %v574
  %v620 = vunpack.c.l.bf16 %v575
  %v621 = vunpack.c.h.bf16 %v575
  %v622 = vunpack.c.l.bf16 %v576
  %v623 = vunpack.c.h.bf16 %v576
  %v624 = vunpack.c.l.bf16 %v577
  %v625 = vunpack.c.h.bf16 %v577
  %v626 = vunpack.c.l.bf16 %v578
  %v627 = vunpack.c.h.bf16 %v578
  %v628 = vunpack.c.l.bf16 %v579
  %v629 = vunpack.c.h.bf16 %v579
  %v630 = vunpack.c.l.bf16 %v580
  %v631 = vunpack.c.h.bf16 %v580
  %v632 = vunpack.c.l.bf16 %v581
  %v633 = vunpack.c.h.bf16 %v581
  %v634 = vunpack.c.l.bf16 %v582
  %v635 = vunpack.c.h.bf16 %v582
  %v636 = vunpack.c.l.bf16 %v583
  %v637 = vunpack.c.h.bf16 %v583
  %v638 = vunpack.c.l.bf16 %v584
  %v639 = vunpack.c.h.bf16 %v584
  %v640 = vunpack.c.l.bf16 %v585
  %v641 = vunpack.c.h.bf16 %v585
  %v642 = vunpack.c.l.bf16 %v586
  %v643 = vunpack.c.h.bf16 %v586
  %v644 = vunpack.c.l.bf16 %v587
  %v645 = vunpack.c.h.bf16 %v587
  %v646 = vunpack.c.l.bf16 %v588
  %v647 = vunpack.c.h.bf16 %v588
  %v648 = vunpack.c.l.bf16 %v589
  %v649 = vunpack.c.h.bf16 %v589
  %v650 = vunpack.c.l.bf16 %v590
  %v651 = vunpack.c.h.bf16 %v590
  %v652 = vunpack.c.l.bf16 %v591
  %v653 = vunpack.c.h.bf16 %v591
  %v654 = vunpack.c.l.bf16 %v592
  %v655 = vunpack.c.h.bf16 %v592
  %v656 = vunpack.c.l.bf16 %v593
  %v657 = vunpack.c.h.bf16 %v593
  %v658 = vmul.f32 %v594, %v100
  %v659 = vmul.f32 %v595, %v100
  %v660 = vmul.f32 %v596, %v100
  %v661 = vmul.f32 %v597, %v100
  %v662 = vmul.f32 %v598, %v105
  %v663 = vmul.f32 %v599, %v105
  %v664 = vmul.f32 %v600, %v105
  %v665 = vmul.f32 %v601, %v105
  %v666 = vmul.f32 %v602, %v110
  %v667 = vmul.f32 %v603, %v110
  %v668 = vmul.f32 %v604, %v110
  %v669 = vmul.f32 %v605, %v110
  %v670 = vmul.f32 %v606, %v115
  %v671 = vmul.f32 %v607, %v115
  %v672 = vmul.f32 %v608, %v115
  %v673 = vmul.f32 %v609, %v115
  %v674 = vmul.f32 %v610, %v120
  %v675 = vmul.f32 %v611, %v120
  %v676 = vmul.f32 %v612, %v120
  %v677 = vmul.f32 %v613, %v120
  %v678 = vmul.f32 %v614, %v125
  %v679 = vmul.f32 %v615, %v125
  %v680 = vmul.f32 %v616, %v125
  %v681 = vmul.f32 %v617, %v125
  %v682 = vmul.f32 %v618, %v130
  %v683 = vmul.f32 %v619, %v130
  %v684 = vmul.f32 %v620, %v130
  %v685 = vmul.f32 %v621, %v130
  %v686 = vmul.f32 %v622, %v135
  %v687 = vmul.f32 %v623, %v135
  %v688 = vmul.f32 %v624, %v135
  %v689 = vmul.f32 %v625, %v135
  %v690 = vmul.f32 %v626, %v140
  %v691 = vmul.f32 %v627, %v140
  %v692 = vmul.f32 %v628, %v140
  %v693 = vmul.f32 %v629, %v140
  %v694 = vmul.f32 %v630, %v145
  %v695 = vmul.f32 %v631, %v145
  %v696 = vmul.f32 %v632, %v145
  %v697 = vmul.f32 %v633, %v145
  %v698 = vmul.f32 %v634, %v150
  %v699 = vmul.f32 %v635, %v150
  %v700 = vmul.f32 %v636, %v150
  %v701 = vmul.f32 %v637, %v150
  %v702 = vmul.f32 %v638, %v155
  %v703 = vmul.f32 %v639, %v155
  %v704 = vmul.f32 %v640, %v155
  %v705 = vmul.f32 %v641, %v155
  %v706 = vmul.f32 %v642, %v160
  %v707 = vmul.f32 %v643, %v160
  %v708 = vmul.f32 %v644, %v160
  %v709 = vmul.f32 %v645, %v160
  %v710 = vmul.f32 %v646, %v165
  %v711 = vmul.f32 %v647, %v165
  %v712 = vmul.f32 %v648, %v165
  %v713 = vmul.f32 %v649, %v165
  %v714 = vmul.f32 %v650, %v170
  %v715 = vmul.f32 %v651, %v170
  %v716 = vmul.f32 %v652, %v170
  %v717 = vmul.f32 %v653, %v170
  %v718 = vmul.f32 %v654, %v175
  %v719 = vmul.f32 %v655, %v175
  %v720 = vmul.f32 %v656, %v175
  %v721 = vmul.f32 %v657, %v175
  %v722 = vadd.f32 %v658, %v371
  %v723 = vadd.f32 %v659, %v373
  %v724 = vadd.f32 %v660, %v484
  %v725 = vadd.f32 %v661, %v486
  %v726 = vadd.f32 %v662, %v375
  %v727 = vadd.f32 %v663, %v377
  %v728 = vadd.f32 %v664, %v488
  %v729 = vadd.f32 %v665, %v490
  %v730 = vadd.f32 %v666, %v381
  %v731 = vadd.f32 %v667, %v383
  %v732 = vadd.f32 %v668, %v494
  %v733 = vadd.f32 %v669, %v496
  %v734 = vadd.f32 %v670, %v385
  %v735 = vadd.f32 %v671, %v387
  %v736 = vadd.f32 %v672, %v498
  %v737 = vadd.f32 %v673, %v500
  %v738 = vadd.f32 %v674, %v391
  %v739 = vadd.f32 %v675, %v393
  %v740 = vadd.f32 %v676, %v504
  %v741 = vadd.f32 %v677, %v506
  %v742 = vadd.f32 %v678, %v395
  %v743 = vadd.f32 %v679, %v397
  %v744 = vadd.f32 %v680, %v508
  %v745 = vadd.f32 %v681, %v510
  %v746 = vadd.f32 %v682, %v401
  %v747 = vadd.f32 %v683, %v403
  %v748 = vadd.f32 %v684, %v514
  %v749 = vadd.f32 %v685, %v516
  %v750 = vadd.f32 %v686, %v405
  %v751 = vadd.f32 %v687, %v407
  %v752 = vadd.f32 %v688, %v518
  %v753 = vadd.f32 %v689, %v520
  %v754 = vadd.f32 %v690, %v411
  %v755 = vadd.f32 %v691, %v413
  %v756 = vadd.f32 %v692, %v524
  %v757 = vadd.f32 %v693, %v526
  %v758 = vadd.f32 %v694, %v415
  %v759 = vadd.f32 %v695, %v417
  %v760 = vadd.f32 %v696, %v528
  %v761 = vadd.f32 %v697, %v530
  %v762 = vadd.f32 %v698, %v421
  %v763 = vadd.f32 %v699, %v423
  %v764 = vadd.f32 %v700, %v534
  %v765 = vadd.f32 %v701, %v536
  %v766 = vadd.f32 %v702, %v425
  %v767 = vadd.f32 %v703, %v427
  %v768 = vadd.f32 %v704, %v538
  %v769 = vadd.f32 %v705, %v540
  %v770 = vadd.f32 %v706, %v431
  %v771 = vadd.f32 %v707, %v433
  %v772 = vadd.f32 %v708, %v544
  %v773 = vadd.f32 %v709, %v546
  %v774 = vadd.f32 %v710, %v435
  %v775 = vadd.f32 %v711, %v437
  %v776 = vadd.f32 %v712, %v548
  %v777 = vadd.f32 %v713, %v550
  %v778 = vadd.f32 %v714, %v441
  %v779 = vadd.f32 %v715, %v443
  %v780 = vadd.f32 %v716, %v554
  %v781 = vadd.f32 %v717, %v556
  %v782 = vadd.f32 %v718, %v445
  %v783 = vadd.f32 %v719, %v447
  %v784 = vadd.f32 %v720, %v558
  %v785 = vadd.f32 %v721, %v560
  %v786 = vmax.f32 %v722, 0.0
  %v787 = vmax.f32 %v723, 0.0
  %v788 = vmax.f32 %v724, 0.0
  %v789 = vmax.f32 %v725, 0.0
  %v790 = vmax.f32 %v726, 0.0
  %v791 = vmax.f32 %v727, 0.0
  %v792 = vmax.f32 %v728, 0.0
  %v793 = vmax.f32 %v729, 0.0
  %v794 = vmax.f32 %v730, 0.0
  %v795 = vmax.f32 %v731, 0.0
  %v796 = vmax.f32 %v732, 0.0
  %v797 = vmax.f32 %v733, 0.0
  %v798 = vmax.f32 %v734, 0.0
  %v799 = vmax.f32 %v735, 0.0
  %v800 = vmax.f32 %v736, 0.0
  %v801 = vmax.f32 %v737, 0.0
  %v802 = vmax.f32 %v738, 0.0
  %v803 = vmax.f32 %v739, 0.0
  %v804 = vmax.f32 %v740, 0.0
  %v805 = vmax.f32 %v741, 0.0
  %v806 = vmax.f32 %v742, 0.0
  %v807 = vmax.f32 %v743, 0.0
  %v808 = vmax.f32 %v744, 0.0
  %v809 = vmax.f32 %v745, 0.0
  %v810 = vmax.f32 %v746, 0.0
  %v811 = vmax.f32 %v747, 0.0
  %v812 = vmax.f32 %v748, 0.0
  %v813 = vmax.f32 %v749, 0.0
  %v814 = vmax.f32 %v750, 0.0
  %v815 = vmax.f32 %v751, 0.0
  %v816 = vmax.f32 %v752, 0.0
  %v817 = vmax.f32 %v753, 0.0
  %v818 = vmax.f32 %v754, 0.0
  %v819 = vmax.f32 %v755, 0.0
  %v820 = vmax.f32 %v756, 0.0
  %v821 = vmax.f32 %v757, 0.0
  %v822 = vmax.f32 %v758, 0.0
  %v823 = vmax.f32 %v759, 0.0
  %v824 = vmax.f32 %v760, 0.0
  %v825 = vmax.f32 %v761, 0.0
  %v826 = vmax.f32 %v762, 0.0
  %v827 = vmax.f32 %v763, 0.0
  %v828 = vmax.f32 %v764, 0.0
  %v829 = vmax.f32 %v765, 0.0
  %v830 = vmax.f32 %v766, 0.0
  %v831 = vmax.f32 %v767, 0.0
  %v832 = vmax.f32 %v768, 0.0
  %v833 = vmax.f32 %v769, 0.0
  %v834 = vmax.f32 %v770, 0.0
  %v835 = vmax.f32 %v771, 0.0
  %v836 = vmax.f32 %v772, 0.0
  %v837 = vmax.f32 %v773, 0.0
  %v838 = vmax.f32 %v774, 0.0
  %v839 = vmax.f32 %v775, 0.0
  %v840 = vmax.f32 %v776, 0.0
  %v841 = vmax.f32 %v777, 0.0
  %v842 = vmax.f32 %v778, 0.0
  %v843 = vmax.f32 %v779, 0.0
  %v844 = vmax.f32 %v780, 0.0
  %v845 = vmax.f32 %v781, 0.0
  %v846 = vmax.f32 %v782, 0.0
  %v847 = vmax.f32 %v783, 0.0
  %v848 = vmax.f32 %v784, 0.0
  %v849 = vmax.f32 %v785, 0.0
  %v850 = vpack.c.bf16 %v790, %v786
  %v851 = vpack.c.bf16 %v791, %v787
  %v852 = vpack.c.bf16 %v792, %v788
  %v853 = vpack.c.bf16 %v793, %v789
  %v854 = vpack.c.bf16 %v798, %v794
  %v855 = vpack.c.bf16 %v799, %v795
  %v856 = vpack.c.bf16 %v800, %v796
  %v857 = vpack.c.bf16 %v801, %v797
  %v858 = vpack.c.bf16 %v806, %v802
  %v859 = vpack.c.bf16 %v807, %v803
  %v860 = vpack.c.bf16 %v808, %v804
  %v861 = vpack.c.bf16 %v809, %v805
  %v862 = vpack.c.bf16 %v814, %v810
  %v863 = vpack.c.bf16 %v815, %v811
  %v864 = vpack.c.bf16 %v816, %v812
  %v865 = vpack.c.bf16 %v817, %v813
  %v866 = vpack.c.bf16 %v822, %v818
  %v867 = vpack.c.bf16 %v823, %v819
  %v868 = vpack.c.bf16 %v824, %v820
  %v869 = vpack.c.bf16 %v825, %v821
  %v870 = vpack.c.bf16 %v830, %v826
  %v871 = vpack.c.bf16 %v831, %v827
  %v872 = vpack.c.bf16 %v832, %v828
  %v873 = vpack.c.bf16 %v833, %v829
  %v874 = vpack.c.bf16 %v838, %v834
  %v875 = vpack.c.bf16 %v839, %v835
  %v876 = vpack.c.bf16 %v840, %v836
  %v877 = vpack.c.bf16 %v841, %v837
  %v878 = vpack.c.bf16 %v846, %v842
  %v879 = vpack.c.bf16 %v847, %v843
  %v880 = vpack.c.bf16 %v848, %v844
  %v881 = vpack.c.bf16 %v849, %v845
  %v914 = vunpack.c.l.b16 %v850
  %v915 = vunpack.c.l.b16 %v851
  %v916 = vunpack.c.l.b16 %v852
  %v917 = vunpack.c.l.b16 %v853
  %v918 = vunpack.c.h.b16 %v850
  %v919 = vunpack.c.h.b16 %v851
  %v920 = vunpack.c.h.b16 %v852
  %v921 = vunpack.c.h.b16 %v853
  %v922 = vunpack.c.l.b16 %v854
  %v923 = vunpack.c.l.b16 %v855
  %v924 = vunpack.c.l.b16 %v856
  %v925 = vunpack.c.l.b16 %v857
  %v926 = vunpack.c.h.b16 %v854
  %v927 = vunpack.c.h.b16 %v855
  %v928 = vunpack.c.h.b16 %v856
  %v929 = vunpack.c.h.b16 %v857
  %v930 = vunpack.c.l.b16 %v858
  %v931 = vunpack.c.l.b16 %v859
  %v932 = vunpack.c.l.b16 %v860
  %v933 = vunpack.c.l.b16 %v861
  %v934 = vunpack.c.h.b16 %v858
  %v935 = vunpack.c.h.b16 %v859
  %v936 = vunpack.c.h.b16 %v860
  %v937 = vunpack.c.h.b16 %v861
  %v938 = vunpack.c.l.b16 %v862
  %v939 = vunpack.c.l.b16 %v863
  %v940 = vunpack.c.l.b16 %v864
  %v941 = vunpack.c.l.b16 %v865
  %v942 = vunpack.c.h.b16 %v862
  %v943 = vunpack.c.h.b16 %v863
  %v944 = vunpack.c.h.b16 %v864
  %v945 = vunpack.c.h.b16 %v865
  %v946 = vunpack.c.l.b16 %v866
  %v947 = vunpack.c.l.b16 %v867
  %v948 = vunpack.c.l.b16 %v868
  %v949 = vunpack.c.l.b16 %v869
  %v950 = vunpack.c.h.b16 %v866
  %v951 = vunpack.c.h.b16 %v867
  %v952 = vunpack.c.h.b16 %v868
  %v953 = vunpack.c.h.b16 %v869
  %v954 = vunpack.c.l.b16 %v870
  %v955 = vunpack.c.l.b16 %v871
  %v956 = vunpack.c.l.b16 %v872
  %v957 = vunpack.c.l.b16 %v873
  %v958 = vunpack.c.h.b16 %v870
  %v959 = vunpack.c.h.b16 %v871
  %v960 = vunpack.c.h.b16 %v872
  %v961 = vunpack.c.h.b16 %v873
  %v962 = vunpack.c.l.b16 %v874
  %v963 = vunpack.c.l.b16 %v875
  %v964 = vunpack.c.l.b16 %v876
  %v965 = vunpack.c.l.b16 %v877
  %v966 = vunpack.c.h.b16 %v874
  %v967 = vunpack.c.h.b16 %v875
  %v968 = vunpack.c.h.b16 %v876
  %v969 = vunpack.c.h.b16 %v877
  %v970 = vunpack.c.l.b16 %v878
  %v971 = vunpack.c.l.b16 %v879
  %v972 = vunpack.c.l.b16 %v880
  %v973 = vunpack.c.l.b16 %v881
  %v974 = vunpack.c.h.b16 %v878
  %v975 = vunpack.c.h.b16 %v879
  %v976 = vunpack.c.h.b16 %v880
  %v977 = vunpack.c.h.b16 %v881
  %v978 = vpack.c.b16 %v915, %v914
  %v979 = vpack.c.b16 %v917, %v916
  %v980 = vpack.c.b16 %v919, %v918
  %v981 = vpack.c.b16 %v921, %v920
  %v982 = vpack.c.b16 %v923, %v922
  %v983 = vpack.c.b16 %v925, %v924
  %v984 = vpack.c.b16 %v927, %v926
  %v985 = vpack.c.b16 %v929, %v928
  %v986 = vpack.c.b16 %v931, %v930
  %v987 = vpack.c.b16 %v933, %v932
  %v988 = vpack.c.b16 %v935, %v934
  %v989 = vpack.c.b16 %v937, %v936
  %v990 = vpack.c.b16 %v939, %v938
  %v991 = vpack.c.b16 %v941, %v940
  %v992 = vpack.c.b16 %v943, %v942
  %v993 = vpack.c.b16 %v945, %v944
  %v994 = vpack.c.b16 %v947, %v946
  %v995 = vpack.c.b16 %v949, %v948
  %v996 = vpack.c.b16 %v951, %v950
  %v997 = vpack.c.b16 %v953, %v952
  %v998 = vpack.c.b16 %v955, %v954
  %v999 = vpack.c.b16 %v957, %v956
  %v1000 = vpack.c.b16 %v959, %v958
  %v1001 = vpack.c.b16 %v961, %v960
  %v1002 = vpack.c.b16 %v963, %v962
  %v1003 = vpack.c.b16 %v965, %v964
  %v1004 = vpack.c.b16 %v967, %v966
  %v1005 = vpack.c.b16 %v969, %v968
  %v1006 = vpack.c.b16 %v971, %v970
  %v1007 = vpack.c.b16 %v973, %v972
  %v1008 = vpack.c.b16 %v975, %v974
  %v1009 = vpack.c.b16 %v977, %v976
  %1042 = vst [vmem:[%s9] sm:$0xff] %v978
  %1043 = vst [vmem:[%s9 + $0x8] sm:$0xff] %v979
  %1044 = vst [vmem:[%s9 + $0x10] sm:$0xff] %v980
  %1045 = vst [vmem:[%s9 + $0x18] sm:$0xff] %v981
  %1046 = vst [vmem:[%s9 + $0x20] sm:$0xff] %v982
  %1047 = vst [vmem:[%s9 + $0x28] sm:$0xff] %v983
  %1048 = vst [vmem:[%s9 + $0x30] sm:$0xff] %v984
  %1049 = vst [vmem:[%s9 + $0x38] sm:$0xff] %v985
  %1050 = vst [vmem:[%s9 + $0x40] sm:$0xff] %v986
  %1051 = vst [vmem:[%s9 + $0x48] sm:$0xff] %v987
  %1052 = vst [vmem:[%s9 + $0x50] sm:$0xff] %v988
  %1053 = vst [vmem:[%s9 + $0x58] sm:$0xff] %v989
  %1054 = vst [vmem:[%s9 + $0x60] sm:$0xff] %v990
  %1055 = vst [vmem:[%s9 + $0x68] sm:$0xff] %v991
  %1056 = vst [vmem:[%s9 + $0x70] sm:$0xff] %v992
  %1057 = vst [vmem:[%s9 + $0x78] sm:$0xff] %v993
  %1058 = vst [vmem:[%s9 + $0x80] sm:$0xff] %v994
  %1059 = vst [vmem:[%s9 + $0x88] sm:$0xff] %v995
  %1060 = vst [vmem:[%s9 + $0x90] sm:$0xff] %v996
  %1061 = vst [vmem:[%s9 + $0x98] sm:$0xff] %v997
  %1062 = vst [vmem:[%s9 + $0xa0] sm:$0xff] %v998
  %1063 = vst [vmem:[%s9 + $0xa8] sm:$0xff] %v999
  %1064 = vst [vmem:[%s9 + $0xb0] sm:$0xff] %v1000
  %1065 = vst [vmem:[%s9 + $0xb8] sm:$0xff] %v1001
  %1066 = vst [vmem:[%s9 + $0xc0] sm:$0xff] %v1002
  %1067 = vst [vmem:[%s9 + $0xc8] sm:$0xff] %v1003
  %1068 = vst [vmem:[%s9 + $0xd0] sm:$0xff] %v1004
  %1069 = vst [vmem:[%s9 + $0xd8] sm:$0xff] %v1005
  %1070 = vst [vmem:[%s9 + $0xe0] sm:$0xff] %v1006
  %1071 = vst [vmem:[%s9 + $0xe8] sm:$0xff] %v1007
  %1072 = vst [vmem:[%s9 + $0xf0] sm:$0xff] %v1008
  %1073 = vst [vmem:[%s9 + $0xf8] sm:$0xff] %v1009
  %1074 = vst [vmem:[#allocation2] sm:$0xff] %v786
  %1075 = vst [vmem:[#allocation2 + $0x8] sm:$0xff] %v787
  %1076 = vst [vmem:[#allocation2 + $0x10] sm:$0xff] %v788
  %1077 = vst [vmem:[#allocation2 + $0x18] sm:$0xff] %v789
  %1078 = vst [vmem:[#allocation2 + $0x20] sm:$0xff] %v790
  %1079 = vst [vmem:[#allocation2 + $0x28] sm:$0xff] %v791
  %1080 = vst [vmem:[#allocation2 + $0x30] sm:$0xff] %v792
  %1081 = vst [vmem:[#allocation2 + $0x38] sm:$0xff] %v793
  %1082 = vst [vmem:[#allocation2 + $0x40] sm:$0xff] %v794
  %1083 = vst [vmem:[#allocation2 + $0x48] sm:$0xff] %v795
  %1084 = vst [vmem:[#allocation2 + $0x50] sm:$0xff] %v796
  %1085 = vst [vmem:[#allocation2 + $0x58] sm:$0xff] %v797
  %1086 = vst [vmem:[#allocation2 + $0x60] sm:$0xff] %v798
  %1087 = vst [vmem:[#allocation2 + $0x68] sm:$0xff] %v799
  %1088 = vst [vmem:[#allocation2 + $0x70] sm:$0xff] %v800
  %1089 = vst [vmem:[#allocation2 + $0x78] sm:$0xff] %v801
  %1090 = vst [vmem:[#allocation2 + $0x80] sm:$0xff] %v802
  %1091 = vst [vmem:[#allocation2 + $0x88] sm:$0xff] %v803
  %1092 = vst [vmem:[#allocation2 + $0x90] sm:$0xff] %v804
  %1093 = vst [vmem:[#allocation2 + $0x98] sm:$0xff] %v805
  %1094 = vst [vmem:[#allocation2 + $0xa0] sm:$0xff] %v806
  %1095 = vst [vmem:[#allocation2 + $0xa8] sm:$0xff] %v807
  %1096 = vst [vmem:[#allocation2 + $0xb0] sm:$0xff] %v808
  %1097 = vst [vmem:[#allocation2 + $0xb8] sm:$0xff] %v809
  %1098 = vst [vmem:[#allocation2 + $0xc0] sm:$0xff] %v810
  %1099 = vst [vmem:[#allocation2 + $0xc8] sm:$0xff] %v811
  %1100 = vst [vmem:[#allocation2 + $0xd0] sm:$0xff] %v812
  %1101 = vst [vmem:[#allocation2 + $0xd8] sm:$0xff] %v813
  %1102 = vst [vmem:[#allocation2 + $0xe0] sm:$0xff] %v814
  %1103 = vst [vmem:[#allocation2 + $0xe8] sm:$0xff] %v815
  %1104 = vst [vmem:[#allocation2 + $0xf0] sm:$0xff] %v816
  %1105 = vst [vmem:[#allocation2 + $0xf8] sm:$0xff] %v817
  %1106 = vst [vmem:[#allocation2 + $0x100] sm:$0xff] %v818
  %1107 = vst [vmem:[#allocation2 + $0x108] sm:$0xff] %v819
  %1108 = vst [vmem:[#allocation2 + $0x110] sm:$0xff] %v820
  %1109 = vst [vmem:[#allocation2 + $0x118] sm:$0xff] %v821
  %1110 = vst [vmem:[#allocation2 + $0x120] sm:$0xff] %v822
  %1111 = vst [vmem:[#allocation2 + $0x128] sm:$0xff] %v823
  %1112 = vst [vmem:[#allocation2 + $0x130] sm:$0xff] %v824
  %1113 = vst [vmem:[#allocation2 + $0x138] sm:$0xff] %v825
  %1114 = vst [vmem:[#allocation2 + $0x140] sm:$0xff] %v826
  %1115 = vst [vmem:[#allocation2 + $0x148] sm:$0xff] %v827
  %1116 = vst [vmem:[#allocation2 + $0x150] sm:$0xff] %v828
  %1117 = vst [vmem:[#allocation2 + $0x158] sm:$0xff] %v829
  %1118 = vst [vmem:[#allocation2 + $0x160] sm:$0xff] %v830
  %1119 = vst [vmem:[#allocation2 + $0x168] sm:$0xff] %v831
  %1120 = vst [vmem:[#allocation2 + $0x170] sm:$0xff] %v832
  %1121 = vst [vmem:[#allocation2 + $0x178] sm:$0xff] %v833
  %1122 = vst [vmem:[#allocation2 + $0x180] sm:$0xff] %v834
  %1123 = vst [vmem:[#allocation2 + $0x188] sm:$0xff] %v835
  %1124 = vst [vmem:[#allocation2 + $0x190] sm:$0xff] %v836
  %1125 = vst [vmem:[#allocation2 + $0x198] sm:$0xff] %v837
  %1126 = vst [vmem:[#allocation2 + $0x1a0] sm:$0xff] %v838
  %1127 = vst [vmem:[#allocation2 + $0x1a8] sm:$0xff] %v839
  %1128 = vst [vmem:[#allocation2 + $0x1b0] sm:$0xff] %v840
  %1129 = vst [vmem:[#allocation2 + $0x1b8] sm:$0xff] %v841
  %1130 = vst [vmem:[#allocation2 + $0x1c0] sm:$0xff] %v842
  %1131 = vst [vmem:[#allocation2 + $0x1c8] sm:$0xff] %v843
  %1132 = vst [vmem:[#allocation2 + $0x1d0] sm:$0xff] %v844
  %1133 = vst [vmem:[#allocation2 + $0x1d8] sm:$0xff] %v845
  %1134 = vst [vmem:[#allocation2 + $0x1e0] sm:$0xff] %v846
  %1135 = vst [vmem:[#allocation2 + $0x1e8] sm:$0xff] %v847
  %1136 = vst [vmem:[#allocation2 + $0x1f0] sm:$0xff] %v848
  %1137 = vst [vmem:[#allocation2 + $0x1f8] sm:$0xff] %v849
  %v1138 = vld [vmem:[#allocation2] sm:$0xff]
  %v1139 = vld [vmem:[#allocation2 + $0x20] sm:$0xff]
  %v1140 = vld [vmem:[#allocation2 + $0x40] sm:$0xff]
  %v1141 = vld [vmem:[#allocation2 + $0x60] sm:$0xff]
  %v1142 = vld [vmem:[#allocation2 + $0x80] sm:$0xff]
  %v1143 = vld [vmem:[#allocation2 + $0xa0] sm:$0xff]
  %v1144 = vld [vmem:[#allocation2 + $0xc0] sm:$0xff]
  %v1145 = vld [vmem:[#allocation2 + $0xe0] sm:$0xff]
  %v1146 = vld [vmem:[#allocation2 + $0x100] sm:$0xff]
  %v1147 = vld [vmem:[#allocation2 + $0x120] sm:$0xff]
  %v1148 = vld [vmem:[#allocation2 + $0x140] sm:$0xff]
  %v1149 = vld [vmem:[#allocation2 + $0x160] sm:$0xff]
  %v1150 = vld [vmem:[#allocation2 + $0x180] sm:$0xff]
  %v1151 = vld [vmem:[#allocation2 + $0x1a0] sm:$0xff]
  %v1152 = vld [vmem:[#allocation2 + $0x1c0] sm:$0xff]
  %v1153 = vld [vmem:[#allocation2 + $0x1e0] sm:$0xff]
  %1170 = vrot.lane.b32.xlu0 %v1138, 96
  %v1171 = vpop.permute.xlu0 %1170
  %1172 = vrot.lane.b32.xlu0 %v1139, 96
  %v1173 = vpop.permute.xlu0 %1172
  %1174 = vrot.lane.b32.xlu0 %v1140, 96
  %v1175 = vpop.permute.xlu0 %1174
  %1176 = vrot.lane.b32.xlu0 %v1141, 96
  %v1177 = vpop.permute.xlu0 %1176
  %1178 = vrot.lane.b32.xlu0 %v1142, 96
  %v1179 = vpop.permute.xlu0 %1178
  %1180 = vrot.lane.b32.xlu0 %v1143, 96
  %v1181 = vpop.permute.xlu0 %1180
  %1182 = vrot.lane.b32.xlu0 %v1144, 96
  %v1183 = vpop.permute.xlu0 %1182
  %1184 = vrot.lane.b32.xlu0 %v1145, 96
  %v1185 = vpop.permute.xlu0 %1184
  %1186 = vrot.lane.b32.xlu0 %v1146, 96
  %v1187 = vpop.permute.xlu0 %1186
  %1188 = vrot.lane.b32.xlu0 %v1147, 96
  %v1189 = vpop.permute.xlu0 %1188
  %1190 = vrot.lane.b32.xlu0 %v1148, 96
  %v1191 = vpop.permute.xlu0 %1190
  %1192 = vrot.lane.b32.xlu0 %v1149, 96
  %v1193 = vpop.permute.xlu0 %1192
  %1194 = vrot.lane.b32.xlu0 %v1150, 96
  %v1195 = vpop.permute.xlu0 %1194
  %1196 = vrot.lane.b32.xlu0 %v1151, 96
  %v1197 = vpop.permute.xlu0 %1196
  %1198 = vrot.lane.b32.xlu0 %v1152, 96
  %v1199 = vpop.permute.xlu0 %1198
  %1200 = vrot.lane.b32.xlu0 %v1153, 96
  %v1201 = vpop.permute.xlu0 %1200
  %v1218 = vmax.f32 %v1138, %v1171
  %v1219 = vmax.f32 %v1139, %v1173
  %v1220 = vmax.f32 %v1140, %v1175
  %v1221 = vmax.f32 %v1141, %v1177
  %v1222 = vmax.f32 %v1142, %v1179
  %v1223 = vmax.f32 %v1143, %v1181
  %v1224 = vmax.f32 %v1144, %v1183
  %v1225 = vmax.f32 %v1145, %v1185
  %v1226 = vmax.f32 %v1146, %v1187
  %v1227 = vmax.f32 %v1147, %v1189
  %v1228 = vmax.f32 %v1148, %v1191
  %v1229 = vmax.f32 %v1149, %v1193
  %v1230 = vmax.f32 %v1150, %v1195
  %v1231 = vmax.f32 %v1151, %v1197
  %v1232 = vmax.f32 %v1152, %v1199
  %v1233 = vmax.f32 %v1153, %v1201
  %1234 = vrot.lane.b32.xlu0 %v1138, 64
  %v1235 = vpop.permute.xlu0 %1234
  %1236 = vrot.lane.b32.xlu0 %v1139, 64
  %v1237 = vpop.permute.xlu0 %1236
  %1238 = vrot.lane.b32.xlu0 %v1140, 64
  %v1239 = vpop.permute.xlu0 %1238
  %1240 = vrot.lane.b32.xlu0 %v1141, 64
  %v1241 = vpop.permute.xlu0 %1240
  %1242 = vrot.lane.b32.xlu0 %v1142, 64
  %v1243 = vpop.permute.xlu0 %1242
  %1244 = vrot.lane.b32.xlu0 %v1143, 64
  %v1245 = vpop.permute.xlu0 %1244
  %1246 = vrot.lane.b32.xlu0 %v1144, 64
  %v1247 = vpop.permute.xlu0 %1246
  %1248 = vrot.lane.b32.xlu0 %v1145, 64
  %v1249 = vpop.permute.xlu0 %1248
  %1250 = vrot.lane.b32.xlu0 %v1146, 64
  %v1251 = vpop.permute.xlu0 %1250
  %1252 = vrot.lane.b32.xlu0 %v1147, 64
  %v1253 = vpop.permute.xlu0 %1252
  %1254 = vrot.lane.b32.xlu0 %v1148, 64
  %v1255 = vpop.permute.xlu0 %1254
  %1256 = vrot.lane.b32.xlu0 %v1149, 64
  %v1257 = vpop.permute.xlu0 %1256
  %1258 = vrot.lane.b32.xlu0 %v1150, 64
  %v1259 = vpop.permute.xlu0 %1258
  %1260 = vrot.lane.b32.xlu0 %v1151, 64
  %v1261 = vpop.permute.xlu0 %1260
  %1262 = vrot.lane.b32.xlu0 %v1152, 64
  %v1263 = vpop.permute.xlu0 %1262
  %1264 = vrot.lane.b32.xlu0 %v1153, 64
  %v1265 = vpop.permute.xlu0 %1264
  %v1282 = vmax.f32 %v1218, %v1235
  %v1283 = vmax.f32 %v1219, %v1237
  %v1284 = vmax.f32 %v1220, %v1239
  %v1285 = vmax.f32 %v1221, %v1241
  %v1286 = vmax.f32 %v1222, %v1243
  %v1287 = vmax.f32 %v1223, %v1245
  %v1288 = vmax.f32 %v1224, %v1247
  %v1289 = vmax.f32 %v1225, %v1249
  %v1290 = vmax.f32 %v1226, %v1251
  %v1291 = vmax.f32 %v1227, %v1253
  %v1292 = vmax.f32 %v1228, %v1255
  %v1293 = vmax.f32 %v1229, %v1257
  %v1294 = vmax.f32 %v1230, %v1259
  %v1295 = vmax.f32 %v1231, %v1261
  %v1296 = vmax.f32 %v1232, %v1263
  %v1297 = vmax.f32 %v1233, %v1265
  %1298 = vrot.lane.b32.xlu0 %v1138, 32
  %v1299 = vpop.permute.xlu0 %1298
  %1300 = vrot.lane.b32.xlu0 %v1139, 32
  %v1301 = vpop.permute.xlu0 %1300
  %1302 = vrot.lane.b32.xlu0 %v1140, 32
  %v1303 = vpop.permute.xlu0 %1302
  %1304 = vrot.lane.b32.xlu0 %v1141, 32
  %v1305 = vpop.permute.xlu0 %1304
  %1306 = vrot.lane.b32.xlu0 %v1142, 32
  %v1307 = vpop.permute.xlu0 %1306
  %1308 = vrot.lane.b32.xlu0 %v1143, 32
  %v1309 = vpop.permute.xlu0 %1308
  %1310 = vrot.lane.b32.xlu0 %v1144, 32
  %v1311 = vpop.permute.xlu0 %1310
  %1312 = vrot.lane.b32.xlu0 %v1145, 32
  %v1313 = vpop.permute.xlu0 %1312
  %1314 = vrot.lane.b32.xlu0 %v1146, 32
  %v1315 = vpop.permute.xlu0 %1314
  %1316 = vrot.lane.b32.xlu0 %v1147, 32
  %v1317 = vpop.permute.xlu0 %1316
  %1318 = vrot.lane.b32.xlu0 %v1148, 32
  %v1319 = vpop.permute.xlu0 %1318
  %1320 = vrot.lane.b32.xlu0 %v1149, 32
  %v1321 = vpop.permute.xlu0 %1320
  %1322 = vrot.lane.b32.xlu0 %v1150, 32
  %v1323 = vpop.permute.xlu0 %1322
  %1324 = vrot.lane.b32.xlu0 %v1151, 32
  %v1325 = vpop.permute.xlu0 %1324
  %1326 = vrot.lane.b32.xlu0 %v1152, 32
  %v1327 = vpop.permute.xlu0 %1326
  %1328 = vrot.lane.b32.xlu0 %v1153, 32
  %v1329 = vpop.permute.xlu0 %1328
  %v1346 = vmax.f32 %v1282, %v1299
  %v1347 = vmax.f32 %v1283, %v1301
  %v1348 = vmax.f32 %v1284, %v1303
  %v1349 = vmax.f32 %v1285, %v1305
  %v1350 = vmax.f32 %v1286, %v1307
  %v1351 = vmax.f32 %v1287, %v1309
  %v1352 = vmax.f32 %v1288, %v1311
  %v1353 = vmax.f32 %v1289, %v1313
  %v1354 = vmax.f32 %v1290, %v1315
  %v1355 = vmax.f32 %v1291, %v1317
  %v1356 = vmax.f32 %v1292, %v1319
  %v1357 = vmax.f32 %v1293, %v1321
  %v1358 = vmax.f32 %v1294, %v1323
  %v1359 = vmax.f32 %v1295, %v1325
  %v1360 = vmax.f32 %v1296, %v1327
  %v1361 = vmax.f32 %v1297, %v1329
  %v1362 = vld [vmem:[#allocation2 + $0x8] sm:$0xff]
  %v1363 = vld [vmem:[#allocation2 + $0x28] sm:$0xff]
  %v1364 = vld [vmem:[#allocation2 + $0x48] sm:$0xff]
  %v1365 = vld [vmem:[#allocation2 + $0x68] sm:$0xff]
  %v1366 = vld [vmem:[#allocation2 + $0x88] sm:$0xff]
  %v1367 = vld [vmem:[#allocation2 + $0xa8] sm:$0xff]
  %v1368 = vld [vmem:[#allocation2 + $0xc8] sm:$0xff]
  %v1369 = vld [vmem:[#allocation2 + $0xe8] sm:$0xff]
  %v1370 = vld [vmem:[#allocation2 + $0x108] sm:$0xff]
  %v1371 = vld [vmem:[#allocation2 + $0x128] sm:$0xff]
  %v1372 = vld [vmem:[#allocation2 + $0x148] sm:$0xff]
  %v1373 = vld [vmem:[#allocation2 + $0x168] sm:$0xff]
  %v1374 = vld [vmem:[#allocation2 + $0x188] sm:$0xff]
  %v1375 = vld [vmem:[#allocation2 + $0x1a8] sm:$0xff]
  %v1376 = vld [vmem:[#allocation2 + $0x1c8] sm:$0xff]
  %v1377 = vld [vmem:[#allocation2 + $0x1e8] sm:$0xff]
  %v1378 = vmax.f32 %v1346, %v1362
  %v1379 = vmax.f32 %v1347, %v1363
  %v1380 = vmax.f32 %v1348, %v1364
  %v1381 = vmax.f32 %v1349, %v1365
  %v1382 = vmax.f32 %v1350, %v1366
  %v1383 = vmax.f32 %v1351, %v1367
  %v1384 = vmax.f32 %v1352, %v1368
  %v1385 = vmax.f32 %v1353, %v1369
  %v1386 = vmax.f32 %v1354, %v1370
  %v1387 = vmax.f32 %v1355, %v1371
  %v1388 = vmax.f32 %v1356, %v1372
  %v1389 = vmax.f32 %v1357, %v1373
  %v1390 = vmax.f32 %v1358, %v1374
  %v1391 = vmax.f32 %v1359, %v1375
  %v1392 = vmax.f32 %v1360, %v1376
  %v1393 = vmax.f32 %v1361, %v1377
  %1410 = vrot.lane.b32.xlu0 %v1362, 96
  %v1411 = vpop.permute.xlu0 %1410
  %1412 = vrot.lane.b32.xlu0 %v1363, 96
  %v1413 = vpop.permute.xlu0 %1412
  %1414 = vrot.lane.b32.xlu0 %v1364, 96
  %v1415 = vpop.permute.xlu0 %1414
  %1416 = vrot.lane.b32.xlu0 %v1365, 96
  %v1417 = vpop.permute.xlu0 %1416
  %1418 = vrot.lane.b32.xlu0 %v1366, 96
  %v1419 = vpop.permute.xlu0 %1418
  %1420 = vrot.lane.b32.xlu0 %v1367, 96
  %v1421 = vpop.permute.xlu0 %1420
  %1422 = vrot.lane.b32.xlu0 %v1368, 96
  %v1423 = vpop.permute.xlu0 %1422
  %1424 = vrot.lane.b32.xlu0 %v1369, 96
  %v1425 = vpop.permute.xlu0 %1424
  %1426 = vrot.lane.b32.xlu0 %v1370, 96
  %v1427 = vpop.permute.xlu0 %1426
  %1428 = vrot.lane.b32.xlu0 %v1371, 96
  %v1429 = vpop.permute.xlu0 %1428
  %1430 = vrot.lane.b32.xlu0 %v1372, 96
  %v1431 = vpop.permute.xlu0 %1430
  %1432 = vrot.lane.b32.xlu0 %v1373, 96
  %v1433 = vpop.permute.xlu0 %1432
  %1434 = vrot.lane.b32.xlu0 %v1374, 96
  %v1435 = vpop.permute.xlu0 %1434
  %1436 = vrot.lane.b32.xlu0 %v1375, 96
  %v1437 = vpop.permute.xlu0 %1436
  %1438 = vrot.lane.b32.xlu0 %v1376, 96
  %v1439 = vpop.permute.xlu0 %1438
  %1440 = vrot.lane.b32.xlu0 %v1377, 96
  %v1441 = vpop.permute.xlu0 %1440
  %v1458 = vmax.f32 %v1378, %v1411
  %v1459 = vmax.f32 %v1379, %v1413
  %v1460 = vmax.f32 %v1380, %v1415
  %v1461 = vmax.f32 %v1381, %v1417
  %v1462 = vmax.f32 %v1382, %v1419
  %v1463 = vmax.f32 %v1383, %v1421
  %v1464 = vmax.f32 %v1384, %v1423
  %v1465 = vmax.f32 %v1385, %v1425
  %v1466 = vmax.f32 %v1386, %v1427
  %v1467 = vmax.f32 %v1387, %v1429
  %v1468 = vmax.f32 %v1388, %v1431
  %v1469 = vmax.f32 %v1389, %v1433
  %v1470 = vmax.f32 %v1390, %v1435
  %v1471 = vmax.f32 %v1391, %v1437
  %v1472 = vmax.f32 %v1392, %v1439
  %v1473 = vmax.f32 %v1393, %v1441
  %1474 = vrot.lane.b32.xlu0 %v1362, 64
  %v1475 = vpop.permute.xlu0 %1474
  %1476 = vrot.lane.b32.xlu0 %v1363, 64
  %v1477 = vpop.permute.xlu0 %1476
  %1478 = vrot.lane.b32.xlu0 %v1364, 64
  %v1479 = vpop.permute.xlu0 %1478
  %1480 = vrot.lane.b32.xlu0 %v1365, 64
  %v1481 = vpop.permute.xlu0 %1480
  %1482 = vrot.lane.b32.xlu0 %v1366, 64
  %v1483 = vpop.permute.xlu0 %1482
  %1484 = vrot.lane.b32.xlu0 %v1367, 64
  %v1485 = vpop.permute.xlu0 %1484
  %1486 = vrot.lane.b32.xlu0 %v1368, 64
  %v1487 = vpop.permute.xlu0 %1486
  %1488 = vrot.lane.b32.xlu0 %v1369, 64
  %v1489 = vpop.permute.xlu0 %1488
  %1490 = vrot.lane.b32.xlu0 %v1370, 64
  %v1491 = vpop.permute.xlu0 %1490
  %1492 = vrot.lane.b32.xlu0 %v1371, 64
  %v1493 = vpop.permute.xlu0 %1492
  %1494 = vrot.lane.b32.xlu0 %v1372, 64
  %v1495 = vpop.permute.xlu0 %1494
  %1496 = vrot.lane.b32.xlu0 %v1373, 64
  %v1497 = vpop.permute.xlu0 %1496
  %1498 = vrot.lane.b32.xlu0 %v1374, 64
  %v1499 = vpop.permute.xlu0 %1498
  %1500 = vrot.lane.b32.xlu0 %v1375, 64
  %v1501 = vpop.permute.xlu0 %1500
  %1502 = vrot.lane.b32.xlu0 %v1376, 64
  %v1503 = vpop.permute.xlu0 %1502
  %1504 = vrot.lane.b32.xlu0 %v1377, 64
  %v1505 = vpop.permute.xlu0 %1504
  %v1522 = vmax.f32 %v1458, %v1475
  %v1523 = vmax.f32 %v1459, %v1477
  %v1524 = vmax.f32 %v1460, %v1479
  %v1525 = vmax.f32 %v1461, %v1481
  %v1526 = vmax.f32 %v1462, %v1483
  %v1527 = vmax.f32 %v1463, %v1485
  %v1528 = vmax.f32 %v1464, %v1487
  %v1529 = vmax.f32 %v1465, %v1489
  %v1530 = vmax.f32 %v1466, %v1491
  %v1531 = vmax.f32 %v1467, %v1493
  %v1532 = vmax.f32 %v1468, %v1495
  %v1533 = vmax.f32 %v1469, %v1497
  %v1534 = vmax.f32 %v1470, %v1499
  %v1535 = vmax.f32 %v1471, %v1501
  %v1536 = vmax.f32 %v1472, %v1503
  %v1537 = vmax.f32 %v1473, %v1505
  %1538 = vrot.lane.b32.xlu0 %v1362, 32
  %v1539 = vpop.permute.xlu0 %1538
  %1540 = vrot.lane.b32.xlu0 %v1363, 32
  %v1541 = vpop.permute.xlu0 %1540
  %1542 = vrot.lane.b32.xlu0 %v1364, 32
  %v1543 = vpop.permute.xlu0 %1542
  %1544 = vrot.lane.b32.xlu0 %v1365, 32
  %v1545 = vpop.permute.xlu0 %1544
  %1546 = vrot.lane.b32.xlu0 %v1366, 32
  %v1547 = vpop.permute.xlu0 %1546
  %1548 = vrot.lane.b32.xlu0 %v1367, 32
  %v1549 = vpop.permute.xlu0 %1548
  %1550 = vrot.lane.b32.xlu0 %v1368, 32
  %v1551 = vpop.permute.xlu0 %1550
  %1552 = vrot.lane.b32.xlu0 %v1369, 32
  %v1553 = vpop.permute.xlu0 %1552
  %1554 = vrot.lane.b32.xlu0 %v1370, 32
  %v1555 = vpop.permute.xlu0 %1554
  %1556 = vrot.lane.b32.xlu0 %v1371, 32
  %v1557 = vpop.permute.xlu0 %1556
  %1558 = vrot.lane.b32.xlu0 %v1372, 32
  %v1559 = vpop.permute.xlu0 %1558
  %1560 = vrot.lane.b32.xlu0 %v1373, 32
  %v1561 = vpop.permute.xlu0 %1560
  %1562 = vrot.lane.b32.xlu0 %v1374, 32
  %v1563 = vpop.permute.xlu0 %1562
  %1564 = vrot.lane.b32.xlu0 %v1375, 32
  %v1565 = vpop.permute.xlu0 %1564
  %1566 = vrot.lane.b32.xlu0 %v1376, 32
  %v1567 = vpop.permute.xlu0 %1566
  %1568 = vrot.lane.b32.xlu0 %v1377, 32
  %v1569 = vpop.permute.xlu0 %1568
  %v1586 = vmax.f32 %v1522, %v1539
  %v1587 = vmax.f32 %v1523, %v1541
  %v1588 = vmax.f32 %v1524, %v1543
  %v1589 = vmax.f32 %v1525, %v1545
  %v1590 = vmax.f32 %v1526, %v1547
  %v1591 = vmax.f32 %v1527, %v1549
  %v1592 = vmax.f32 %v1528, %v1551
  %v1593 = vmax.f32 %v1529, %v1553
  %v1594 = vmax.f32 %v1530, %v1555
  %v1595 = vmax.f32 %v1531, %v1557
  %v1596 = vmax.f32 %v1532, %v1559
  %v1597 = vmax.f32 %v1533, %v1561
  %v1598 = vmax.f32 %v1534, %v1563
  %v1599 = vmax.f32 %v1535, %v1565
  %v1600 = vmax.f32 %v1536, %v1567
  %v1601 = vmax.f32 %v1537, %v1569
  %v1602 = vld [vmem:[#allocation2 + $0x10] sm:$0xff]
  %v1603 = vld [vmem:[#allocation2 + $0x30] sm:$0xff]
  %v1604 = vld [vmem:[#allocation2 + $0x50] sm:$0xff]
  %v1605 = vld [vmem:[#allocation2 + $0x70] sm:$0xff]
  %v1606 = vld [vmem:[#allocation2 + $0x90] sm:$0xff]
  %v1607 = vld [vmem:[#allocation2 + $0xb0] sm:$0xff]
  %v1608 = vld [vmem:[#allocation2 + $0xd0] sm:$0xff]
  %v1609 = vld [vmem:[#allocation2 + $0xf0] sm:$0xff]
  %v1610 = vld [vmem:[#allocation2 + $0x110] sm:$0xff]
  %v1611 = vld [vmem:[#allocation2 + $0x130] sm:$0xff]
  %v1612 = vld [vmem:[#allocation2 + $0x150] sm:$0xff]
  %v1613 = vld [vmem:[#allocation2 + $0x170] sm:$0xff]
  %v1614 = vld [vmem:[#allocation2 + $0x190] sm:$0xff]
  %v1615 = vld [vmem:[#allocation2 + $0x1b0] sm:$0xff]
  %v1616 = vld [vmem:[#allocation2 + $0x1d0] sm:$0xff]
  %v1617 = vld [vmem:[#allocation2 + $0x1f0] sm:$0xff]
  %v1618 = vmax.f32 %v1586, %v1602
  %v1619 = vmax.f32 %v1587, %v1603
  %v1620 = vmax.f32 %v1588, %v1604
  %v1621 = vmax.f32 %v1589, %v1605
  %v1622 = vmax.f32 %v1590, %v1606
  %v1623 = vmax.f32 %v1591, %v1607
  %v1624 = vmax.f32 %v1592, %v1608
  %v1625 = vmax.f32 %v1593, %v1609
  %v1626 = vmax.f32 %v1594, %v1610
  %v1627 = vmax.f32 %v1595, %v1611
  %v1628 = vmax.f32 %v1596, %v1612
  %v1629 = vmax.f32 %v1597, %v1613
  %v1630 = vmax.f32 %v1598, %v1614
  %v1631 = vmax.f32 %v1599, %v1615
  %v1632 = vmax.f32 %v1600, %v1616
  %v1633 = vmax.f32 %v1601, %v1617
  %1650 = vrot.lane.b32.xlu0 %v1602, 96
  %v1651 = vpop.permute.xlu0 %1650
  %1652 = vrot.lane.b32.xlu0 %v1603, 96
  %v1653 = vpop.permute.xlu0 %1652
  %1654 = vrot.lane.b32.xlu0 %v1604, 96
  %v1655 = vpop.permute.xlu0 %1654
  %1656 = vrot.lane.b32.xlu0 %v1605, 96
  %v1657 = vpop.permute.xlu0 %1656
  %1658 = vrot.lane.b32.xlu0 %v1606, 96
  %v1659 = vpop.permute.xlu0 %1658
  %1660 = vrot.lane.b32.xlu0 %v1607, 96
  %v1661 = vpop.permute.xlu0 %1660
  %1662 = vrot.lane.b32.xlu0 %v1608, 96
  %v1663 = vpop.permute.xlu0 %1662
  %1664 = vrot.lane.b32.xlu0 %v1609, 96
  %v1665 = vpop.permute.xlu0 %1664
  %1666 = vrot.lane.b32.xlu0 %v1610, 96
  %v1667 = vpop.permute.xlu0 %1666
  %1668 = vrot.lane.b32.xlu0 %v1611, 96
  %v1669 = vpop.permute.xlu0 %1668
  %1670 = vrot.lane.b32.xlu0 %v1612, 96
  %v1671 = vpop.permute.xlu0 %1670
  %1672 = vrot.lane.b32.xlu0 %v1613, 96
  %v1673 = vpop.permute.xlu0 %1672
  %1674 = vrot.lane.b32.xlu0 %v1614, 96
  %v1675 = vpop.permute.xlu0 %1674
  %1676 = vrot.lane.b32.xlu0 %v1615, 96
  %v1677 = vpop.permute.xlu0 %1676
  %1678 = vrot.lane.b32.xlu0 %v1616, 96
  %v1679 = vpop.permute.xlu0 %1678
  %1680 = vrot.lane.b32.xlu0 %v1617, 96
  %v1681 = vpop.permute.xlu0 %1680
  %v1698 = vmax.f32 %v1618, %v1651
  %v1699 = vmax.f32 %v1619, %v1653
  %v1700 = vmax.f32 %v1620, %v1655
  %v1701 = vmax.f32 %v1621, %v1657
  %v1702 = vmax.f32 %v1622, %v1659
  %v1703 = vmax.f32 %v1623, %v1661
  %v1704 = vmax.f32 %v1624, %v1663
  %v1705 = vmax.f32 %v1625, %v1665
  %v1706 = vmax.f32 %v1626, %v1667
  %v1707 = vmax.f32 %v1627, %v1669
  %v1708 = vmax.f32 %v1628, %v1671
  %v1709 = vmax.f32 %v1629, %v1673
  %v1710 = vmax.f32 %v1630, %v1675
  %v1711 = vmax.f32 %v1631, %v1677
  %v1712 = vmax.f32 %v1632, %v1679
  %v1713 = vmax.f32 %v1633, %v1681
  %1714 = vrot.lane.b32.xlu0 %v1602, 64
  %v1715 = vpop.permute.xlu0 %1714
  %1716 = vrot.lane.b32.xlu0 %v1603, 64
  %v1717 = vpop.permute.xlu0 %1716
  %1718 = vrot.lane.b32.xlu0 %v1604, 64
  %v1719 = vpop.permute.xlu0 %1718
  %1720 = vrot.lane.b32.xlu0 %v1605, 64
  %v1721 = vpop.permute.xlu0 %1720
  %1722 = vrot.lane.b32.xlu0 %v1606, 64
  %v1723 = vpop.permute.xlu0 %1722
  %1724 = vrot.lane.b32.xlu0 %v1607, 64
  %v1725 = vpop.permute.xlu0 %1724
  %1726 = vrot.lane.b32.xlu0 %v1608, 64
  %v1727 = vpop.permute.xlu0 %1726
  %1728 = vrot.lane.b32.xlu0 %v1609, 64
  %v1729 = vpop.permute.xlu0 %1728
  %1730 = vrot.lane.b32.xlu0 %v1610, 64
  %v1731 = vpop.permute.xlu0 %1730
  %1732 = vrot.lane.b32.xlu0 %v1611, 64
  %v1733 = vpop.permute.xlu0 %1732
  %1734 = vrot.lane.b32.xlu0 %v1612, 64
  %v1735 = vpop.permute.xlu0 %1734
  %1736 = vrot.lane.b32.xlu0 %v1613, 64
  %v1737 = vpop.permute.xlu0 %1736
  %1738 = vrot.lane.b32.xlu0 %v1614, 64
  %v1739 = vpop.permute.xlu0 %1738
  %1740 = vrot.lane.b32.xlu0 %v1615, 64
  %v1741 = vpop.permute.xlu0 %1740
  %1742 = vrot.lane.b32.xlu0 %v1616, 64
  %v1743 = vpop.permute.xlu0 %1742
  %1744 = vrot.lane.b32.xlu0 %v1617, 64
  %v1745 = vpop.permute.xlu0 %1744
  %v1762 = vmax.f32 %v1698, %v1715
  %v1763 = vmax.f32 %v1699, %v1717
  %v1764 = vmax.f32 %v1700, %v1719
  %v1765 = vmax.f32 %v1701, %v1721
  %v1766 = vmax.f32 %v1702, %v1723
  %v1767 = vmax.f32 %v1703, %v1725
  %v1768 = vmax.f32 %v1704, %v1727
  %v1769 = vmax.f32 %v1705, %v1729
  %v1770 = vmax.f32 %v1706, %v1731
  %v1771 = vmax.f32 %v1707, %v1733
  %v1772 = vmax.f32 %v1708, %v1735
  %v1773 = vmax.f32 %v1709, %v1737
  %v1774 = vmax.f32 %v1710, %v1739
  %v1775 = vmax.f32 %v1711, %v1741
  %v1776 = vmax.f32 %v1712, %v1743
  %v1777 = vmax.f32 %v1713, %v1745
  %1778 = vrot.lane.b32.xlu0 %v1602, 32
  %v1779 = vpop.permute.xlu0 %1778
  %1780 = vrot.lane.b32.xlu0 %v1603, 32
  %v1781 = vpop.permute.xlu0 %1780
  %1782 = vrot.lane.b32.xlu0 %v1604, 32
  %v1783 = vpop.permute.xlu0 %1782
  %1784 = vrot.lane.b32.xlu0 %v1605, 32
  %v1785 = vpop.permute.xlu0 %1784
  %1786 = vrot.lane.b32.xlu0 %v1606, 32
  %v1787 = vpop.permute.xlu0 %1786
  %1788 = vrot.lane.b32.xlu0 %v1607, 32
  %v1789 = vpop.permute.xlu0 %1788
  %1790 = vrot.lane.b32.xlu0 %v1608, 32
  %v1791 = vpop.permute.xlu0 %1790
  %1792 = vrot.lane.b32.xlu0 %v1609, 32
  %v1793 = vpop.permute.xlu0 %1792
  %1794 = vrot.lane.b32.xlu0 %v1610, 32
  %v1795 = vpop.permute.xlu0 %1794
  %1796 = vrot.lane.b32.xlu0 %v1611, 32
  %v1797 = vpop.permute.xlu0 %1796
  %1798 = vrot.lane.b32.xlu0 %v1612, 32
  %v1799 = vpop.permute.xlu0 %1798
  %1800 = vrot.lane.b32.xlu0 %v1613, 32
  %v1801 = vpop.permute.xlu0 %1800
  %1802 = vrot.lane.b32.xlu0 %v1614, 32
  %v1803 = vpop.permute.xlu0 %1802
  %1804 = vrot.lane.b32.xlu0 %v1615, 32
  %v1805 = vpop.permute.xlu0 %1804
  %1806 = vrot.lane.b32.xlu0 %v1616, 32
  %v1807 = vpop.permute.xlu0 %1806
  %1808 = vrot.lane.b32.xlu0 %v1617, 32
  %v1809 = vpop.permute.xlu0 %1808
  %v1826 = vmax.f32 %v1762, %v1779
  %v1827 = vmax.f32 %v1763, %v1781
  %v1828 = vmax.f32 %v1764, %v1783
  %v1829 = vmax.f32 %v1765, %v1785
  %v1830 = vmax.f32 %v1766, %v1787
  %v1831 = vmax.f32 %v1767, %v1789
  %v1832 = vmax.f32 %v1768, %v1791
  %v1833 = vmax.f32 %v1769, %v1793
  %v1834 = vmax.f32 %v1770, %v1795
  %v1835 = vmax.f32 %v1771, %v1797
  %v1836 = vmax.f32 %v1772, %v1799
  %v1837 = vmax.f32 %v1773, %v1801
  %v1838 = vmax.f32 %v1774, %v1803
  %v1839 = vmax.f32 %v1775, %v1805
  %v1840 = vmax.f32 %v1776, %v1807
  %v1841 = vmax.f32 %v1777, %v1809
  %v1842 = vld [vmem:[#allocation2 + $0x18] sm:$0xff]
  %v1843 = vld [vmem:[#allocation2 + $0x38] sm:$0xff]
  %v1844 = vld [vmem:[#allocation2 + $0x58] sm:$0xff]
  %v1845 = vld [vmem:[#allocation2 + $0x78] sm:$0xff]
  %v1846 = vld [vmem:[#allocation2 + $0x98] sm:$0xff]
  %v1847 = vld [vmem:[#allocation2 + $0xb8] sm:$0xff]
  %v1848 = vld [vmem:[#allocation2 + $0xd8] sm:$0xff]
  %v1849 = vld [vmem:[#allocation2 + $0xf8] sm:$0xff]
  %v1850 = vld [vmem:[#allocation2 + $0x118] sm:$0xff]
  %v1851 = vld [vmem:[#allocation2 + $0x138] sm:$0xff]
  %v1852 = vld [vmem:[#allocation2 + $0x158] sm:$0xff]
  %v1853 = vld [vmem:[#allocation2 + $0x178] sm:$0xff]
  %v1854 = vld [vmem:[#allocation2 + $0x198] sm:$0xff]
  %v1855 = vld [vmem:[#allocation2 + $0x1b8] sm:$0xff]
  %v1856 = vld [vmem:[#allocation2 + $0x1d8] sm:$0xff]
  %v1857 = vld [vmem:[#allocation2 + $0x1f8] sm:$0xff]
  %v1858 = vmax.f32 %v1826, %v1842
  %v1859 = vmax.f32 %v1827, %v1843
  %v1860 = vmax.f32 %v1828, %v1844
  %v1861 = vmax.f32 %v1829, %v1845
  %v1862 = vmax.f32 %v1830, %v1846
  %v1863 = vmax.f32 %v1831, %v1847
  %v1864 = vmax.f32 %v1832, %v1848
  %v1865 = vmax.f32 %v1833, %v1849
  %v1866 = vmax.f32 %v1834, %v1850
  %v1867 = vmax.f32 %v1835, %v1851
  %v1868 = vmax.f32 %v1836, %v1852
  %v1869 = vmax.f32 %v1837, %v1853
  %v1870 = vmax.f32 %v1838, %v1854
  %v1871 = vmax.f32 %v1839, %v1855
  %v1872 = vmax.f32 %v1840, %v1856
  %v1873 = vmax.f32 %v1841, %v1857
  %1890 = vrot.lane.b32.xlu0 %v1842, 96
  %v1891 = vpop.permute.xlu0 %1890
  %1892 = vrot.lane.b32.xlu0 %v1843, 96
  %v1893 = vpop.permute.xlu0 %1892
  %1894 = vrot.lane.b32.xlu0 %v1844, 96
  %v1895 = vpop.permute.xlu0 %1894
  %1896 = vrot.lane.b32.xlu0 %v1845, 96
  %v1897 = vpop.permute.xlu0 %1896
  %1898 = vrot.lane.b32.xlu0 %v1846, 96
  %v1899 = vpop.permute.xlu0 %1898
  %1900 = vrot.lane.b32.xlu0 %v1847, 96
  %v1901 = vpop.permute.xlu0 %1900
  %1902 = vrot.lane.b32.xlu0 %v1848, 96
  %v1903 = vpop.permute.xlu0 %1902
  %1904 = vrot.lane.b32.xlu0 %v1849, 96
  %v1905 = vpop.permute.xlu0 %1904
  %1906 = vrot.lane.b32.xlu0 %v1850, 96
  %v1907 = vpop.permute.xlu0 %1906
  %1908 = vrot.lane.b32.xlu0 %v1851, 96
  %v1909 = vpop.permute.xlu0 %1908
  %1910 = vrot.lane.b32.xlu0 %v1852, 96
  %v1911 = vpop.permute.xlu0 %1910
  %1912 = vrot.lane.b32.xlu0 %v1853, 96
  %v1913 = vpop.permute.xlu0 %1912
  %1914 = vrot.lane.b32.xlu0 %v1854, 96
  %v1915 = vpop.permute.xlu0 %1914
  %1916 = vrot.lane.b32.xlu0 %v1855, 96
  %v1917 = vpop.permute.xlu0 %1916
  %1918 = vrot.lane.b32.xlu0 %v1856, 96
  %v1919 = vpop.permute.xlu0 %1918
  %1920 = vrot.lane.b32.xlu0 %v1857, 96
  %v1921 = vpop.permute.xlu0 %1920
  %v1938 = vmax.f32 %v1858, %v1891
  %v1939 = vmax.f32 %v1859, %v1893
  %v1940 = vmax.f32 %v1860, %v1895
  %v1941 = vmax.f32 %v1861, %v1897
  %v1942 = vmax.f32 %v1862, %v1899
  %v1943 = vmax.f32 %v1863, %v1901
  %v1944 = vmax.f32 %v1864, %v1903
  %v1945 = vmax.f32 %v1865, %v1905
  %v1946 = vmax.f32 %v1866, %v1907
  %v1947 = vmax.f32 %v1867, %v1909
  %v1948 = vmax.f32 %v1868, %v1911
  %v1949 = vmax.f32 %v1869, %v1913
  %v1950 = vmax.f32 %v1870, %v1915
  %v1951 = vmax.f32 %v1871, %v1917
  %v1952 = vmax.f32 %v1872, %v1919
  %v1953 = vmax.f32 %v1873, %v1921
  %1954 = vrot.lane.b32.xlu0 %v1842, 64
  %v1955 = vpop.permute.xlu0 %1954
  %1956 = vrot.lane.b32.xlu0 %v1843, 64
  %v1957 = vpop.permute.xlu0 %1956
  %1958 = vrot.lane.b32.xlu0 %v1844, 64
  %v1959 = vpop.permute.xlu0 %1958
  %1960 = vrot.lane.b32.xlu0 %v1845, 64
  %v1961 = vpop.permute.xlu0 %1960
  %1962 = vrot.lane.b32.xlu0 %v1846, 64
  %v1963 = vpop.permute.xlu0 %1962
  %1964 = vrot.lane.b32.xlu0 %v1847, 64
  %v1965 = vpop.permute.xlu0 %1964
  %1966 = vrot.lane.b32.xlu0 %v1848, 64
  %v1967 = vpop.permute.xlu0 %1966
  %1968 = vrot.lane.b32.xlu0 %v1849, 64
  %v1969 = vpop.permute.xlu0 %1968
  %1970 = vrot.lane.b32.xlu0 %v1850, 64
  %v1971 = vpop.permute.xlu0 %1970
  %1972 = vrot.lane.b32.xlu0 %v1851, 64
  %v1973 = vpop.permute.xlu0 %1972
  %1974 = vrot.lane.b32.xlu0 %v1852, 64
  %v1975 = vpop.permute.xlu0 %1974
  %1976 = vrot.lane.b32.xlu0 %v1853, 64
  %v1977 = vpop.permute.xlu0 %1976
  %1978 = vrot.lane.b32.xlu0 %v1854, 64
  %v1979 = vpop.permute.xlu0 %1978
  %1980 = vrot.lane.b32.xlu0 %v1855, 64
  %v1981 = vpop.permute.xlu0 %1980
  %1982 = vrot.lane.b32.xlu0 %v1856, 64
  %v1983 = vpop.permute.xlu0 %1982
  %1984 = vrot.lane.b32.xlu0 %v1857, 64
  %v1985 = vpop.permute.xlu0 %1984
  %v2002 = vmax.f32 %v1938, %v1955
  %v2003 = vmax.f32 %v1939, %v1957
  %v2004 = vmax.f32 %v1940, %v1959
  %v2005 = vmax.f32 %v1941, %v1961
  %v2006 = vmax.f32 %v1942, %v1963
  %v2007 = vmax.f32 %v1943, %v1965
  %v2008 = vmax.f32 %v1944, %v1967
  %v2009 = vmax.f32 %v1945, %v1969
  %v2010 = vmax.f32 %v1946, %v1971
  %v2011 = vmax.f32 %v1947, %v1973
  %v2012 = vmax.f32 %v1948, %v1975
  %v2013 = vmax.f32 %v1949, %v1977
  %v2014 = vmax.f32 %v1950, %v1979
  %v2015 = vmax.f32 %v1951, %v1981
  %v2016 = vmax.f32 %v1952, %v1983
  %v2017 = vmax.f32 %v1953, %v1985
  %2018 = vrot.lane.b32.xlu0 %v1842, 32
  %v2019 = vpop.permute.xlu0 %2018
  %2020 = vrot.lane.b32.xlu0 %v1843, 32
  %v2021 = vpop.permute.xlu0 %2020
  %2022 = vrot.lane.b32.xlu0 %v1844, 32
  %v2023 = vpop.permute.xlu0 %2022
  %2024 = vrot.lane.b32.xlu0 %v1845, 32
  %v2025 = vpop.permute.xlu0 %2024
  %2026 = vrot.lane.b32.xlu0 %v1846, 32
  %v2027 = vpop.permute.xlu0 %2026
  %2028 = vrot.lane.b32.xlu0 %v1847, 32
  %v2029 = vpop.permute.xlu0 %2028
  %2030 = vrot.lane.b32.xlu0 %v1848, 32
  %v2031 = vpop.permute.xlu0 %2030
  %2032 = vrot.lane.b32.xlu0 %v1849, 32
  %v2033 = vpop.permute.xlu0 %2032
  %2034 = vrot.lane.b32.xlu0 %v1850, 32
  %v2035 = vpop.permute.xlu0 %2034
  %2036 = vrot.lane.b32.xlu0 %v1851, 32
  %v2037 = vpop.permute.xlu0 %2036
  %2038 = vrot.lane.b32.xlu0 %v1852, 32
  %v2039 = vpop.permute.xlu0 %2038
  %2040 = vrot.lane.b32.xlu0 %v1853, 32
  %v2041 = vpop.permute.xlu0 %2040
  %2042 = vrot.lane.b32.xlu0 %v1854, 32
  %v2043 = vpop.permute.xlu0 %2042
  %2044 = vrot.lane.b32.xlu0 %v1855, 32
  %v2045 = vpop.permute.xlu0 %2044
  %2046 = vrot.lane.b32.xlu0 %v1856, 32
  %v2047 = vpop.permute.xlu0 %2046
  %2048 = vrot.lane.b32.xlu0 %v1857, 32
  %v2049 = vpop.permute.xlu0 %2048
  %v2066 = vmax.f32 %v2002, %v2019
  %v2067 = vmax.f32 %v2003, %v2021
  %v2068 = vmax.f32 %v2004, %v2023
  %v2069 = vmax.f32 %v2005, %v2025
  %v2070 = vmax.f32 %v2006, %v2027
  %v2071 = vmax.f32 %v2007, %v2029
  %v2072 = vmax.f32 %v2008, %v2031
  %v2073 = vmax.f32 %v2009, %v2033
  %v2074 = vmax.f32 %v2010, %v2035
  %v2075 = vmax.f32 %v2011, %v2037
  %v2076 = vmax.f32 %v2012, %v2039
  %v2077 = vmax.f32 %v2013, %v2041
  %v2078 = vmax.f32 %v2014, %v2043
  %v2079 = vmax.f32 %v2015, %v2045
  %v2080 = vmax.f32 %v2016, %v2047
  %v2081 = vmax.f32 %v2017, %v2049
  %v2082 = vld [vmem:[%s6] sm:$0xff]
  %v2083 = vld [vmem:[%s6 + $0x8] sm:$0xff]
  %v2084 = vld [vmem:[%s6 + $0x10] sm:$0xff]
  %v2085 = vld [vmem:[%s6 + $0x18] sm:$0xff]
  %v2086 = vld [vmem:[%s7] sm:$0x1]
  %v2088 = vlaneseq
  %v2089 = vshrl.u32 %v2088, 7
  %v2090 = vsub.s32 0, %v2089
  %v2091 = vrot.slane %v2086, %v2090
  %vm2093 = vcmask 261120
  %v2095 = vsel %vm2093, %v2066, 0
  %v2098 = vsel %vm2093, %v2067, 0
  %v2101 = vsel %vm2093, %v2068, 0
  %v2104 = vsel %vm2093, %v2069, 0
  %v2107 = vsel %vm2093, %v2070, 0
  %v2110 = vsel %vm2093, %v2071, 0
  %v2113 = vsel %vm2093, %v2072, 0
  %v2116 = vsel %vm2093, %v2073, 0
  %v2119 = vsel %vm2093, %v2074, 0
  %v2122 = vsel %vm2093, %v2075, 0
  %v2125 = vsel %vm2093, %v2076, 0
  %v2128 = vsel %vm2093, %v2077, 0
  %v2131 = vsel %vm2093, %v2078, 0
  %v2134 = vsel %vm2093, %v2079, 0
  %v2137 = vsel %vm2093, %v2080, 0
  %v2140 = vsel %vm2093, %v2081, 0
  %2142 = vmatprep.subr.mxu0 0.0
  %2143 = vmatpush1.msra.mxu0 %v2082
  %2144 = vmatprep.subr.mxu0 0.0
  %2145 = vmatpush1.msra.mxu0 %v2083
  %2146 = vmatprep.subr.mxu0 0.0
  %2147 = vmatpush1.msra.mxu0 %v2084
  %2148 = vmatprep.subr.mxu0 0.0
  %2149 = vmatpush1.msra.mxu0 %v2085
  %2150 = vmatprep.subr.mxu0 0.0
  %2151 = vmatpush1.msra.mxu0 0.0
  %2152 = vmatprep.subr.mxu0 0.0
  %2153 = vmatpush1.msra.mxu0 0.0
  %2154 = vmatprep.subr.mxu0 0.0
  %2155 = vmatpush1.msra.mxu0 0.0
  %2156 = vmatprep.subr.mxu0 0.0
  %2157 = vmatpush1.msra.mxu0 0.0
  %2158 = vmatprep.subr.mxu0 0.0
  %2159 = vmatpush1.msra.mxu0 0.0
  %2160 = vmatprep.subr.mxu0 0.0
  %2161 = vmatpush1.msra.mxu0 0.0
  %2162 = vmatprep.subr.mxu0 0.0
  %2163 = vmatpush1.msra.mxu0 0.0
  %2164 = vmatprep.subr.mxu0 0.0
  %2165 = vmatpush1.msra.mxu0 0.0
  %2166 = vmatprep.subr.mxu0 0.0
  %2167 = vmatpush1.msra.mxu0 0.0
  %2168 = vmatprep.subr.mxu0 0.0
  %2169 = vmatpush1.msra.mxu0 0.0
  %2170 = vmatprep.subr.mxu0 0.0
  %2171 = vmatpush1.msra.mxu0 0.0
  %2172 = vmatprep.subr.mxu0 0.0
  %2173 = vmatpush1.msra.mxu0 0.0
  %2174 = vmatprep.subr.mxu0 0.0
  %2175 = vmatpush1.msra.mxu0 0.0
  %2176 = vmatprep.subr.mxu0 0.0
  %2177 = vmatpush1.msra.mxu0 0.0
  %2178 = vmatprep.subr.mxu0 0.0
  %2179 = vmatpush1.msra.mxu0 0.0
  %2180 = vmatprep.subr.mxu0 0.0
  %2181 = vmatpush1.msra.mxu0 0.0
  %2182 = vmatprep.subr.mxu0 0.0
  %2183 = vmatpush1.msra.mxu0 0.0
  %2184 = vmatprep.subr.mxu0 0.0
  %2185 = vmatpush1.msra.mxu0 0.0
  %2186 = vmatprep.subr.mxu0 0.0
  %2187 = vmatpush1.msra.mxu0 0.0
  %2188 = vmatprep.subr.mxu0 0.0
  %2189 = vmatpush1.msra.mxu0 0.0
  %2190 = vmatprep.subr.mxu0 0.0
  %2191 = vmatpush1.msra.mxu0 0.0
  %2192 = vmatprep.subr.mxu0 0.0
  %2193 = vmatpush1.msra.mxu0 0.0
  %2194 = vmatprep.subr.mxu0 0.0
  %2195 = vmatpush1.msra.mxu0 0.0
  %2196 = vmatprep.subr.mxu0 0.0
  %2197 = vmatpush1.msra.mxu0 0.0
  %2198 = vmatprep.subr.mxu0 0.0
  %2199 = vmatpush1.msra.mxu0 0.0
  %2200 = vmatprep.subr.mxu0 0.0
  %2201 = vmatpush1.msra.mxu0 0.0
  %2202 = vmatprep.subr.mxu0 0.0
  %2203 = vmatpush1.msra.mxu0 0.0
  %2204 = vmatprep.subr.mxu0 0.0
  %2205 = vmatpush1.msra.mxu0 0.0
  %2206 = vmatprep.mubr.f32.mxu0 0.0
  %2207 = vmatmul.mubr.f32.gmra.mrb[0].mxu0 %v2095
  %v2208 = vpop.f32.mrb[0].mxu0
  %v2209 = vadd.f32 %v2091, %v2208
  %v2210 = vpop.f32.mrb[0].mxu0
  %2211 = vmatprep.mubr.f32.mxu0 0.0
  %2212 = vmatmul.mubr.f32.gmra.mrb[0].mxu0 %v2098
  %v2213 = vpop.f32.mrb[0].mxu0
  %v2214 = vadd.f32 %v2091, %v2213
  %v2215 = vpop.f32.mrb[0].mxu0
  %2216 = vmatprep.mubr.f32.mxu0 0.0
  %2217 = vmatmul.mubr.f32.gmra.mrb[0].mxu0 %v2101
  %v2218 = vpop.f32.mrb[0].mxu0
  %v2219 = vadd.f32 %v2091, %v2218
  %v2220 = vpop.f32.mrb[0].mxu0
  %2221 = vmatprep.mubr.f32.mxu0 0.0
  %2222 = vmatmul.mubr.f32.gmra.mrb[0].mxu0 %v2104
  %v2223 = vpop.f32.mrb[0].mxu0
  %v2224 = vadd.f32 %v2091, %v2223
  %v2225 = vpop.f32.mrb[0].mxu0
  %2226 = vmatprep.mubr.f32.mxu0 0.0
  %2227 = vmatmul.mubr.f32.gmra.mrb[0].mxu0 %v2107
  %v2228 = vpop.f32.mrb[0].mxu0
  %v2229 = vadd.f32 %v2091, %v2228
  %v2230 = vpop.f32.mrb[0].mxu0
  %2231 = vmatprep.mubr.f32.mxu0 0.0
  %2232 = vmatmul.mubr.f32.gmra.mrb[0].mxu0 %v2110
  %v2233 = vpop.f32.mrb[0].mxu0
  %v2234 = vadd.f32 %v2091, %v2233
  %v2235 = vpop.f32.mrb[0].mxu0
  %2236 = vmatprep.mubr.f32.mxu0 0.0
  %2237 = vmatmul.mubr.f32.gmra.mrb[0].mxu0 %v2113
  %v2238 = vpop.f32.mrb[0].mxu0
  %v2239 = vadd.f32 %v2091, %v2238
  %v2240 = vpop.f32.mrb[0].mxu0
  %2241 = vmatprep.mubr.f32.mxu0 0.0
  %2242 = vmatmul.mubr.f32.gmra.mrb[0].mxu0 %v2116
  %v2243 = vpop.f32.mrb[0].mxu0
  %v2244 = vadd.f32 %v2091, %v2243
  %v2245 = vpop.f32.mrb[0].mxu0
  %2246 = vmatprep.mubr.f32.mxu0 0.0
  %2247 = vmatmul.mubr.f32.gmra.mrb[0].mxu0 %v2119
  %v2248 = vpop.f32.mrb[0].mxu0
  %v2249 = vadd.f32 %v2091, %v2248
  %v2250 = vpop.f32.mrb[0].mxu0
  %2251 = vmatprep.mubr.f32.mxu0 0.0
  %2252 = vmatmul.mubr.f32.gmra.mrb[0].mxu0 %v2122
  %v2253 = vpop.f32.mrb[0].mxu0
  %v2254 = vadd.f32 %v2091, %v2253
  %v2255 = vpop.f32.mrb[0].mxu0
  %2256 = vmatprep.mubr.f32.mxu0 0.0
  %2257 = vmatmul.mubr.f32.gmra.mrb[0].mxu0 %v2125
  %v2258 = vpop.f32.mrb[0].mxu0
  %v2259 = vadd.f32 %v2091, %v2258
  %v2260 = vpop.f32.mrb[0].mxu0
  %2261 = vmatprep.mubr.f32.mxu0 0.0
  %2262 = vmatmul.mubr.f32.gmra.mrb[0].mxu0 %v2128
  %v2263 = vpop.f32.mrb[0].mxu0
  %v2264 = vadd.f32 %v2091, %v2263
  %v2265 = vpop.f32.mrb[0].mxu0
  %2266 = vmatprep.mubr.f32.mxu0 0.0
  %2267 = vmatmul.mubr.f32.gmra.mrb[0].mxu0 %v2131
  %v2268 = vpop.f32.mrb[0].mxu0
  %v2269 = vadd.f32 %v2091, %v2268
  %v2270 = vpop.f32.mrb[0].mxu0
  %2271 = vmatprep.mubr.f32.mxu0 0.0
  %2272 = vmatmul.mubr.f32.gmra.mrb[0].mxu0 %v2134
  %v2273 = vpop.f32.mrb[0].mxu0
  %v2274 = vadd.f32 %v2091, %v2273
  %v2275 = vpop.f32.mrb[0].mxu0
  %2276 = vmatprep.mubr.f32.mxu0 0.0
  %2277 = vmatmul.mubr.f32.gmra.mrb[0].mxu0 %v2137
  %v2278 = vpop.f32.mrb[0].mxu0
  %v2279 = vadd.f32 %v2091, %v2278
  %v2280 = vpop.f32.mrb[0].mxu0
  %2281 = vmatprep.mubr.f32.mxu0 0.0
  %2282 = vmatmul.mubr.f32.gmra.mrb[0].mxu0 %v2140
  %v2283 = vpop.f32.mrb[0].mxu0
  %v2284 = vadd.f32 %v2091, %v2283
  %v2285 = vpop.f32.mrb[0].mxu0
  %2286 = vdwg.mxu0
  %v2287 = vmax.f32 %v2209, 0.0
  %v2288 = vmax.f32 %v2214, 0.0
  %v2289 = vmax.f32 %v2219, 0.0
  %v2290 = vmax.f32 %v2224, 0.0
  %v2291 = vmax.f32 %v2229, 0.0
  %v2292 = vmax.f32 %v2234, 0.0
  %v2293 = vmax.f32 %v2239, 0.0
  %v2294 = vmax.f32 %v2244, 0.0
  %v2295 = vmax.f32 %v2249, 0.0
  %v2296 = vmax.f32 %v2254, 0.0
  %v2297 = vmax.f32 %v2259, 0.0
  %v2298 = vmax.f32 %v2264, 0.0
  %v2299 = vmax.f32 %v2269, 0.0
  %v2300 = vmax.f32 %v2274, 0.0
  %v2301 = vmax.f32 %v2279, 0.0
  %v2302 = vmax.f32 %v2284, 0.0
  %vm2303 = vcmask 523264
  %2304 = vst.msk [vmem:[%s10] sm:$0xff] %vm2303, %v2287
  %2305 = vst.msk [vmem:[%s10 + $0x8] sm:$0xff] %vm2303, %v2288
  %2306 = vst.msk [vmem:[%s10 + $0x10] sm:$0xff] %vm2303, %v2289
  %2307 = vst.msk [vmem:[%s10 + $0x18] sm:$0xff] %vm2303, %v2290
  %2308 = vst.msk [vmem:[%s10 + $0x20] sm:$0xff] %vm2303, %v2291
  %2309 = vst.msk [vmem:[%s10 + $0x28] sm:$0xff] %vm2303, %v2292
  %2310 = vst.msk [vmem:[%s10 + $0x30] sm:$0xff] %vm2303, %v2293
  %2311 = vst.msk [vmem:[%s10 + $0x38] sm:$0xff] %vm2303, %v2294
  %2312 = vst.msk [vmem:[%s10 + $0x40] sm:$0xff] %vm2303, %v2295
  %2313 = vst.msk [vmem:[%s10 + $0x48] sm:$0xff] %vm2303, %v2296
  %2314 = vst.msk [vmem:[%s10 + $0x50] sm:$0xff] %vm2303, %v2297
  %2315 = vst.msk [vmem:[%s10 + $0x58] sm:$0xff] %vm2303, %v2298
  %2316 = vst.msk [vmem:[%s10 + $0x60] sm:$0xff] %vm2303, %v2299
  %2317 = vst.msk [vmem:[%s10 + $0x68] sm:$0xff] %vm2303, %v2300
  %2318 = vst.msk [vmem:[%s10 + $0x70] sm:$0xff] %vm2303, %v2301
  %2319 = vst.msk [vmem:[%s10 + $0x78] sm:$0xff] %vm2303, %v2302
  // Predicated region
  $region34: #{run.4} parent=0 // pred_check
    _
  $region35: #{run.4} parent=0 // pred_check_branch
    %2321 = sbr.rel (0) target = $region37
  $region36: #{run.4} parent=0 // pred_region
    _
  $region37: #{run.4} parent=0 // pred_fallthru
    _
  // Predicated region
  $region38: #{run.4} parent=0 // pred_check
    _
  $region39: #{run.4} parent=0 // pred_check_branch
    %2323 = sbr.rel (0) target = $region41
  $region40: #{run.4} parent=0 // pred_region
    _
  $region41: #{run.4} parent=0 // pred_fallthru
    _
  // Predicated region
  $region42: #{run.4} parent=0 // pred_check
    _
  $region43: #{run.4} parent=0 // pred_check_branch
    %2325 = sbr.rel (0) target = $region45
  $region44: #{run.4} parent=0 // pred_region
    _
  $region45: #{run.4} parent=0 // pred_fallthru
    _
  // Predicated region
  $region46: #{run.4} parent=0 // pred_check
    _
  $region47: #{run.4} parent=0 // pred_check_branch
    %2327 = sbr.rel (0) target = $region49
  $region48: #{run.4} parent=0 // pred_region
    _
  $region49: #{run.4} parent=0 // pred_fallthru
    _
  // Predicated region
  $region50: #{run.4} parent=0 // pred_check
    _
  $region51: #{run.4} parent=0 // pred_check_branch
    %2329 = sbr.rel (0) target = $region53
  $region52: #{run.4} parent=0 // pred_region
    _
  $region53: #{run.4} parent=0 // pred_fallthru
    _
  // Predicated region
  $region54: #{run.4} parent=0 // pred_check
    _
  $region55: #{run.4} parent=0 // pred_check_branch
    %2331 = sbr.rel (0) target = $region57
  $region56: #{run.4} parent=0 // pred_region
    _
  $region57: #{run.4} parent=0 // pred_fallthru
    _

// kernel: run.5
$region0: #{run.5}
  #allocation0 [shape = 'u32[]', space=smem, size = 0x4, offset = 0x4, fixed_abs, tag = 'smem constant byte address 0x4 - core index']
  #allocation1 [shape = 'u32[144,128]{1,0:T(1,128)}', space=vmem, size = 0x12000, scoped, tag = 'internal scratch']
  #allocation2 [shape = 'f32[128,512]{1,0:T(8,128)}', space=vmem, size = 0x40000, scoped, tag = 'scratch operand']
  %s0 = inlined_call_operand.vmem [shape: f32[128,48], index: 0, kind: input, shape index: {}]
  %s1 = inlined_call_operand.vmem [shape: bf16[128,512], index: 1, kind: input, shape index: {}]
  %s2 = inlined_call_operand.vmem [shape: f32[128,48], index: 2, kind: input, shape index: {}]
  %s3 = inlined_call_operand.vmem [shape: f32[128,1], index: 3, kind: input, shape index: {}]
  %s4 = inlined_call_operand.vmem [shape: bf16[48,512], index: 4, kind: input, shape index: {}]
  %s5 = inlined_call_operand.vmem [shape: f32[1,512], index: 5, kind: input, shape index: {}]
  %s6 = inlined_call_operand.vmem [shape: f32[32,32], index: 6, kind: input, shape index: {}]
  %s7 = inlined_call_operand.vmem [shape: f32[1,32], index: 7, kind: input, shape index: {}]
  %s8 = inlined_call_operand.vmem [shape: f32[128,48], index: 8, kind: output, shape index: {0}]
  %s9 = inlined_call_operand.vmem [shape: bf16[128,512], index: 9, kind: output, shape index: {1}]
  %s10 = inlined_call_operand.vmem [shape: f32[128,32], index: 10, kind: output, shape index: {2}]
  %11 = xla_tuple %s8, %s9, %s10
  %s12 = sld [smem:[#allocation0]]
  $region58: #{run.5} parent=0
    _
  %s14 = ssub.s32 1, %s12
  %s15 = scalar_select 0, %s14, %s12
  // Predicated region
  $region2: #{run.5} parent=0 // pred_check
    _
  $region3: #{run.5} parent=0 // pred_check_branch
    %17 = sbr.rel (0) target = $region5
  $region4: #{run.5} parent=0 // pred_region
    _
  $region5: #{run.5} parent=0 // pred_fallthru
    _
  // Predicated region
  $region6: #{run.5} parent=0 // pred_check
    _
  $region7: #{run.5} parent=0 // pred_check_branch
    %19 = sbr.rel (0) target = $region9
  $region8: #{run.5} parent=0 // pred_region
    _
  $region9: #{run.5} parent=0 // pred_fallthru
    _
  // Predicated region
  $region10: #{run.5} parent=0 // pred_check
    _
  $region11: #{run.5} parent=0 // pred_check_branch
    %21 = sbr.rel (0) target = $region13
  $region12: #{run.5} parent=0 // pred_region
    _
  $region13: #{run.5} parent=0 // pred_fallthru
    _
  // Predicated region
  $region14: #{run.5} parent=0 // pred_check
    _
  $region15: #{run.5} parent=0 // pred_check_branch
    %23 = sbr.rel (0) target = $region17
  $region16: #{run.5} parent=0 // pred_region
    _
  $region17: #{run.5} parent=0 // pred_fallthru
    _
  // Predicated region
  $region18: #{run.5} parent=0 // pred_check
    _
  $region19: #{run.5} parent=0 // pred_check_branch
    %25 = sbr.rel (0) target = $region21
  $region20: #{run.5} parent=0 // pred_region
    _
  $region21: #{run.5} parent=0 // pred_fallthru
    _
  // Predicated region
  $region22: #{run.5} parent=0 // pred_check
    _
  $region23: #{run.5} parent=0 // pred_check_branch
    %27 = sbr.rel (0) target = $region25
  $region24: #{run.5} parent=0 // pred_region
    _
  $region25: #{run.5} parent=0 // pred_fallthru
    _
  // Predicated region
  $region26: #{run.5} parent=0 // pred_check
    _
  $region27: #{run.5} parent=0 // pred_check_branch
    %29 = sbr.rel (0) target = $region29
  $region28: #{run.5} parent=0 // pred_region
    _
  $region29: #{run.5} parent=0 // pred_fallthru
    _
  // Predicated region
  $region30: #{run.5} parent=0 // pred_check
    _
  $region31: #{run.5} parent=0 // pred_check_branch
    %31 = sbr.rel (0) target = $region33
  $region32: #{run.5} parent=0 // pred_region
    _
  $region33: #{run.5} parent=0 // pred_fallthru
    _
  %v33 = vld [vmem:[%s3] sm:$0xff]
  %v34 = vld [vmem:[%s3 + $0x8] sm:$0xff]
  %v35 = vld [vmem:[%s3 + $0x10] sm:$0xff]
  %v36 = vld [vmem:[%s3 + $0x18] sm:$0xff]
  %v37 = vld [vmem:[%s3 + $0x20] sm:$0xff]
  %v38 = vld [vmem:[%s3 + $0x28] sm:$0xff]
  %v39 = vld [vmem:[%s3 + $0x30] sm:$0xff]
  %v40 = vld [vmem:[%s3 + $0x38] sm:$0xff]
  %v41 = vld [vmem:[%s3 + $0x40] sm:$0xff]
  %v42 = vld [vmem:[%s3 + $0x48] sm:$0xff]
  %v43 = vld [vmem:[%s3 + $0x50] sm:$0xff]
  %v44 = vld [vmem:[%s3 + $0x58] sm:$0xff]
  %v45 = vld [vmem:[%s3 + $0x60] sm:$0xff]
  %v46 = vld [vmem:[%s3 + $0x68] sm:$0xff]
  %v47 = vld [vmem:[%s3 + $0x70] sm:$0xff]
  %v48 = vld [vmem:[%s3 + $0x78] sm:$0xff]
  %v49 = vld [vmem:[%s0] sm:$0xff]
  %v50 = vld [vmem:[%s0 + $0x8] sm:$0xff]
  %v51 = vld [vmem:[%s0 + $0x10] sm:$0xff]
  %v52 = vld [vmem:[%s0 + $0x18] sm:$0xff]
  %v53 = vld [vmem:[%s0 + $0x20] sm:$0xff]
  %v54 = vld [vmem:[%s0 + $0x28] sm:$0xff]
  %v55 = vld [vmem:[%s0 + $0x30] sm:$0xff]
  %v56 = vld [vmem:[%s0 + $0x38] sm:$0xff]
  %v57 = vld [vmem:[%s0 + $0x40] sm:$0xff]
  %v58 = vld [vmem:[%s0 + $0x48] sm:$0xff]
  %v59 = vld [vmem:[%s0 + $0x50] sm:$0xff]
  %v60 = vld [vmem:[%s0 + $0x58] sm:$0xff]
  %v61 = vld [vmem:[%s0 + $0x60] sm:$0xff]
  %v62 = vld [vmem:[%s0 + $0x68] sm:$0xff]
  %v63 = vld [vmem:[%s0 + $0x70] sm:$0xff]
  %v64 = vld [vmem:[%s0 + $0x78] sm:$0xff]
  %v65 = vld [vmem:[%s2] sm:$0xff]
  %v66 = vld [vmem:[%s2 + $0x8] sm:$0xff]
  %v67 = vld [vmem:[%s2 + $0x10] sm:$0xff]
  %v68 = vld [vmem:[%s2 + $0x18] sm:$0xff]
  %v69 = vld [vmem:[%s2 + $0x20] sm:$0xff]
  %v70 = vld [vmem:[%s2 + $0x28] sm:$0xff]
  %v71 = vld [vmem:[%s2 + $0x30] sm:$0xff]
  %v72 = vld [vmem:[%s2 + $0x38] sm:$0xff]
  %v73 = vld [vmem:[%s2 + $0x40] sm:$0xff]
  %v74 = vld [vmem:[%s2 + $0x48] sm:$0xff]
  %v75 = vld [vmem:[%s2 + $0x50] sm:$0xff]
  %v76 = vld [vmem:[%s2 + $0x58] sm:$0xff]
  %v77 = vld [vmem:[%s2 + $0x60] sm:$0xff]
  %v78 = vld [vmem:[%s2 + $0x68] sm:$0xff]
  %v79 = vld [vmem:[%s2 + $0x70] sm:$0xff]
  %v80 = vld [vmem:[%s2 + $0x78] sm:$0xff]
  %v81 = vsub.f32 %v49, %v65
  %v82 = vsub.f32 %v50, %v66
  %v83 = vsub.f32 %v51, %v67
  %v84 = vsub.f32 %v52, %v68
  %v85 = vsub.f32 %v53, %v69
  %v86 = vsub.f32 %v54, %v70
  %v87 = vsub.f32 %v55, %v71
  %v88 = vsub.f32 %v56, %v72
  %v89 = vsub.f32 %v57, %v73
  %v90 = vsub.f32 %v58, %v74
  %v91 = vsub.f32 %v59, %v75
  %v92 = vsub.f32 %v60, %v76
  %v93 = vsub.f32 %v61, %v77
  %v94 = vsub.f32 %v62, %v78
  %v95 = vsub.f32 %v63, %v79
  %v96 = vsub.f32 %v64, %v80
  %98 = vset.pattern.permute.xlu0 0
  %99 = vperm.xlu0 %98, %v33
  %v100 = vpop.permute.xlu0 %99
  %103 = vset.pattern.permute.xlu0 0
  %104 = vperm.xlu0 %103, %v34
  %v105 = vpop.permute.xlu0 %104
  %108 = vset.pattern.permute.xlu0 0
  %109 = vperm.xlu0 %108, %v35
  %v110 = vpop.permute.xlu0 %109
  %113 = vset.pattern.permute.xlu0 0
  %114 = vperm.xlu0 %113, %v36
  %v115 = vpop.permute.xlu0 %114
  %118 = vset.pattern.permute.xlu0 0
  %119 = vperm.xlu0 %118, %v37
  %v120 = vpop.permute.xlu0 %119
  %123 = vset.pattern.permute.xlu0 0
  %124 = vperm.xlu0 %123, %v38
  %v125 = vpop.permute.xlu0 %124
  %128 = vset.pattern.permute.xlu0 0
  %129 = vperm.xlu0 %128, %v39
  %v130 = vpop.permute.xlu0 %129
  %133 = vset.pattern.permute.xlu0 0
  %134 = vperm.xlu0 %133, %v40
  %v135 = vpop.permute.xlu0 %134
  %138 = vset.pattern.permute.xlu0 0
  %139 = vperm.xlu0 %138, %v41
  %v140 = vpop.permute.xlu0 %139
  %143 = vset.pattern.permute.xlu0 0
  %144 = vperm.xlu0 %143, %v42
  %v145 = vpop.permute.xlu0 %144
  %148 = vset.pattern.permute.xlu0 0
  %149 = vperm.xlu0 %148, %v43
  %v150 = vpop.permute.xlu0 %149
  %153 = vset.pattern.permute.xlu0 0
  %154 = vperm.xlu0 %153, %v44
  %v155 = vpop.permute.xlu0 %154
  %158 = vset.pattern.permute.xlu0 0
  %159 = vperm.xlu0 %158, %v45
  %v160 = vpop.permute.xlu0 %159
  %163 = vset.pattern.permute.xlu0 0
  %164 = vperm.xlu0 %163, %v46
  %v165 = vpop.permute.xlu0 %164
  %168 = vset.pattern.permute.xlu0 0
  %169 = vperm.xlu0 %168, %v47
  %v170 = vpop.permute.xlu0 %169
  %173 = vset.pattern.permute.xlu0 0
  %174 = vperm.xlu0 %173, %v48
  %v175 = vpop.permute.xlu0 %174
  %v177 = vmul.f32 %v81, %v100
  %v178 = vmul.f32 %v82, %v105
  %v179 = vmul.f32 %v83, %v110
  %v180 = vmul.f32 %v84, %v115
  %v181 = vmul.f32 %v85, %v120
  %v182 = vmul.f32 %v86, %v125
  %v183 = vmul.f32 %v87, %v130
  %v184 = vmul.f32 %v88, %v135
  %v185 = vmul.f32 %v89, %v140
  %v186 = vmul.f32 %v90, %v145
  %v187 = vmul.f32 %v91, %v150
  %v188 = vmul.f32 %v92, %v155
  %v189 = vmul.f32 %v93, %v160
  %v190 = vmul.f32 %v94, %v165
  %v191 = vmul.f32 %v95, %v170
  %v192 = vmul.f32 %v96, %v175
  %vm193 = vcmask 392192
  %194 = vst.msk [vmem:[%s8] sm:$0xff] %vm193, %v177
  %195 = vst.msk [vmem:[%s8 + $0x8] sm:$0xff] %vm193, %v178
  %196 = vst.msk [vmem:[%s8 + $0x10] sm:$0xff] %vm193, %v179
  %197 = vst.msk [vmem:[%s8 + $0x18] sm:$0xff] %vm193, %v180
  %198 = vst.msk [vmem:[%s8 + $0x20] sm:$0xff] %vm193, %v181
  %199 = vst.msk [vmem:[%s8 + $0x28] sm:$0xff] %vm193, %v182
  %200 = vst.msk [vmem:[%s8 + $0x30] sm:$0xff] %vm193, %v183
  %201 = vst.msk [vmem:[%s8 + $0x38] sm:$0xff] %vm193, %v184
  %202 = vst.msk [vmem:[%s8 + $0x40] sm:$0xff] %vm193, %v185
  %203 = vst.msk [vmem:[%s8 + $0x48] sm:$0xff] %vm193, %v186
  %204 = vst.msk [vmem:[%s8 + $0x50] sm:$0xff] %vm193, %v187
  %205 = vst.msk [vmem:[%s8 + $0x58] sm:$0xff] %vm193, %v188
  %206 = vst.msk [vmem:[%s8 + $0x60] sm:$0xff] %vm193, %v189
  %207 = vst.msk [vmem:[%s8 + $0x68] sm:$0xff] %vm193, %v190
  %208 = vst.msk [vmem:[%s8 + $0x70] sm:$0xff] %vm193, %v191
  %209 = vst.msk [vmem:[%s8 + $0x78] sm:$0xff] %vm193, %v192
  %v210 = vpack.c.bf16 %v178, %v177
  %v211 = vpack.c.bf16 %v180, %v179
  %v212 = vpack.c.bf16 %v182, %v181
  %v213 = vpack.c.bf16 %v184, %v183
  %v214 = vpack.c.bf16 %v186, %v185
  %v215 = vpack.c.bf16 %v188, %v187
  %v216 = vpack.c.bf16 %v190, %v189
  %v217 = vpack.c.bf16 %v192, %v191
  %v218 = vld [vmem:[%s4] sm:$0xff]
  %v219 = vld [vmem:[%s4 + $0x8] sm:$0xff]
  %v220 = vld [vmem:[%s4 + $0x10] sm:$0xff]
  %v221 = vld [vmem:[%s4 + $0x18] sm:$0xff]
  %v222 = vld [vmem:[%s4 + $0x20] sm:$0xff]
  %v223 = vld [vmem:[%s4 + $0x28] sm:$0xff]
  %v224 = vld [vmem:[%s4 + $0x30] sm:$0xff]
  %v225 = vld [vmem:[%s4 + $0x38] sm:$0xff]
  %v226 = vld [vmem:[%s4 + $0x40] sm:$0xff]
  %v227 = vld [vmem:[%s4 + $0x48] sm:$0xff]
  %v228 = vld [vmem:[%s4 + $0x50] sm:$0xff]
  %v229 = vld [vmem:[%s4 + $0x58] sm:$0xff]
  %v230 = vld [vmem:[%s5] sm:$0xf]
  %v232 = vlaneseq
  %v233 = vshrl.u32 %v232, 7
  %v234 = vsub.s32 0, %v233
  %v235 = vrot.slane %v230, %v234
  %v236 = vlaneseq
  %v237 = vshrl.u32 %v236, 7
  %v238 = vsub.s32 1, %v237
  %v239 = vrot.slane %v230, %v238
  %v240 = vlaneseq
  %v241 = vshrl.u32 %v240, 7
  %v242 = vsub.s32 2, %v241
  %v243 = vrot.slane %v230, %v242
  %v244 = vlaneseq
  %v245 = vshrl.u32 %v244, 7
  %v246 = vsub.s32 3, %v245
  %v247 = vrot.slane %v230, %v246
  %v264 = vunpack.c.l.b16 %v218
  %v265 = vunpack.c.h.b16 %v218
  %v266 = vunpack.c.l.b16 %v219
  %v267 = vunpack.c.h.b16 %v219
  %v268 = vunpack.c.l.b16 %v220
  %v269 = vunpack.c.h.b16 %v220
  %v270 = vunpack.c.l.b16 %v221
  %v271 = vunpack.c.h.b16 %v221
  %v272 = vunpack.c.l.b16 %v222
  %v273 = vunpack.c.h.b16 %v222
  %v274 = vunpack.c.l.b16 %v223
  %v275 = vunpack.c.h.b16 %v223
  %v276 = vunpack.c.l.b16 %v224
  %v277 = vunpack.c.h.b16 %v224
  %v278 = vunpack.c.l.b16 %v225
  %v279 = vunpack.c.h.b16 %v225
  %v280 = vunpack.c.l.b16 %v226
  %v281 = vunpack.c.h.b16 %v226
  %v282 = vunpack.c.l.b16 %v227
  %v283 = vunpack.c.h.b16 %v227
  %v284 = vunpack.c.l.b16 %v228
  %v285 = vunpack.c.h.b16 %v228
  %v286 = vunpack.c.l.b16 %v229
  %v287 = vunpack.c.h.b16 %v229
  %v288 = vpack.c.b16 %v268, %v264
  %v289 = vpack.c.b16 %v269, %v265
  %v290 = vpack.c.b16 %v270, %v266
  %v291 = vpack.c.b16 %v271, %v267
  %v292 = vpack.c.b16 %v276, %v272
  %v293 = vpack.c.b16 %v277, %v273
  %v294 = vpack.c.b16 %v278, %v274
  %v295 = vpack.c.b16 %v279, %v275
  %v296 = vpack.c.b16 %v284, %v280
  %v297 = vpack.c.b16 %v285, %v281
  %v298 = vpack.c.b16 %v286, %v282
  %v299 = vpack.c.b16 %v287, %v283
  %v313 = vsel %vm193, %v210, 0
  %v316 = vsel %vm193, %v211, 0
  %v319 = vsel %vm193, %v212, 0
  %v322 = vsel %vm193, %v213, 0
  %v325 = vsel %vm193, %v214, 0
  %v328 = vsel %vm193, %v215, 0
  %v331 = vsel %vm193, %v216, 0
  %v334 = vsel %vm193, %v217, 0
  %336 = vmatprep.subr.bf16.mxu0 %v289
  %337 = vmatpush1.bf16.msra.mxu0 %v288
  %338 = vmatprep.subr.bf16.mxu0 %v293
  %339 = vmatpush1.bf16.msra.mxu0 %v292
  %340 = vmatprep.subr.bf16.mxu0 %v297
  %341 = vmatpush1.bf16.msra.mxu0 %v296
  %342 = vmatprep.subr.bf16.mxu0 0
  %343 = vmatpush1.bf16.msra.mxu0 0
  %344 = vmatprep.subr.bf16.mxu0 0
  %345 = vmatpush1.bf16.msra.mxu0 0
  %346 = vmatprep.subr.bf16.mxu0 0
  %347 = vmatpush1.bf16.msra.mxu0 0
  %348 = vmatprep.subr.bf16.mxu0 0
  %349 = vmatpush1.bf16.msra.mxu0 0
  %350 = vmatprep.subr.bf16.mxu0 0
  %351 = vmatpush1.bf16.msra.mxu0 0
  %352 = vmatprep.subr.bf16.mxu0 0
  %353 = vmatpush1.bf16.msra.mxu0 0
  %354 = vmatprep.subr.bf16.mxu0 0
  %355 = vmatpush1.bf16.msra.mxu0 0
  %356 = vmatprep.subr.bf16.mxu0 0
  %357 = vmatpush1.bf16.msra.mxu0 0
  %358 = vmatprep.subr.bf16.mxu0 0
  %359 = vmatpush1.bf16.msra.mxu0 0
  %360 = vmatprep.subr.bf16.mxu0 0
  %361 = vmatpush1.bf16.msra.mxu0 0
  %362 = vmatprep.subr.bf16.mxu0 0
  %363 = vmatpush1.bf16.msra.mxu0 0
  %364 = vmatprep.subr.bf16.mxu0 0
  %365 = vmatpush1.bf16.msra.mxu0 0
  %366 = vmatprep.subr.bf16.mxu0 0
  %367 = vmatpush1.bf16.msra.mxu0 0
  %368 = vmatprep.mubr.bf16.mxu0 0
  %369 = vmatmul.mubr.bf16.gmra.mrb[0].mxu0 %v313
  %v370 = vpop.f32.mrb[0].mxu0
  %v371 = vadd.f32 %v235, %v370
  %v372 = vpop.f32.mrb[0].mxu0
  %v373 = vadd.f32 %v239, %v372
  %v374 = vpop.f32.mrb[0].mxu0
  %v375 = vadd.f32 %v235, %v374
  %v376 = vpop.f32.mrb[0].mxu0
  %v377 = vadd.f32 %v239, %v376
  %378 = vmatprep.mubr.bf16.mxu0 0
  %379 = vmatmul.mubr.bf16.gmra.mrb[0].mxu0 %v316
  %v380 = vpop.f32.mrb[0].mxu0
  %v381 = vadd.f32 %v235, %v380
  %v382 = vpop.f32.mrb[0].mxu0
  %v383 = vadd.f32 %v239, %v382
  %v384 = vpop.f32.mrb[0].mxu0
  %v385 = vadd.f32 %v235, %v384
  %v386 = vpop.f32.mrb[0].mxu0
  %v387 = vadd.f32 %v239, %v386
  %388 = vmatprep.mubr.bf16.mxu0 0
  %389 = vmatmul.mubr.bf16.gmra.mrb[0].mxu0 %v319
  %v390 = vpop.f32.mrb[0].mxu0
  %v391 = vadd.f32 %v235, %v390
  %v392 = vpop.f32.mrb[0].mxu0
  %v393 = vadd.f32 %v239, %v392
  %v394 = vpop.f32.mrb[0].mxu0
  %v395 = vadd.f32 %v235, %v394
  %v396 = vpop.f32.mrb[0].mxu0
  %v397 = vadd.f32 %v239, %v396
  %398 = vmatprep.mubr.bf16.mxu0 0
  %399 = vmatmul.mubr.bf16.gmra.mrb[0].mxu0 %v322
  %v400 = vpop.f32.mrb[0].mxu0
  %v401 = vadd.f32 %v235, %v400
  %v402 = vpop.f32.mrb[0].mxu0
  %v403 = vadd.f32 %v239, %v402
  %v404 = vpop.f32.mrb[0].mxu0
  %v405 = vadd.f32 %v235, %v404
  %v406 = vpop.f32.mrb[0].mxu0
  %v407 = vadd.f32 %v239, %v406
  %408 = vmatprep.mubr.bf16.mxu0 0
  %409 = vmatmul.mubr.bf16.gmra.mrb[0].mxu0 %v325
  %v410 = vpop.f32.mrb[0].mxu0
  %v411 = vadd.f32 %v235, %v410
  %v412 = vpop.f32.mrb[0].mxu0
  %v413 = vadd.f32 %v239, %v412
  %v414 = vpop.f32.mrb[0].mxu0
  %v415 = vadd.f32 %v235, %v414
  %v416 = vpop.f32.mrb[0].mxu0
  %v417 = vadd.f32 %v239, %v416
  %418 = vmatprep.mubr.bf16.mxu0 0
  %419 = vmatmul.mubr.bf16.gmra.mrb[0].mxu0 %v328
  %v420 = vpop.f32.mrb[0].mxu0
  %v421 = vadd.f32 %v235, %v420
  %v422 = vpop.f32.mrb[0].mxu0
  %v423 = vadd.f32 %v239, %v422
  %v424 = vpop.f32.mrb[0].mxu0
  %v425 = vadd.f32 %v235, %v424
  %v426 = vpop.f32.mrb[0].mxu0
  %v427 = vadd.f32 %v239, %v426
  %428 = vmatprep.mubr.bf16.mxu0 0
  %429 = vmatmul.mubr.bf16.gmra.mrb[0].mxu0 %v331
  %v430 = vpop.f32.mrb[0].mxu0
  %v431 = vadd.f32 %v235, %v430
  %v432 = vpop.f32.mrb[0].mxu0
  %v433 = vadd.f32 %v239, %v432
  %v434 = vpop.f32.mrb[0].mxu0
  %v435 = vadd.f32 %v235, %v434
  %v436 = vpop.f32.mrb[0].mxu0
  %v437 = vadd.f32 %v239, %v436
  %438 = vmatprep.mubr.bf16.mxu0 0
  %439 = vmatmul.mubr.bf16.gmra.mrb[0].mxu0 %v334
  %v440 = vpop.f32.mrb[0].mxu0
  %v441 = vadd.f32 %v235, %v440
  %v442 = vpop.f32.mrb[0].mxu0
  %v443 = vadd.f32 %v239, %v442
  %v444 = vpop.f32.mrb[0].mxu0
  %v445 = vadd.f32 %v235, %v444
  %v446 = vpop.f32.mrb[0].mxu0
  %v447 = vadd.f32 %v239, %v446
  %448 = vdwg.mxu0
  %449 = vmatprep.subr.bf16.mxu0 %v291
  %450 = vmatpush1.bf16.msra.mxu0 %v290
  %451 = vmatprep.subr.bf16.mxu0 %v295
  %452 = vmatpush1.bf16.msra.mxu0 %v294
  %453 = vmatprep.subr.bf16.mxu0 %v299
  %454 = vmatpush1.bf16.msra.mxu0 %v298
  %455 = vmatprep.subr.bf16.mxu0 0
  %456 = vmatpush1.bf16.msra.mxu0 0
  %457 = vmatprep.subr.bf16.mxu0 0
  %458 = vmatpush1.bf16.msra.mxu0 0
  %459 = vmatprep.subr.bf16.mxu0 0
  %460 = vmatpush1.bf16.msra.mxu0 0
  %461 = vmatprep.subr.bf16.mxu0 0
  %462 = vmatpush1.bf16.msra.mxu0 0
  %463 = vmatprep.subr.bf16.mxu0 0
  %464 = vmatpush1.bf16.msra.mxu0 0
  %465 = vmatprep.subr.bf16.mxu0 0
  %466 = vmatpush1.bf16.msra.mxu0 0
  %467 = vmatprep.subr.bf16.mxu0 0
  %468 = vmatpush1.bf16.msra.mxu0 0
  %469 = vmatprep.subr.bf16.mxu0 0
  %470 = vmatpush1.bf16.msra.mxu0 0
  %471 = vmatprep.subr.bf16.mxu0 0
  %472 = vmatpush1.bf16.msra.mxu0 0
  %473 = vmatprep.subr.bf16.mxu0 0
  %474 = vmatpush1.bf16.msra.mxu0 0
  %475 = vmatprep.subr.bf16.mxu0 0
  %476 = vmatpush1.bf16.msra.mxu0 0
  %477 = vmatprep.subr.bf16.mxu0 0
  %478 = vmatpush1.bf16.msra.mxu0 0
  %479 = vmatprep.subr.bf16.mxu0 0
  %480 = vmatpush1.bf16.msra.mxu0 0
  %481 = vmatprep.mubr.bf16.mxu0 0
  %482 = vmatmul.mubr.bf16.gmra.mrb[0].mxu0 %v313
  %v483 = vpop.f32.mrb[0].mxu0
  %v484 = vadd.f32 %v243, %v483
  %v485 = vpop.f32.mrb[0].mxu0
  %v486 = vadd.f32 %v247, %v485
  %v487 = vpop.f32.mrb[0].mxu0
  %v488 = vadd.f32 %v243, %v487
  %v489 = vpop.f32.mrb[0].mxu0
  %v490 = vadd.f32 %v247, %v489
  %491 = vmatprep.mubr.bf16.mxu0 0
  %492 = vmatmul.mubr.bf16.gmra.mrb[0].mxu0 %v316
  %v493 = vpop.f32.mrb[0].mxu0
  %v494 = vadd.f32 %v243, %v493
  %v495 = vpop.f32.mrb[0].mxu0
  %v496 = vadd.f32 %v247, %v495
  %v497 = vpop.f32.mrb[0].mxu0
  %v498 = vadd.f32 %v243, %v497
  %v499 = vpop.f32.mrb[0].mxu0
  %v500 = vadd.f32 %v247, %v499
  %501 = vmatprep.mubr.bf16.mxu0 0
  %502 = vmatmul.mubr.bf16.gmra.mrb[0].mxu0 %v319
  %v503 = vpop.f32.mrb[0].mxu0
  %v504 = vadd.f32 %v243, %v503
  %v505 = vpop.f32.mrb[0].mxu0
  %v506 = vadd.f32 %v247, %v505
  %v507 = vpop.f32.mrb[0].mxu0
  %v508 = vadd.f32 %v243, %v507
  %v509 = vpop.f32.mrb[0].mxu0
  %v510 = vadd.f32 %v247, %v509
  %511 = vmatprep.mubr.bf16.mxu0 0
  %512 = vmatmul.mubr.bf16.gmra.mrb[0].mxu0 %v322
  %v513 = vpop.f32.mrb[0].mxu0
  %v514 = vadd.f32 %v243, %v513
  %v515 = vpop.f32.mrb[0].mxu0
  %v516 = vadd.f32 %v247, %v515
  %v517 = vpop.f32.mrb[0].mxu0
  %v518 = vadd.f32 %v243, %v517
  %v519 = vpop.f32.mrb[0].mxu0
  %v520 = vadd.f32 %v247, %v519
  %521 = vmatprep.mubr.bf16.mxu0 0
  %522 = vmatmul.mubr.bf16.gmra.mrb[0].mxu0 %v325
  %v523 = vpop.f32.mrb[0].mxu0
  %v524 = vadd.f32 %v243, %v523
  %v525 = vpop.f32.mrb[0].mxu0
  %v526 = vadd.f32 %v247, %v525
  %v527 = vpop.f32.mrb[0].mxu0
  %v528 = vadd.f32 %v243, %v527
  %v529 = vpop.f32.mrb[0].mxu0
  %v530 = vadd.f32 %v247, %v529
  %531 = vmatprep.mubr.bf16.mxu0 0
  %532 = vmatmul.mubr.bf16.gmra.mrb[0].mxu0 %v328
  %v533 = vpop.f32.mrb[0].mxu0
  %v534 = vadd.f32 %v243, %v533
  %v535 = vpop.f32.mrb[0].mxu0
  %v536 = vadd.f32 %v247, %v535
  %v537 = vpop.f32.mrb[0].mxu0
  %v538 = vadd.f32 %v243, %v537
  %v539 = vpop.f32.mrb[0].mxu0
  %v540 = vadd.f32 %v247, %v539
  %541 = vmatprep.mubr.bf16.mxu0 0
  %542 = vmatmul.mubr.bf16.gmra.mrb[0].mxu0 %v331
  %v543 = vpop.f32.mrb[0].mxu0
  %v544 = vadd.f32 %v243, %v543
  %v545 = vpop.f32.mrb[0].mxu0
  %v546 = vadd.f32 %v247, %v545
  %v547 = vpop.f32.mrb[0].mxu0
  %v548 = vadd.f32 %v243, %v547
  %v549 = vpop.f32.mrb[0].mxu0
  %v550 = vadd.f32 %v247, %v549
  %551 = vmatprep.mubr.bf16.mxu0 0
  %552 = vmatmul.mubr.bf16.gmra.mrb[0].mxu0 %v334
  %v553 = vpop.f32.mrb[0].mxu0
  %v554 = vadd.f32 %v243, %v553
  %v555 = vpop.f32.mrb[0].mxu0
  %v556 = vadd.f32 %v247, %v555
  %v557 = vpop.f32.mrb[0].mxu0
  %v558 = vadd.f32 %v243, %v557
  %v559 = vpop.f32.mrb[0].mxu0
  %v560 = vadd.f32 %v247, %v559
  %561 = vdwg.mxu0
  %v562 = vld [vmem:[%s1] sm:$0xff]
  %v563 = vld [vmem:[%s1 + $0x8] sm:$0xff]
  %v564 = vld [vmem:[%s1 + $0x10] sm:$0xff]
  %v565 = vld [vmem:[%s1 + $0x18] sm:$0xff]
  %v566 = vld [vmem:[%s1 + $0x20] sm:$0xff]
  %v567 = vld [vmem:[%s1 + $0x28] sm:$0xff]
  %v568 = vld [vmem:[%s1 + $0x30] sm:$0xff]
  %v569 = vld [vmem:[%s1 + $0x38] sm:$0xff]
  %v570 = vld [vmem:[%s1 + $0x40] sm:$0xff]
  %v571 = vld [vmem:[%s1 + $0x48] sm:$0xff]
  %v572 = vld [vmem:[%s1 + $0x50] sm:$0xff]
  %v573 = vld [vmem:[%s1 + $0x58] sm:$0xff]
  %v574 = vld [vmem:[%s1 + $0x60] sm:$0xff]
  %v575 = vld [vmem:[%s1 + $0x68] sm:$0xff]
  %v576 = vld [vmem:[%s1 + $0x70] sm:$0xff]
  %v577 = vld [vmem:[%s1 + $0x78] sm:$0xff]
  %v578 = vld [vmem:[%s1 + $0x80] sm:$0xff]
  %v579 = vld [vmem:[%s1 + $0x88] sm:$0xff]
  %v580 = vld [vmem:[%s1 + $0x90] sm:$0xff]
  %v581 = vld [vmem:[%s1 + $0x98] sm:$0xff]
  %v582 = vld [vmem:[%s1 + $0xa0] sm:$0xff]
  %v583 = vld [vmem:[%s1 + $0xa8] sm:$0xff]
  %v584 = vld [vmem:[%s1 + $0xb0] sm:$0xff]
  %v585 = vld [vmem:[%s1 + $0xb8] sm:$0xff]
  %v586 = vld [vmem:[%s1 + $0xc0] sm:$0xff]
  %v587 = vld [vmem:[%s1 + $0xc8] sm:$0xff]
  %v588 = vld [vmem:[%s1 + $0xd0] sm:$0xff]
  %v589 = vld [vmem:[%s1 + $0xd8] sm:$0xff]
  %v590 = vld [vmem:[%s1 + $0xe0] sm:$0xff]
  %v591 = vld [vmem:[%s1 + $0xe8] sm:$0xff]
  %v592 = vld [vmem:[%s1 + $0xf0] sm:$0xff]
  %v593 = vld [vmem:[%s1 + $0xf8] sm:$0xff]
  %v594 = vunpack.c.l.bf16 %v562
  %v595 = vunpack.c.h.bf16 %v562
  %v596 = vunpack.c.l.bf16 %v563
  %v597 = vunpack.c.h.bf16 %v563
  %v598 = vunpack.c.l.bf16 %v564
  %v599 = vunpack.c.h.bf16 %v564
  %v600 = vunpack.c.l.bf16 %v565
  %v601 = vunpack.c.h.bf16 %v565
  %v602 = vunpack.c.l.bf16 %v566
  %v603 = vunpack.c.h.bf16 %v566
  %v604 = vunpack.c.l.bf16 %v567
  %v605 = vunpack.c.h.bf16 %v567
  %v606 = vunpack.c.l.bf16 %v568
  %v607 = vunpack.c.h.bf16 %v568
  %v608 = vunpack.c.l.bf16 %v569
  %v609 = vunpack.c.h.bf16 %v569
  %v610 = vunpack.c.l.bf16 %v570
  %v611 = vunpack.c.h.bf16 %v570
  %v612 = vunpack.c.l.bf16 %v571
  %v613 = vunpack.c.h.bf16 %v571
  %v614 = vunpack.c.l.bf16 %v572
  %v615 = vunpack.c.h.bf16 %v572
  %v616 = vunpack.c.l.bf16 %v573
  %v617 = vunpack.c.h.bf16 %v573
  %v618 = vunpack.c.l.bf16 %v574
  %v619 = vunpack.c.h.bf16 %v574
  %v620 = vunpack.c.l.bf16 %v575
  %v621 = vunpack.c.h.bf16 %v575
  %v622 = vunpack.c.l.bf16 %v576
  %v623 = vunpack.c.h.bf16 %v576
  %v624 = vunpack.c.l.bf16 %v577
  %v625 = vunpack.c.h.bf16 %v577
  %v626 = vunpack.c.l.bf16 %v578
  %v627 = vunpack.c.h.bf16 %v578
  %v628 = vunpack.c.l.bf16 %v579
  %v629 = vunpack.c.h.bf16 %v579
  %v630 = vunpack.c.l.bf16 %v580
  %v631 = vunpack.c.h.bf16 %v580
  %v632 = vunpack.c.l.bf16 %v581
  %v633 = vunpack.c.h.bf16 %v581
  %v634 = vunpack.c.l.bf16 %v582
  %v635 = vunpack.c.h.bf16 %v582
  %v636 = vunpack.c.l.bf16 %v583
  %v637 = vunpack.c.h.bf16 %v583
  %v638 = vunpack.c.l.bf16 %v584
  %v639 = vunpack.c.h.bf16 %v584
  %v640 = vunpack.c.l.bf16 %v585
  %v641 = vunpack.c.h.bf16 %v585
  %v642 = vunpack.c.l.bf16 %v586
  %v643 = vunpack.c.h.bf16 %v586
  %v644 = vunpack.c.l.bf16 %v587
  %v645 = vunpack.c.h.bf16 %v587
  %v646 = vunpack.c.l.bf16 %v588
  %v647 = vunpack.c.h.bf16 %v588
  %v648 = vunpack.c.l.bf16 %v589
  %v649 = vunpack.c.h.bf16 %v589
  %v650 = vunpack.c.l.bf16 %v590
  %v651 = vunpack.c.h.bf16 %v590
  %v652 = vunpack.c.l.bf16 %v591
  %v653 = vunpack.c.h.bf16 %v591
  %v654 = vunpack.c.l.bf16 %v592
  %v655 = vunpack.c.h.bf16 %v592
  %v656 = vunpack.c.l.bf16 %v593
  %v657 = vunpack.c.h.bf16 %v593
  %v658 = vmul.f32 %v594, %v100
  %v659 = vmul.f32 %v595, %v100
  %v660 = vmul.f32 %v596, %v100
  %v661 = vmul.f32 %v597, %v100
  %v662 = vmul.f32 %v598, %v105
  %v663 = vmul.f32 %v599, %v105
  %v664 = vmul.f32 %v600, %v105
  %v665 = vmul.f32 %v601, %v105
  %v666 = vmul.f32 %v602, %v110
  %v667 = vmul.f32 %v603, %v110
  %v668 = vmul.f32 %v604, %v110
  %v669 = vmul.f32 %v605, %v110
  %v670 = vmul.f32 %v606, %v115
  %v671 = vmul.f32 %v607, %v115
  %v672 = vmul.f32 %v608, %v115
  %v673 = vmul.f32 %v609, %v115
  %v674 = vmul.f32 %v610, %v120
  %v675 = vmul.f32 %v611, %v120
  %v676 = vmul.f32 %v612, %v120
  %v677 = vmul.f32 %v613, %v120
  %v678 = vmul.f32 %v614, %v125
  %v679 = vmul.f32 %v615, %v125
  %v680 = vmul.f32 %v616, %v125
  %v681 = vmul.f32 %v617, %v125
  %v682 = vmul.f32 %v618, %v130
  %v683 = vmul.f32 %v619, %v130
  %v684 = vmul.f32 %v620, %v130
  %v685 = vmul.f32 %v621, %v130
  %v686 = vmul.f32 %v622, %v135
  %v687 = vmul.f32 %v623, %v135
  %v688 = vmul.f32 %v624, %v135
  %v689 = vmul.f32 %v625, %v135
  %v690 = vmul.f32 %v626, %v140
  %v691 = vmul.f32 %v627, %v140
  %v692 = vmul.f32 %v628, %v140
  %v693 = vmul.f32 %v629, %v140
  %v694 = vmul.f32 %v630, %v145
  %v695 = vmul.f32 %v631, %v145
  %v696 = vmul.f32 %v632, %v145
  %v697 = vmul.f32 %v633, %v145
  %v698 = vmul.f32 %v634, %v150
  %v699 = vmul.f32 %v635, %v150
  %v700 = vmul.f32 %v636, %v150
  %v701 = vmul.f32 %v637, %v150
  %v702 = vmul.f32 %v638, %v155
  %v703 = vmul.f32 %v639, %v155
  %v704 = vmul.f32 %v640, %v155
  %v705 = vmul.f32 %v641, %v155
  %v706 = vmul.f32 %v642, %v160
  %v707 = vmul.f32 %v643, %v160
  %v708 = vmul.f32 %v644, %v160
  %v709 = vmul.f32 %v645, %v160
  %v710 = vmul.f32 %v646, %v165
  %v711 = vmul.f32 %v647, %v165
  %v712 = vmul.f32 %v648, %v165
  %v713 = vmul.f32 %v649, %v165
  %v714 = vmul.f32 %v650, %v170
  %v715 = vmul.f32 %v651, %v170
  %v716 = vmul.f32 %v652, %v170
  %v717 = vmul.f32 %v653, %v170
  %v718 = vmul.f32 %v654, %v175
  %v719 = vmul.f32 %v655, %v175
  %v720 = vmul.f32 %v656, %v175
  %v721 = vmul.f32 %v657, %v175
  %v722 = vadd.f32 %v658, %v371
  %v723 = vadd.f32 %v659, %v373
  %v724 = vadd.f32 %v660, %v484
  %v725 = vadd.f32 %v661, %v486
  %v726 = vadd.f32 %v662, %v375
  %v727 = vadd.f32 %v663, %v377
  %v728 = vadd.f32 %v664, %v488
  %v729 = vadd.f32 %v665, %v490
  %v730 = vadd.f32 %v666, %v381
  %v731 = vadd.f32 %v667, %v383
  %v732 = vadd.f32 %v668, %v494
  %v733 = vadd.f32 %v669, %v496
  %v734 = vadd.f32 %v670, %v385
  %v735 = vadd.f32 %v671, %v387
  %v736 = vadd.f32 %v672, %v498
  %v737 = vadd.f32 %v673, %v500
  %v738 = vadd.f32 %v674, %v391
  %v739 = vadd.f32 %v675, %v393
  %v740 = vadd.f32 %v676, %v504
  %v741 = vadd.f32 %v677, %v506
  %v742 = vadd.f32 %v678, %v395
  %v743 = vadd.f32 %v679, %v397
  %v744 = vadd.f32 %v680, %v508
  %v745 = vadd.f32 %v681, %v510
  %v746 = vadd.f32 %v682, %v401
  %v747 = vadd.f32 %v683, %v403
  %v748 = vadd.f32 %v684, %v514
  %v749 = vadd.f32 %v685, %v516
  %v750 = vadd.f32 %v686, %v405
  %v751 = vadd.f32 %v687, %v407
  %v752 = vadd.f32 %v688, %v518
  %v753 = vadd.f32 %v689, %v520
  %v754 = vadd.f32 %v690, %v411
  %v755 = vadd.f32 %v691, %v413
  %v756 = vadd.f32 %v692, %v524
  %v757 = vadd.f32 %v693, %v526
  %v758 = vadd.f32 %v694, %v415
  %v759 = vadd.f32 %v695, %v417
  %v760 = vadd.f32 %v696, %v528
  %v761 = vadd.f32 %v697, %v530
  %v762 = vadd.f32 %v698, %v421
  %v763 = vadd.f32 %v699, %v423
  %v764 = vadd.f32 %v700, %v534
  %v765 = vadd.f32 %v701, %v536
  %v766 = vadd.f32 %v702, %v425
  %v767 = vadd.f32 %v703, %v427
  %v768 = vadd.f32 %v704, %v538
  %v769 = vadd.f32 %v705, %v540
  %v770 = vadd.f32 %v706, %v431
  %v771 = vadd.f32 %v707, %v433
  %v772 = vadd.f32 %v708, %v544
  %v773 = vadd.f32 %v709, %v546
  %v774 = vadd.f32 %v710, %v435
  %v775 = vadd.f32 %v711, %v437
  %v776 = vadd.f32 %v712, %v548
  %v777 = vadd.f32 %v713, %v550
  %v778 = vadd.f32 %v714, %v441
  %v779 = vadd.f32 %v715, %v443
  %v780 = vadd.f32 %v716, %v554
  %v781 = vadd.f32 %v717, %v556
  %v782 = vadd.f32 %v718, %v445
  %v783 = vadd.f32 %v719, %v447
  %v784 = vadd.f32 %v720, %v558
  %v785 = vadd.f32 %v721, %v560
  %v786 = vmax.f32 %v722, 0.0
  %v787 = vmax.f32 %v723, 0.0
  %v788 = vmax.f32 %v724, 0.0
  %v789 = vmax.f32 %v725, 0.0
  %v790 = vmax.f32 %v726, 0.0
  %v791 = vmax.f32 %v727, 0.0
  %v792 = vmax.f32 %v728, 0.0
  %v793 = vmax.f32 %v729, 0.0
  %v794 = vmax.f32 %v730, 0.0
  %v795 = vmax.f32 %v731, 0.0
  %v796 = vmax.f32 %v732, 0.0
  %v797 = vmax.f32 %v733, 0.0
  %v798 = vmax.f32 %v734, 0.0
  %v799 = vmax.f32 %v735, 0.0
  %v800 = vmax.f32 %v736, 0.0
  %v801 = vmax.f32 %v737, 0.0
  %v802 = vmax.f32 %v738, 0.0
  %v803 = vmax.f32 %v739, 0.0
  %v804 = vmax.f32 %v740, 0.0
  %v805 = vmax.f32 %v741, 0.0
  %v806 = vmax.f32 %v742, 0.0
  %v807 = vmax.f32 %v743, 0.0
  %v808 = vmax.f32 %v744, 0.0
  %v809 = vmax.f32 %v745, 0.0
  %v810 = vmax.f32 %v746, 0.0
  %v811 = vmax.f32 %v747, 0.0
  %v812 = vmax.f32 %v748, 0.0
  %v813 = vmax.f32 %v749, 0.0
  %v814 = vmax.f32 %v750, 0.0
  %v815 = vmax.f32 %v751, 0.0
  %v816 = vmax.f32 %v752, 0.0
  %v817 = vmax.f32 %v753, 0.0
  %v818 = vmax.f32 %v754, 0.0
  %v819 = vmax.f32 %v755, 0.0
  %v820 = vmax.f32 %v756, 0.0
  %v821 = vmax.f32 %v757, 0.0
  %v822 = vmax.f32 %v758, 0.0
  %v823 = vmax.f32 %v759, 0.0
  %v824 = vmax.f32 %v760, 0.0
  %v825 = vmax.f32 %v761, 0.0
  %v826 = vmax.f32 %v762, 0.0
  %v827 = vmax.f32 %v763, 0.0
  %v828 = vmax.f32 %v764, 0.0
  %v829 = vmax.f32 %v765, 0.0
  %v830 = vmax.f32 %v766, 0.0
  %v831 = vmax.f32 %v767, 0.0
  %v832 = vmax.f32 %v768, 0.0
  %v833 = vmax.f32 %v769, 0.0
  %v834 = vmax.f32 %v770, 0.0
  %v835 = vmax.f32 %v771, 0.0
  %v836 = vmax.f32 %v772, 0.0
  %v837 = vmax.f32 %v773, 0.0
  %v838 = vmax.f32 %v774, 0.0
  %v839 = vmax.f32 %v775, 0.0
  %v840 = vmax.f32 %v776, 0.0
  %v841 = vmax.f32 %v777, 0.0
  %v842 = vmax.f32 %v778, 0.0
  %v843 = vmax.f32 %v779, 0.0
  %v844 = vmax.f32 %v780, 0.0
  %v845 = vmax.f32 %v781, 0.0
  %v846 = vmax.f32 %v782, 0.0
  %v847 = vmax.f32 %v783, 0.0
  %v848 = vmax.f32 %v784, 0.0
  %v849 = vmax.f32 %v785, 0.0
  %v850 = vpack.c.bf16 %v790, %v786
  %v851 = vpack.c.bf16 %v791, %v787
  %v852 = vpack.c.bf16 %v792, %v788
  %v853 = vpack.c.bf16 %v793, %v789
  %v854 = vpack.c.bf16 %v798, %v794
  %v855 = vpack.c.bf16 %v799, %v795
  %v856 = vpack.c.bf16 %v800, %v796
  %v857 = vpack.c.bf16 %v801, %v797
  %v858 = vpack.c.bf16 %v806, %v802
  %v859 = vpack.c.bf16 %v807, %v803
  %v860 = vpack.c.bf16 %v808, %v804
  %v861 = vpack.c.bf16 %v809, %v805
  %v862 = vpack.c.bf16 %v814, %v810
  %v863 = vpack.c.bf16 %v815, %v811
  %v864 = vpack.c.bf16 %v816, %v812
  %v865 = vpack.c.bf16 %v817, %v813
  %v866 = vpack.c.bf16 %v822, %v818
  %v867 = vpack.c.bf16 %v823, %v819
  %v868 = vpack.c.bf16 %v824, %v820
  %v869 = vpack.c.bf16 %v825, %v821
  %v870 = vpack.c.bf16 %v830, %v826
  %v871 = vpack.c.bf16 %v831, %v827
  %v872 = vpack.c.bf16 %v832, %v828
  %v873 = vpack.c.bf16 %v833, %v829
  %v874 = vpack.c.bf16 %v838, %v834
  %v875 = vpack.c.bf16 %v839, %v835
  %v876 = vpack.c.bf16 %v840, %v836
  %v877 = vpack.c.bf16 %v841, %v837
  %v878 = vpack.c.bf16 %v846, %v842
  %v879 = vpack.c.bf16 %v847, %v843
  %v880 = vpack.c.bf16 %v848, %v844
  %v881 = vpack.c.bf16 %v849, %v845
  %v914 = vunpack.c.l.b16 %v850
  %v915 = vunpack.c.l.b16 %v851
  %v916 = vunpack.c.l.b16 %v852
  %v917 = vunpack.c.l.b16 %v853
  %v918 = vunpack.c.h.b16 %v850
  %v919 = vunpack.c.h.b16 %v851
  %v920 = vunpack.c.h.b16 %v852
  %v921 = vunpack.c.h.b16 %v853
  %v922 = vunpack.c.l.b16 %v854
  %v923 = vunpack.c.l.b16 %v855
  %v924 = vunpack.c.l.b16 %v856
  %v925 = vunpack.c.l.b16 %v857
  %v926 = vunpack.c.h.b16 %v854
  %v927 = vunpack.c.h.b16 %v855
  %v928 = vunpack.c.h.b16 %v856
  %v929 = vunpack.c.h.b16 %v857
  %v930 = vunpack.c.l.b16 %v858
  %v931 = vunpack.c.l.b16 %v859
  %v932 = vunpack.c.l.b16 %v860
  %v933 = vunpack.c.l.b16 %v861
  %v934 = vunpack.c.h.b16 %v858
  %v935 = vunpack.c.h.b16 %v859
  %v936 = vunpack.c.h.b16 %v860
  %v937 = vunpack.c.h.b16 %v861
  %v938 = vunpack.c.l.b16 %v862
  %v939 = vunpack.c.l.b16 %v863
  %v940 = vunpack.c.l.b16 %v864
  %v941 = vunpack.c.l.b16 %v865
  %v942 = vunpack.c.h.b16 %v862
  %v943 = vunpack.c.h.b16 %v863
  %v944 = vunpack.c.h.b16 %v864
  %v945 = vunpack.c.h.b16 %v865
  %v946 = vunpack.c.l.b16 %v866
  %v947 = vunpack.c.l.b16 %v867
  %v948 = vunpack.c.l.b16 %v868
  %v949 = vunpack.c.l.b16 %v869
  %v950 = vunpack.c.h.b16 %v866
  %v951 = vunpack.c.h.b16 %v867
  %v952 = vunpack.c.h.b16 %v868
  %v953 = vunpack.c.h.b16 %v869
  %v954 = vunpack.c.l.b16 %v870
  %v955 = vunpack.c.l.b16 %v871
  %v956 = vunpack.c.l.b16 %v872
  %v957 = vunpack.c.l.b16 %v873
  %v958 = vunpack.c.h.b16 %v870
  %v959 = vunpack.c.h.b16 %v871
  %v960 = vunpack.c.h.b16 %v872
  %v961 = vunpack.c.h.b16 %v873
  %v962 = vunpack.c.l.b16 %v874
  %v963 = vunpack.c.l.b16 %v875
  %v964 = vunpack.c.l.b16 %v876
  %v965 = vunpack.c.l.b16 %v877
  %v966 = vunpack.c.h.b16 %v874
  %v967 = vunpack.c.h.b16 %v875
  %v968 = vunpack.c.h.b16 %v876
  %v969 = vunpack.c.h.b16 %v877
  %v970 = vunpack.c.l.b16 %v878
  %v971 = vunpack.c.l.b16 %v879
  %v972 = vunpack.c.l.b16 %v880
  %v973 = vunpack.c.l.b16 %v881
  %v974 = vunpack.c.h.b16 %v878
  %v975 = vunpack.c.h.b16 %v879
  %v976 = vunpack.c.h.b16 %v880
  %v977 = vunpack.c.h.b16 %v881
  %v978 = vpack.c.b16 %v915, %v914
  %v979 = vpack.c.b16 %v917, %v916
  %v980 = vpack.c.b16 %v919, %v918
  %v981 = vpack.c.b16 %v921, %v920
  %v982 = vpack.c.b16 %v923, %v922
  %v983 = vpack.c.b16 %v925, %v924
  %v984 = vpack.c.b16 %v927, %v926
  %v985 = vpack.c.b16 %v929, %v928
  %v986 = vpack.c.b16 %v931, %v930
  %v987 = vpack.c.b16 %v933, %v932
  %v988 = vpack.c.b16 %v935, %v934
  %v989 = vpack.c.b16 %v937, %v936
  %v990 = vpack.c.b16 %v939, %v938
  %v991 = vpack.c.b16 %v941, %v940
  %v992 = vpack.c.b16 %v943, %v942
  %v993 = vpack.c.b16 %v945, %v944
  %v994 = vpack.c.b16 %v947, %v946
  %v995 = vpack.c.b16 %v949, %v948
  %v996 = vpack.c.b16 %v951, %v950
  %v997 = vpack.c.b16 %v953, %v952
  %v998 = vpack.c.b16 %v955, %v954
  %v999 = vpack.c.b16 %v957, %v956
  %v1000 = vpack.c.b16 %v959, %v958
  %v1001 = vpack.c.b16 %v961, %v960
  %v1002 = vpack.c.b16 %v963, %v962
  %v1003 = vpack.c.b16 %v965, %v964
  %v1004 = vpack.c.b16 %v967, %v966
  %v1005 = vpack.c.b16 %v969, %v968
  %v1006 = vpack.c.b16 %v971, %v970
  %v1007 = vpack.c.b16 %v973, %v972
  %v1008 = vpack.c.b16 %v975, %v974
  %v1009 = vpack.c.b16 %v977, %v976
  %1042 = vst [vmem:[%s9] sm:$0xff] %v978
  %1043 = vst [vmem:[%s9 + $0x8] sm:$0xff] %v979
  %1044 = vst [vmem:[%s9 + $0x10] sm:$0xff] %v980
  %1045 = vst [vmem:[%s9 + $0x18] sm:$0xff] %v981
  %1046 = vst [vmem:[%s9 + $0x20] sm:$0xff] %v982
  %1047 = vst [vmem:[%s9 + $0x28] sm:$0xff] %v983
  %1048 = vst [vmem:[%s9 + $0x30] sm:$0xff] %v984
  %1049 = vst [vmem:[%s9 + $0x38] sm:$0xff] %v985
  %1050 = vst [vmem:[%s9 + $0x40] sm:$0xff] %v986
  %1051 = vst [vmem:[%s9 + $0x48] sm:$0xff] %v987
  %1052 = vst [vmem:[%s9 + $0x50] sm:$0xff] %v988
  %1053 = vst [vmem:[%s9 + $0x58] sm:$0xff] %v989
  %1054 = vst [vmem:[%s9 + $0x60] sm:$0xff] %v990
  %1055 = vst [vmem:[%s9 + $0x68] sm:$0xff] %v991
  %1056 = vst [vmem:[%s9 + $0x70] sm:$0xff] %v992
  %1057 = vst [vmem:[%s9 + $0x78] sm:$0xff] %v993
  %1058 = vst [vmem:[%s9 + $0x80] sm:$0xff] %v994
  %1059 = vst [vmem:[%s9 + $0x88] sm:$0xff] %v995
  %1060 = vst [vmem:[%s9 + $0x90] sm:$0xff] %v996
  %1061 = vst [vmem:[%s9 + $0x98] sm:$0xff] %v997
  %1062 = vst [vmem:[%s9 + $0xa0] sm:$0xff] %v998
  %1063 = vst [vmem:[%s9 + $0xa8] sm:$0xff] %v999
  %1064 = vst [vmem:[%s9 + $0xb0] sm:$0xff] %v1000
  %1065 = vst [vmem:[%s9 + $0xb8] sm:$0xff] %v1001
  %1066 = vst [vmem:[%s9 + $0xc0] sm:$0xff] %v1002
  %1067 = vst [vmem:[%s9 + $0xc8] sm:$0xff] %v1003
  %1068 = vst [vmem:[%s9 + $0xd0] sm:$0xff] %v1004
  %1069 = vst [vmem:[%s9 + $0xd8] sm:$0xff] %v1005
  %1070 = vst [vmem:[%s9 + $0xe0] sm:$0xff] %v1006
  %1071 = vst [vmem:[%s9 + $0xe8] sm:$0xff] %v1007
  %1072 = vst [vmem:[%s9 + $0xf0] sm:$0xff] %v1008
  %1073 = vst [vmem:[%s9 + $0xf8] sm:$0xff] %v1009
  %1074 = vst [vmem:[#allocation2] sm:$0xff] %v786
  %1075 = vst [vmem:[#allocation2 + $0x8] sm:$0xff] %v787
  %1076 = vst [vmem:[#allocation2 + $0x10] sm:$0xff] %v788
  %1077 = vst [vmem:[#allocation2 + $0x18] sm:$0xff] %v789
  %1078 = vst [vmem:[#allocation2 + $0x20] sm:$0xff] %v790
  %1079 = vst [vmem:[#allocation2 + $0x28] sm:$0xff] %v791
  %1080 = vst [vmem:[#allocation2 + $0x30] sm:$0xff] %v792
  %1081 = vst [vmem:[#allocation2 + $0x38] sm:$0xff] %v793
  %1082 = vst [vmem:[#allocation2 + $0x40] sm:$0xff] %v794
  %1083 = vst [vmem:[#allocation2 + $0x48] sm:$0xff] %v795
  %1084 = vst [vmem:[#allocation2 + $0x50] sm:$0xff] %v796
  %1085 = vst [vmem:[#allocation2 + $0x58] sm:$0xff] %v797
  %1086 = vst [vmem:[#allocation2 + $0x60] sm:$0xff] %v798
  %1087 = vst [vmem:[#allocation2 + $0x68] sm:$0xff] %v799
  %1088 = vst [vmem:[#allocation2 + $0x70] sm:$0xff] %v800
  %1089 = vst [vmem:[#allocation2 + $0x78] sm:$0xff] %v801
  %1090 = vst [vmem:[#allocation2 + $0x80] sm:$0xff] %v802
  %1091 = vst [vmem:[#allocation2 + $0x88] sm:$0xff] %v803
  %1092 = vst [vmem:[#allocation2 + $0x90] sm:$0xff] %v804
  %1093 = vst [vmem:[#allocation2 + $0x98] sm:$0xff] %v805
  %1094 = vst [vmem:[#allocation2 + $0xa0] sm:$0xff] %v806
  %1095 = vst [vmem:[#allocation2 + $0xa8] sm:$0xff] %v807
  %1096 = vst [vmem:[#allocation2 + $0xb0] sm:$0xff] %v808
  %1097 = vst [vmem:[#allocation2 + $0xb8] sm:$0xff] %v809
  %1098 = vst [vmem:[#allocation2 + $0xc0] sm:$0xff] %v810
  %1099 = vst [vmem:[#allocation2 + $0xc8] sm:$0xff] %v811
  %1100 = vst [vmem:[#allocation2 + $0xd0] sm:$0xff] %v812
  %1101 = vst [vmem:[#allocation2 + $0xd8] sm:$0xff] %v813
  %1102 = vst [vmem:[#allocation2 + $0xe0] sm:$0xff] %v814
  %1103 = vst [vmem:[#allocation2 + $0xe8] sm:$0xff] %v815
  %1104 = vst [vmem:[#allocation2 + $0xf0] sm:$0xff] %v816
  %1105 = vst [vmem:[#allocation2 + $0xf8] sm:$0xff] %v817
  %1106 = vst [vmem:[#allocation2 + $0x100] sm:$0xff] %v818
  %1107 = vst [vmem:[#allocation2 + $0x108] sm:$0xff] %v819
  %1108 = vst [vmem:[#allocation2 + $0x110] sm:$0xff] %v820
  %1109 = vst [vmem:[#allocation2 + $0x118] sm:$0xff] %v821
  %1110 = vst [vmem:[#allocation2 + $0x120] sm:$0xff] %v822
  %1111 = vst [vmem:[#allocation2 + $0x128] sm:$0xff] %v823
  %1112 = vst [vmem:[#allocation2 + $0x130] sm:$0xff] %v824
  %1113 = vst [vmem:[#allocation2 + $0x138] sm:$0xff] %v825
  %1114 = vst [vmem:[#allocation2 + $0x140] sm:$0xff] %v826
  %1115 = vst [vmem:[#allocation2 + $0x148] sm:$0xff] %v827
  %1116 = vst [vmem:[#allocation2 + $0x150] sm:$0xff] %v828
  %1117 = vst [vmem:[#allocation2 + $0x158] sm:$0xff] %v829
  %1118 = vst [vmem:[#allocation2 + $0x160] sm:$0xff] %v830
  %1119 = vst [vmem:[#allocation2 + $0x168] sm:$0xff] %v831
  %1120 = vst [vmem:[#allocation2 + $0x170] sm:$0xff] %v832
  %1121 = vst [vmem:[#allocation2 + $0x178] sm:$0xff] %v833
  %1122 = vst [vmem:[#allocation2 + $0x180] sm:$0xff] %v834
  %1123 = vst [vmem:[#allocation2 + $0x188] sm:$0xff] %v835
  %1124 = vst [vmem:[#allocation2 + $0x190] sm:$0xff] %v836
  %1125 = vst [vmem:[#allocation2 + $0x198] sm:$0xff] %v837
  %1126 = vst [vmem:[#allocation2 + $0x1a0] sm:$0xff] %v838
  %1127 = vst [vmem:[#allocation2 + $0x1a8] sm:$0xff] %v839
  %1128 = vst [vmem:[#allocation2 + $0x1b0] sm:$0xff] %v840
  %1129 = vst [vmem:[#allocation2 + $0x1b8] sm:$0xff] %v841
  %1130 = vst [vmem:[#allocation2 + $0x1c0] sm:$0xff] %v842
  %1131 = vst [vmem:[#allocation2 + $0x1c8] sm:$0xff] %v843
  %1132 = vst [vmem:[#allocation2 + $0x1d0] sm:$0xff] %v844
  %1133 = vst [vmem:[#allocation2 + $0x1d8] sm:$0xff] %v845
  %1134 = vst [vmem:[#allocation2 + $0x1e0] sm:$0xff] %v846
  %1135 = vst [vmem:[#allocation2 + $0x1e8] sm:$0xff] %v847
  %1136 = vst [vmem:[#allocation2 + $0x1f0] sm:$0xff] %v848
  %1137 = vst [vmem:[#allocation2 + $0x1f8] sm:$0xff] %v849
  %v1138 = vld [vmem:[#allocation2] sm:$0xff]
  %v1139 = vld [vmem:[#allocation2 + $0x20] sm:$0xff]
  %v1140 = vld [vmem:[#allocation2 + $0x40] sm:$0xff]
  %v1141 = vld [vmem:[#allocation2 + $0x60] sm:$0xff]
  %v1142 = vld [vmem:[#allocation2 + $0x80] sm:$0xff]
  %v1143 = vld [vmem:[#allocation2 + $0xa0] sm:$0xff]
  %v1144 = vld [vmem:[#allocation2 + $0xc0] sm:$0xff]
  %v1145 = vld [vmem:[#allocation2 + $0xe0] sm:$0xff]
  %v1146 = vld [vmem:[#allocation2 + $0x100] sm:$0xff]
  %v1147 = vld [vmem:[#allocation2 + $0x120] sm:$0xff]
  %v1148 = vld [vmem:[#allocation2 + $0x140] sm:$0xff]
  %v1149 = vld [vmem:[#allocation2 + $0x160] sm:$0xff]
  %v1150 = vld [vmem:[#allocation2 + $0x180] sm:$0xff]
  %v1151 = vld [vmem:[#allocation2 + $0x1a0] sm:$0xff]
  %v1152 = vld [vmem:[#allocation2 + $0x1c0] sm:$0xff]
  %v1153 = vld [vmem:[#allocation2 + $0x1e0] sm:$0xff]
  %1170 = vrot.lane.b32.xlu0 %v1138, 96
  %v1171 = vpop.permute.xlu0 %1170
  %1172 = vrot.lane.b32.xlu0 %v1139, 96
  %v1173 = vpop.permute.xlu0 %1172
  %1174 = vrot.lane.b32.xlu0 %v1140, 96
  %v1175 = vpop.permute.xlu0 %1174
  %1176 = vrot.lane.b32.xlu0 %v1141, 96
  %v1177 = vpop.permute.xlu0 %1176
  %1178 = vrot.lane.b32.xlu0 %v1142, 96
  %v1179 = vpop.permute.xlu0 %1178
  %1180 = vrot.lane.b32.xlu0 %v1143, 96
  %v1181 = vpop.permute.xlu0 %1180
  %1182 = vrot.lane.b32.xlu0 %v1144, 96
  %v1183 = vpop.permute.xlu0 %1182
  %1184 = vrot.lane.b32.xlu0 %v1145, 96
  %v1185 = vpop.permute.xlu0 %1184
  %1186 = vrot.lane.b32.xlu0 %v1146, 96
  %v1187 = vpop.permute.xlu0 %1186
  %1188 = vrot.lane.b32.xlu0 %v1147, 96
  %v1189 = vpop.permute.xlu0 %1188
  %1190 = vrot.lane.b32.xlu0 %v1148, 96
  %v1191 = vpop.permute.xlu0 %1190
  %1192 = vrot.lane.b32.xlu0 %v1149, 96
  %v1193 = vpop.permute.xlu0 %1192
  %1194 = vrot.lane.b32.xlu0 %v1150, 96
  %v1195 = vpop.permute.xlu0 %1194
  %1196 = vrot.lane.b32.xlu0 %v1151, 96
  %v1197 = vpop.permute.xlu0 %1196
  %1198 = vrot.lane.b32.xlu0 %v1152, 96
  %v1199 = vpop.permute.xlu0 %1198
  %1200 = vrot.lane.b32.xlu0 %v1153, 96
  %v1201 = vpop.permute.xlu0 %1200
  %v1218 = vmax.f32 %v1138, %v1171
  %v1219 = vmax.f32 %v1139, %v1173
  %v1220 = vmax.f32 %v1140, %v1175
  %v1221 = vmax.f32 %v1141, %v1177
  %v1222 = vmax.f32 %v1142, %v1179
  %v1223 = vmax.f32 %v1143, %v1181
  %v1224 = vmax.f32 %v1144, %v1183
  %v1225 = vmax.f32 %v1145, %v1185
  %v1226 = vmax.f32 %v1146, %v1187
  %v1227 = vmax.f32 %v1147, %v1189
  %v1228 = vmax.f32 %v1148, %v1191
  %v1229 = vmax.f32 %v1149, %v1193
  %v1230 = vmax.f32 %v1150, %v1195
  %v1231 = vmax.f32 %v1151, %v1197
  %v1232 = vmax.f32 %v1152, %v1199
  %v1233 = vmax.f32 %v1153, %v1201
  %1234 = vrot.lane.b32.xlu0 %v1138, 64
  %v1235 = vpop.permute.xlu0 %1234
  %1236 = vrot.lane.b32.xlu0 %v1139, 64
  %v1237 = vpop.permute.xlu0 %1236
  %1238 = vrot.lane.b32.xlu0 %v1140, 64
  %v1239 = vpop.permute.xlu0 %1238
  %1240 = vrot.lane.b32.xlu0 %v1141, 64
  %v1241 = vpop.permute.xlu0 %1240
  %1242 = vrot.lane.b32.xlu0 %v1142, 64
  %v1243 = vpop.permute.xlu0 %1242
  %1244 = vrot.lane.b32.xlu0 %v1143, 64
  %v1245 = vpop.permute.xlu0 %1244
  %1246 = vrot.lane.b32.xlu0 %v1144, 64
  %v1247 = vpop.permute.xlu0 %1246
  %1248 = vrot.lane.b32.xlu0 %v1145, 64
  %v1249 = vpop.permute.xlu0 %1248
  %1250 = vrot.lane.b32.xlu0 %v1146, 64
  %v1251 = vpop.permute.xlu0 %1250
  %1252 = vrot.lane.b32.xlu0 %v1147, 64
  %v1253 = vpop.permute.xlu0 %1252
  %1254 = vrot.lane.b32.xlu0 %v1148, 64
  %v1255 = vpop.permute.xlu0 %1254
  %1256 = vrot.lane.b32.xlu0 %v1149, 64
  %v1257 = vpop.permute.xlu0 %1256
  %1258 = vrot.lane.b32.xlu0 %v1150, 64
  %v1259 = vpop.permute.xlu0 %1258
  %1260 = vrot.lane.b32.xlu0 %v1151, 64
  %v1261 = vpop.permute.xlu0 %1260
  %1262 = vrot.lane.b32.xlu0 %v1152, 64
  %v1263 = vpop.permute.xlu0 %1262
  %1264 = vrot.lane.b32.xlu0 %v1153, 64
  %v1265 = vpop.permute.xlu0 %1264
  %v1282 = vmax.f32 %v1218, %v1235
  %v1283 = vmax.f32 %v1219, %v1237
  %v1284 = vmax.f32 %v1220, %v1239
  %v1285 = vmax.f32 %v1221, %v1241
  %v1286 = vmax.f32 %v1222, %v1243
  %v1287 = vmax.f32 %v1223, %v1245
  %v1288 = vmax.f32 %v1224, %v1247
  %v1289 = vmax.f32 %v1225, %v1249
  %v1290 = vmax.f32 %v1226, %v1251
  %v1291 = vmax.f32 %v1227, %v1253
  %v1292 = vmax.f32 %v1228, %v1255
  %v1293 = vmax.f32 %v1229, %v1257
  %v1294 = vmax.f32 %v1230, %v1259
  %v1295 = vmax.f32 %v1231, %v1261
  %v1296 = vmax.f32 %v1232, %v1263
  %v1297 = vmax.f32 %v1233, %v1265
  %1298 = vrot.lane.b32.xlu0 %v1138, 32
  %v1299 = vpop.permute.xlu0 %1298
  %1300 = vrot.lane.b32.xlu0 %v1139, 32
  %v1301 = vpop.permute.xlu0 %1300
  %1302 = vrot.lane.b32.xlu0 %v1140, 32
  %v1303 = vpop.permute.xlu0 %1302
  %1304 = vrot.lane.b32.xlu0 %v1141, 32
  %v1305 = vpop.permute.xlu0 %1304
  %1306 = vrot.lane.b32.xlu0 %v1142, 32
  %v1307 = vpop.permute.xlu0 %1306
  %1308 = vrot.lane.b32.xlu0 %v1143, 32
  %v1309 = vpop.permute.xlu0 %1308
  %1310 = vrot.lane.b32.xlu0 %v1144, 32
  %v1311 = vpop.permute.xlu0 %1310
  %1312 = vrot.lane.b32.xlu0 %v1145, 32
  %v1313 = vpop.permute.xlu0 %1312
  %1314 = vrot.lane.b32.xlu0 %v1146, 32
  %v1315 = vpop.permute.xlu0 %1314
  %1316 = vrot.lane.b32.xlu0 %v1147, 32
  %v1317 = vpop.permute.xlu0 %1316
  %1318 = vrot.lane.b32.xlu0 %v1148, 32
  %v1319 = vpop.permute.xlu0 %1318
  %1320 = vrot.lane.b32.xlu0 %v1149, 32
  %v1321 = vpop.permute.xlu0 %1320
  %1322 = vrot.lane.b32.xlu0 %v1150, 32
  %v1323 = vpop.permute.xlu0 %1322
  %1324 = vrot.lane.b32.xlu0 %v1151, 32
  %v1325 = vpop.permute.xlu0 %1324
  %1326 = vrot.lane.b32.xlu0 %v1152, 32
  %v1327 = vpop.permute.xlu0 %1326
  %1328 = vrot.lane.b32.xlu0 %v1153, 32
  %v1329 = vpop.permute.xlu0 %1328
  %v1346 = vmax.f32 %v1282, %v1299
  %v1347 = vmax.f32 %v1283, %v1301
  %v1348 = vmax.f32 %v1284, %v1303
  %v1349 = vmax.f32 %v1285, %v1305
  %v1350 = vmax.f32 %v1286, %v1307
  %v1351 = vmax.f32 %v1287, %v1309
  %v1352 = vmax.f32 %v1288, %v1311
  %v1353 = vmax.f32 %v1289, %v1313
  %v1354 = vmax.f32 %v1290, %v1315
  %v1355 = vmax.f32 %v1291, %v1317
  %v1356 = vmax.f32 %v1292, %v1319
  %v1357 = vmax.f32 %v1293, %v1321
  %v1358 = vmax.f32 %v1294, %v1323
  %v1359 = vmax.f32 %v1295, %v1325
  %v1360 = vmax.f32 %v1296, %v1327
  %v1361 = vmax.f32 %v1297, %v1329
  %v1362 = vld [vmem:[#allocation2 + $0x8] sm:$0xff]
  %v1363 = vld [vmem:[#allocation2 + $0x28] sm:$0xff]
  %v1364 = vld [vmem:[#allocation2 + $0x48] sm:$0xff]
  %v1365 = vld [vmem:[#allocation2 + $0x68] sm:$0xff]
  %v1366 = vld [vmem:[#allocation2 + $0x88] sm:$0xff]
  %v1367 = vld [vmem:[#allocation2 + $0xa8] sm:$0xff]
  %v1368 = vld [vmem:[#allocation2 + $0xc8] sm:$0xff]
  %v1369 = vld [vmem:[#allocation2 + $0xe8] sm:$0xff]
  %v1370 = vld [vmem:[#allocation2 + $0x108] sm:$0xff]
  %v1371 = vld [vmem:[#allocation2 + $0x128] sm:$0xff]
  %v1372 = vld [vmem:[#allocation2 + $0x148] sm:$0xff]
  %v1373 = vld [vmem:[#allocation2 + $0x168] sm:$0xff]
  %v1374 = vld [vmem:[#allocation2 + $0x188] sm:$0xff]
  %v1375 = vld [vmem:[#allocation2 + $0x1a8] sm:$0xff]
  %v1376 = vld [vmem:[#allocation2 + $0x1c8] sm:$0xff]
  %v1377 = vld [vmem:[#allocation2 + $0x1e8] sm:$0xff]
  %v1378 = vmax.f32 %v1346, %v1362
  %v1379 = vmax.f32 %v1347, %v1363
  %v1380 = vmax.f32 %v1348, %v1364
  %v1381 = vmax.f32 %v1349, %v1365
  %v1382 = vmax.f32 %v1350, %v1366
  %v1383 = vmax.f32 %v1351, %v1367
  %v1384 = vmax.f32 %v1352, %v1368
  %v1385 = vmax.f32 %v1353, %v1369
  %v1386 = vmax.f32 %v1354, %v1370
  %v1387 = vmax.f32 %v1355, %v1371
  %v1388 = vmax.f32 %v1356, %v1372
  %v1389 = vmax.f32 %v1357, %v1373
  %v1390 = vmax.f32 %v1358, %v1374
  %v1391 = vmax.f32 %v1359, %v1375
  %v1392 = vmax.f32 %v1360, %v1376
  %v1393 = vmax.f32 %v1361, %v1377
  %1410 = vrot.lane.b32.xlu0 %v1362, 96
  %v1411 = vpop.permute.xlu0 %1410
  %1412 = vrot.lane.b32.xlu0 %v1363, 96
  %v1413 = vpop.permute.xlu0 %1412
  %1414 = vrot.lane.b32.xlu0 %v1364, 96
  %v1415 = vpop.permute.xlu0 %1414
  %1416 = vrot.lane.b32.xlu0 %v1365, 96
  %v1417 = vpop.permute.xlu0 %1416
  %1418 = vrot.lane.b32.xlu0 %v1366, 96
  %v1419 = vpop.permute.xlu0 %1418
  %1420 = vrot.lane.b32.xlu0 %v1367, 96
  %v1421 = vpop.permute.xlu0 %1420
  %1422 = vrot.lane.b32.xlu0 %v1368, 96
  %v1423 = vpop.permute.xlu0 %1422
  %1424 = vrot.lane.b32.xlu0 %v1369, 96
  %v1425 = vpop.permute.xlu0 %1424
  %1426 = vrot.lane.b32.xlu0 %v1370, 96
  %v1427 = vpop.permute.xlu0 %1426
  %1428 = vrot.lane.b32.xlu0 %v1371, 96
  %v1429 = vpop.permute.xlu0 %1428
  %1430 = vrot.lane.b32.xlu0 %v1372, 96
  %v1431 = vpop.permute.xlu0 %1430
  %1432 = vrot.lane.b32.xlu0 %v1373, 96
  %v1433 = vpop.permute.xlu0 %1432
  %1434 = vrot.lane.b32.xlu0 %v1374, 96
  %v1435 = vpop.permute.xlu0 %1434
  %1436 = vrot.lane.b32.xlu0 %v1375, 96
  %v1437 = vpop.permute.xlu0 %1436
  %1438 = vrot.lane.b32.xlu0 %v1376, 96
  %v1439 = vpop.permute.xlu0 %1438
  %1440 = vrot.lane.b32.xlu0 %v1377, 96
  %v1441 = vpop.permute.xlu0 %1440
  %v1458 = vmax.f32 %v1378, %v1411
  %v1459 = vmax.f32 %v1379, %v1413
  %v1460 = vmax.f32 %v1380, %v1415
  %v1461 = vmax.f32 %v1381, %v1417
  %v1462 = vmax.f32 %v1382, %v1419
  %v1463 = vmax.f32 %v1383, %v1421
  %v1464 = vmax.f32 %v1384, %v1423
  %v1465 = vmax.f32 %v1385, %v1425
  %v1466 = vmax.f32 %v1386, %v1427
  %v1467 = vmax.f32 %v1387, %v1429
  %v1468 = vmax.f32 %v1388, %v1431
  %v1469 = vmax.f32 %v1389, %v1433
  %v1470 = vmax.f32 %v1390, %v1435
  %v1471 = vmax.f32 %v1391, %v1437
  %v1472 = vmax.f32 %v1392, %v1439
  %v1473 = vmax.f32 %v1393, %v1441
  %1474 = vrot.lane.b32.xlu0 %v1362, 64
  %v1475 = vpop.permute.xlu0 %1474
  %1476 = vrot.lane.b32.xlu0 %v1363, 64
  %v1477 = vpop.permute.xlu0 %1476
  %1478 = vrot.lane.b32.xlu0 %v1364, 64
  %v1479 = vpop.permute.xlu0 %1478
  %1480 = vrot.lane.b32.xlu0 %v1365, 64
  %v1481 = vpop.permute.xlu0 %1480
  %1482 = vrot.lane.b32.xlu0 %v1366, 64
  %v1483 = vpop.permute.xlu0 %1482
  %1484 = vrot.lane.b32.xlu0 %v1367, 64
  %v1485 = vpop.permute.xlu0 %1484
  %1486 = vrot.lane.b32.xlu0 %v1368, 64
  %v1487 = vpop.permute.xlu0 %1486
  %1488 = vrot.lane.b32.xlu0 %v1369, 64
  %v1489 = vpop.permute.xlu0 %1488
  %1490 = vrot.lane.b32.xlu0 %v1370, 64
  %v1491 = vpop.permute.xlu0 %1490
  %1492 = vrot.lane.b32.xlu0 %v1371, 64
  %v1493 = vpop.permute.xlu0 %1492
  %1494 = vrot.lane.b32.xlu0 %v1372, 64
  %v1495 = vpop.permute.xlu0 %1494
  %1496 = vrot.lane.b32.xlu0 %v1373, 64
  %v1497 = vpop.permute.xlu0 %1496
  %1498 = vrot.lane.b32.xlu0 %v1374, 64
  %v1499 = vpop.permute.xlu0 %1498
  %1500 = vrot.lane.b32.xlu0 %v1375, 64
  %v1501 = vpop.permute.xlu0 %1500
  %1502 = vrot.lane.b32.xlu0 %v1376, 64
  %v1503 = vpop.permute.xlu0 %1502
  %1504 = vrot.lane.b32.xlu0 %v1377, 64
  %v1505 = vpop.permute.xlu0 %1504
  %v1522 = vmax.f32 %v1458, %v1475
  %v1523 = vmax.f32 %v1459, %v1477
  %v1524 = vmax.f32 %v1460, %v1479
  %v1525 = vmax.f32 %v1461, %v1481
  %v1526 = vmax.f32 %v1462, %v1483
  %v1527 = vmax.f32 %v1463, %v1485
  %v1528 = vmax.f32 %v1464, %v1487
  %v1529 = vmax.f32 %v1465, %v1489
  %v1530 = vmax.f32 %v1466, %v1491
  %v1531 = vmax.f32 %v1467, %v1493
  %v1532 = vmax.f32 %v1468, %v1495
  %v1533 = vmax.f32 %v1469, %v1497
  %v1534 = vmax.f32 %v1470, %v1499
  %v1535 = vmax.f32 %v1471, %v1501
  %v1536 = vmax.f32 %v1472, %v1503
  %v1537 = vmax.f32 %v1473, %v1505
  %1538 = vrot.lane.b32.xlu0 %v1362, 32
  %v1539 = vpop.permute.xlu0 %1538
  %1540 = vrot.lane.b32.xlu0 %v1363, 32
  %v1541 = vpop.permute.xlu0 %1540
  %1542 = vrot.lane.b32.xlu0 %v1364, 32
  %v1543 = vpop.permute.xlu0 %1542
  %1544 = vrot.lane.b32.xlu0 %v1365, 32
  %v1545 = vpop.permute.xlu0 %1544
  %1546 = vrot.lane.b32.xlu0 %v1366, 32
  %v1547 = vpop.permute.xlu0 %1546
  %1548 = vrot.lane.b32.xlu0 %v1367, 32
  %v1549 = vpop.permute.xlu0 %1548
  %1550 = vrot.lane.b32.xlu0 %v1368, 32
  %v1551 = vpop.permute.xlu0 %1550
  %1552 = vrot.lane.b32.xlu0 %v1369, 32
  %v1553 = vpop.permute.xlu0 %1552
  %1554 = vrot.lane.b32.xlu0 %v1370, 32
  %v1555 = vpop.permute.xlu0 %1554
  %1556 = vrot.lane.b32.xlu0 %v1371, 32
  %v1557 = vpop.permute.xlu0 %1556
  %1558 = vrot.lane.b32.xlu0 %v1372, 32
  %v1559 = vpop.permute.xlu0 %1558
  %1560 = vrot.lane.b32.xlu0 %v1373, 32
  %v1561 = vpop.permute.xlu0 %1560
  %1562 = vrot.lane.b32.xlu0 %v1374, 32
  %v1563 = vpop.permute.xlu0 %1562
  %1564 = vrot.lane.b32.xlu0 %v1375, 32
  %v1565 = vpop.permute.xlu0 %1564
  %1566 = vrot.lane.b32.xlu0 %v1376, 32
  %v1567 = vpop.permute.xlu0 %1566
  %1568 = vrot.lane.b32.xlu0 %v1377, 32
  %v1569 = vpop.permute.xlu0 %1568
  %v1586 = vmax.f32 %v1522, %v1539
  %v1587 = vmax.f32 %v1523, %v1541
  %v1588 = vmax.f32 %v1524, %v1543
  %v1589 = vmax.f32 %v1525, %v1545
  %v1590 = vmax.f32 %v1526, %v1547
  %v1591 = vmax.f32 %v1527, %v1549
  %v1592 = vmax.f32 %v1528, %v1551
  %v1593 = vmax.f32 %v1529, %v1553
  %v1594 = vmax.f32 %v1530, %v1555
  %v1595 = vmax.f32 %v1531, %v1557
  %v1596 = vmax.f32 %v1532, %v1559
  %v1597 = vmax.f32 %v1533, %v1561
  %v1598 = vmax.f32 %v1534, %v1563
  %v1599 = vmax.f32 %v1535, %v1565
  %v1600 = vmax.f32 %v1536, %v1567
  %v1601 = vmax.f32 %v1537, %v1569
  %v1602 = vld [vmem:[#allocation2 + $0x10] sm:$0xff]
  %v1603 = vld [vmem:[#allocation2 + $0x30] sm:$0xff]
  %v1604 = vld [vmem:[#allocation2 + $0x50] sm:$0xff]
  %v1605 = vld [vmem:[#allocation2 + $0x70] sm:$0xff]
  %v1606 = vld [vmem:[#allocation2 + $0x90] sm:$0xff]
  %v1607 = vld [vmem:[#allocation2 + $0xb0] sm:$0xff]
  %v1608 = vld [vmem:[#allocation2 + $0xd0] sm:$0xff]
  %v1609 = vld [vmem:[#allocation2 + $0xf0] sm:$0xff]
  %v1610 = vld [vmem:[#allocation2 + $0x110] sm:$0xff]
  %v1611 = vld [vmem:[#allocation2 + $0x130] sm:$0xff]
  %v1612 = vld [vmem:[#allocation2 + $0x150] sm:$0xff]
  %v1613 = vld [vmem:[#allocation2 + $0x170] sm:$0xff]
  %v1614 = vld [vmem:[#allocation2 + $0x190] sm:$0xff]
  %v1615 = vld [vmem:[#allocation2 + $0x1b0] sm:$0xff]
  %v1616 = vld [vmem:[#allocation2 + $0x1d0] sm:$0xff]
  %v1617 = vld [vmem:[#allocation2 + $0x1f0] sm:$0xff]
  %v1618 = vmax.f32 %v1586, %v1602
  %v1619 = vmax.f32 %v1587, %v1603
  %v1620 = vmax.f32 %v1588, %v1604
  %v1621 = vmax.f32 %v1589, %v1605
  %v1622 = vmax.f32 %v1590, %v1606
  %v1623 = vmax.f32 %v1591, %v1607
  %v1624 = vmax.f32 %v1592, %v1608
  %v1625 = vmax.f32 %v1593, %v1609
  %v1626 = vmax.f32 %v1594, %v1610
  %v1627 = vmax.f32 %v1595, %v1611
  %v1628 = vmax.f32 %v1596, %v1612
  %v1629 = vmax.f32 %v1597, %v1613
  %v1630 = vmax.f32 %v1598, %v1614
  %v1631 = vmax.f32 %v1599, %v1615
  %v1632 = vmax.f32 %v1600, %v1616
  %v1633 = vmax.f32 %v1601, %v1617
  %1650 = vrot.lane.b32.xlu0 %v1602, 96
  %v1651 = vpop.permute.xlu0 %1650
  %1652 = vrot.lane.b32.xlu0 %v1603, 96
  %v1653 = vpop.permute.xlu0 %1652
  %1654 = vrot.lane.b32.xlu0 %v1604, 96
  %v1655 = vpop.permute.xlu0 %1654
  %1656 = vrot.lane.b32.xlu0 %v1605, 96
  %v1657 = vpop.permute.xlu0 %1656
  %1658 = vrot.lane.b32.xlu0 %v1606, 96
  %v1659 = vpop.permute.xlu0 %1658
  %1660 = vrot.lane.b32.xlu0 %v1607, 96
  %v1661 = vpop.permute.xlu0 %1660
  %1662 = vrot.lane.b32.xlu0 %v1608, 96
  %v1663 = vpop.permute.xlu0 %1662
  %1664 = vrot.lane.b32.xlu0 %v1609, 96
  %v1665 = vpop.permute.xlu0 %1664
  %1666 = vrot.lane.b32.xlu0 %v1610, 96
  %v1667 = vpop.permute.xlu0 %1666
  %1668 = vrot.lane.b32.xlu0 %v1611, 96
  %v1669 = vpop.permute.xlu0 %1668
  %1670 = vrot.lane.b32.xlu0 %v1612, 96
  %v1671 = vpop.permute.xlu0 %1670
  %1672 = vrot.lane.b32.xlu0 %v1613, 96
  %v1673 = vpop.permute.xlu0 %1672
  %1674 = vrot.lane.b32.xlu0 %v1614, 96
  %v1675 = vpop.permute.xlu0 %1674
  %1676 = vrot.lane.b32.xlu0 %v1615, 96
  %v1677 = vpop.permute.xlu0 %1676
  %1678 = vrot.lane.b32.xlu0 %v1616, 96
  %v1679 = vpop.permute.xlu0 %1678
  %1680 = vrot.lane.b32.xlu0 %v1617, 96
  %v1681 = vpop.permute.xlu0 %1680
  %v1698 = vmax.f32 %v1618, %v1651
  %v1699 = vmax.f32 %v1619, %v1653
  %v1700 = vmax.f32 %v1620, %v1655
  %v1701 = vmax.f32 %v1621, %v1657
  %v1702 = vmax.f32 %v1622, %v1659
  %v1703 = vmax.f32 %v1623, %v1661
  %v1704 = vmax.f32 %v1624, %v1663
  %v1705 = vmax.f32 %v1625, %v1665
  %v1706 = vmax.f32 %v1626, %v1667
  %v1707 = vmax.f32 %v1627, %v1669
  %v1708 = vmax.f32 %v1628, %v1671
  %v1709 = vmax.f32 %v1629, %v1673
  %v1710 = vmax.f32 %v1630, %v1675
  %v1711 = vmax.f32 %v1631, %v1677
  %v1712 = vmax.f32 %v1632, %v1679
  %v1713 = vmax.f32 %v1633, %v1681
  %1714 = vrot.lane.b32.xlu0 %v1602, 64
  %v1715 = vpop.permute.xlu0 %1714
  %1716 = vrot.lane.b32.xlu0 %v1603, 64
  %v1717 = vpop.permute.xlu0 %1716
  %1718 = vrot.lane.b32.xlu0 %v1604, 64
  %v1719 = vpop.permute.xlu0 %1718
  %1720 = vrot.lane.b32.xlu0 %v1605, 64
  %v1721 = vpop.permute.xlu0 %1720
  %1722 = vrot.lane.b32.xlu0 %v1606, 64
  %v1723 = vpop.permute.xlu0 %1722
  %1724 = vrot.lane.b32.xlu0 %v1607, 64
  %v1725 = vpop.permute.xlu0 %1724
  %1726 = vrot.lane.b32.xlu0 %v1608, 64
  %v1727 = vpop.permute.xlu0 %1726
  %1728 = vrot.lane.b32.xlu0 %v1609, 64
  %v1729 = vpop.permute.xlu0 %1728
  %1730 = vrot.lane.b32.xlu0 %v1610, 64
  %v1731 = vpop.permute.xlu0 %1730
  %1732 = vrot.lane.b32.xlu0 %v1611, 64
  %v1733 = vpop.permute.xlu0 %1732
  %1734 = vrot.lane.b32.xlu0 %v1612, 64
  %v1735 = vpop.permute.xlu0 %1734
  %1736 = vrot.lane.b32.xlu0 %v1613, 64
  %v1737 = vpop.permute.xlu0 %1736
  %1738 = vrot.lane.b32.xlu0 %v1614, 64
  %v1739 = vpop.permute.xlu0 %1738
  %1740 = vrot.lane.b32.xlu0 %v1615, 64
  %v1741 = vpop.permute.xlu0 %1740
  %1742 = vrot.lane.b32.xlu0 %v1616, 64
  %v1743 = vpop.permute.xlu0 %1742
  %1744 = vrot.lane.b32.xlu0 %v1617, 64
  %v1745 = vpop.permute.xlu0 %1744
  %v1762 = vmax.f32 %v1698, %v1715
  %v1763 = vmax.f32 %v1699, %v1717
  %v1764 = vmax.f32 %v1700, %v1719
  %v1765 = vmax.f32 %v1701, %v1721
  %v1766 = vmax.f32 %v1702, %v1723
  %v1767 = vmax.f32 %v1703, %v1725
  %v1768 = vmax.f32 %v1704, %v1727
  %v1769 = vmax.f32 %v1705, %v1729
  %v1770 = vmax.f32 %v1706, %v1731
  %v1771 = vmax.f32 %v1707, %v1733
  %v1772 = vmax.f32 %v1708, %v1735
  %v1773 = vmax.f32 %v1709, %v1737
  %v1774 = vmax.f32 %v1710, %v1739
  %v1775 = vmax.f32 %v1711, %v1741
  %v1776 = vmax.f32 %v1712, %v1743
  %v1777 = vmax.f32 %v1713, %v1745
  %1778 = vrot.lane.b32.xlu0 %v1602, 32
  %v1779 = vpop.permute.xlu0 %1778
  %1780 = vrot.lane.b32.xlu0 %v1603, 32
  %v1781 = vpop.permute.xlu0 %1780
  %1782 = vrot.lane.b32.xlu0 %v1604, 32
  %v1783 = vpop.permute.xlu0 %1782
  %1784 = vrot.lane.b32.xlu0 %v1605, 32
  %v1785 = vpop.permute.xlu0 %1784
  %1786 = vrot.lane.b32.xlu0 %v1606, 32
  %v1787 = vpop.permute.xlu0 %1786
  %1788 = vrot.lane.b32.xlu0 %v1607, 32
  %v1789 = vpop.permute.xlu0 %1788
  %1790 = vrot.lane.b32.xlu0 %v1608, 32
  %v1791 = vpop.permute.xlu0 %1790
  %1792 = vrot.lane.b32.xlu0 %v1609, 32
  %v1793 = vpop.permute.xlu0 %1792
  %1794 = vrot.lane.b32.xlu0 %v1610, 32
  %v1795 = vpop.permute.xlu0 %1794
  %1796 = vrot.lane.b32.xlu0 %v1611, 32
  %v1797 = vpop.permute.xlu0 %1796
  %1798 = vrot.lane.b32.xlu0 %v1612, 32
  %v1799 = vpop.permute.xlu0 %1798
  %1800 = vrot.lane.b32.xlu0 %v1613, 32
  %v1801 = vpop.permute.xlu0 %1800
  %1802 = vrot.lane.b32.xlu0 %v1614, 32
  %v1803 = vpop.permute.xlu0 %1802
  %1804 = vrot.lane.b32.xlu0 %v1615, 32
  %v1805 = vpop.permute.xlu0 %1804
  %1806 = vrot.lane.b32.xlu0 %v1616, 32
  %v1807 = vpop.permute.xlu0 %1806
  %1808 = vrot.lane.b32.xlu0 %v1617, 32
  %v1809 = vpop.permute.xlu0 %1808
  %v1826 = vmax.f32 %v1762, %v1779
  %v1827 = vmax.f32 %v1763, %v1781
  %v1828 = vmax.f32 %v1764, %v1783
  %v1829 = vmax.f32 %v1765, %v1785
  %v1830 = vmax.f32 %v1766, %v1787
  %v1831 = vmax.f32 %v1767, %v1789
  %v1832 = vmax.f32 %v1768, %v1791
  %v1833 = vmax.f32 %v1769, %v1793
  %v1834 = vmax.f32 %v1770, %v1795
  %v1835 = vmax.f32 %v1771, %v1797
  %v1836 = vmax.f32 %v1772, %v1799
  %v1837 = vmax.f32 %v1773, %v1801
  %v1838 = vmax.f32 %v1774, %v1803
  %v1839 = vmax.f32 %v1775, %v1805
  %v1840 = vmax.f32 %v1776, %v1807
  %v1841 = vmax.f32 %v1777, %v1809
  %v1842 = vld [vmem:[#allocation2 + $0x18] sm:$0xff]
  %v1843 = vld [vmem:[#allocation2 + $0x38] sm:$0xff]
  %v1844 = vld [vmem:[#allocation2 + $0x58] sm:$0xff]
  %v1845 = vld [vmem:[#allocation2 + $0x78] sm:$0xff]
  %v1846 = vld [vmem:[#allocation2 + $0x98] sm:$0xff]
  %v1847 = vld [vmem:[#allocation2 + $0xb8] sm:$0xff]
  %v1848 = vld [vmem:[#allocation2 + $0xd8] sm:$0xff]
  %v1849 = vld [vmem:[#allocation2 + $0xf8] sm:$0xff]
  %v1850 = vld [vmem:[#allocation2 + $0x118] sm:$0xff]
  %v1851 = vld [vmem:[#allocation2 + $0x138] sm:$0xff]
  %v1852 = vld [vmem:[#allocation2 + $0x158] sm:$0xff]
  %v1853 = vld [vmem:[#allocation2 + $0x178] sm:$0xff]
  %v1854 = vld [vmem:[#allocation2 + $0x198] sm:$0xff]
  %v1855 = vld [vmem:[#allocation2 + $0x1b8] sm:$0xff]
  %v1856 = vld [vmem:[#allocation2 + $0x1d8] sm:$0xff]
  %v1857 = vld [vmem:[#allocation2 + $0x1f8] sm:$0xff]
  %v1858 = vmax.f32 %v1826, %v1842
  %v1859 = vmax.f32 %v1827, %v1843
  %v1860 = vmax.f32 %v1828, %v1844
  %v1861 = vmax.f32 %v1829, %v1845
  %v1862 = vmax.f32 %v1830, %v1846
  %v1863 = vmax.f32 %v1831, %v1847
  %v1864 = vmax.f32 %v1832, %v1848
  %v1865 = vmax.f32 %v1833, %v1849
  %v1866 = vmax.f32 %v1834, %v1850
  %v1867 = vmax.f32 %v1835, %v1851
  %v1868 = vmax.f32 %v1836, %v1852
  %v1869 = vmax.f32 %v1837, %v1853
  %v1870 = vmax.f32 %v1838, %v1854
  %v1871 = vmax.f32 %v1839, %v1855
  %v1872 = vmax.f32 %v1840, %v1856
  %v1873 = vmax.f32 %v1841, %v1857
  %1890 = vrot.lane.b32.xlu0 %v1842, 96
  %v1891 = vpop.permute.xlu0 %1890
  %1892 = vrot.lane.b32.xlu0 %v1843, 96
  %v1893 = vpop.permute.xlu0 %1892
  %1894 = vrot.lane.b32.xlu0 %v1844, 96
  %v1895 = vpop.permute.xlu0 %1894
  %1896 = vrot.lane.b32.xlu0 %v1845, 96
  %v1897 = vpop.permute.xlu0 %1896
  %1898 = vrot.lane.b32.xlu0 %v1846, 96
  %v1899 = vpop.permute.xlu0 %1898
  %1900 = vrot.lane.b32.xlu0 %v1847, 96
  %v1901 = vpop.permute.xlu0 %1900
  %1902 = vrot.lane.b32.xlu0 %v1848, 96
  %v1903 = vpop.permute.xlu0 %1902
  %1904 = vrot.lane.b32.xlu0 %v1849, 96
  %v1905 = vpop.permute.xlu0 %1904
  %1906 = vrot.lane.b32.xlu0 %v1850, 96
  %v1907 = vpop.permute.xlu0 %1906
  %1908 = vrot.lane.b32.xlu0 %v1851, 96
  %v1909 = vpop.permute.xlu0 %1908
  %1910 = vrot.lane.b32.xlu0 %v1852, 96
  %v1911 = vpop.permute.xlu0 %1910
  %1912 = vrot.lane.b32.xlu0 %v1853, 96
  %v1913 = vpop.permute.xlu0 %1912
  %1914 = vrot.lane.b32.xlu0 %v1854, 96
  %v1915 = vpop.permute.xlu0 %1914
  %1916 = vrot.lane.b32.xlu0 %v1855, 96
  %v1917 = vpop.permute.xlu0 %1916
  %1918 = vrot.lane.b32.xlu0 %v1856, 96
  %v1919 = vpop.permute.xlu0 %1918
  %1920 = vrot.lane.b32.xlu0 %v1857, 96
  %v1921 = vpop.permute.xlu0 %1920
  %v1938 = vmax.f32 %v1858, %v1891
  %v1939 = vmax.f32 %v1859, %v1893
  %v1940 = vmax.f32 %v1860, %v1895
  %v1941 = vmax.f32 %v1861, %v1897
  %v1942 = vmax.f32 %v1862, %v1899
  %v1943 = vmax.f32 %v1863, %v1901
  %v1944 = vmax.f32 %v1864, %v1903
  %v1945 = vmax.f32 %v1865, %v1905
  %v1946 = vmax.f32 %v1866, %v1907
  %v1947 = vmax.f32 %v1867, %v1909
  %v1948 = vmax.f32 %v1868, %v1911
  %v1949 = vmax.f32 %v1869, %v1913
  %v1950 = vmax.f32 %v1870, %v1915
  %v1951 = vmax.f32 %v1871, %v1917
  %v1952 = vmax.f32 %v1872, %v1919
  %v1953 = vmax.f32 %v1873, %v1921
  %1954 = vrot.lane.b32.xlu0 %v1842, 64
  %v1955 = vpop.permute.xlu0 %1954
  %1956 = vrot.lane.b32.xlu0 %v1843, 64
  %v1957 = vpop.permute.xlu0 %1956
  %1958 = vrot.lane.b32.xlu0 %v1844, 64
  %v1959 = vpop.permute.xlu0 %1958
  %1960 = vrot.lane.b32.xlu0 %v1845, 64
  %v1961 = vpop.permute.xlu0 %1960
  %1962 = vrot.lane.b32.xlu0 %v1846, 64
  %v1963 = vpop.permute.xlu0 %1962
  %1964 = vrot.lane.b32.xlu0 %v1847, 64
  %v1965 = vpop.permute.xlu0 %1964
  %1966 = vrot.lane.b32.xlu0 %v1848, 64
  %v1967 = vpop.permute.xlu0 %1966
  %1968 = vrot.lane.b32.xlu0 %v1849, 64
  %v1969 = vpop.permute.xlu0 %1968
  %1970 = vrot.lane.b32.xlu0 %v1850, 64
  %v1971 = vpop.permute.xlu0 %1970
  %1972 = vrot.lane.b32.xlu0 %v1851, 64
  %v1973 = vpop.permute.xlu0 %1972
  %1974 = vrot.lane.b32.xlu0 %v1852, 64
  %v1975 = vpop.permute.xlu0 %1974
  %1976 = vrot.lane.b32.xlu0 %v1853, 64
  %v1977 = vpop.permute.xlu0 %1976
  %1978 = vrot.lane.b32.xlu0 %v1854, 64
  %v1979 = vpop.permute.xlu0 %1978
  %1980 = vrot.lane.b32.xlu0 %v1855, 64
  %v1981 = vpop.permute.xlu0 %1980
  %1982 = vrot.lane.b32.xlu0 %v1856, 64
  %v1983 = vpop.permute.xlu0 %1982
  %1984 = vrot.lane.b32.xlu0 %v1857, 64
  %v1985 = vpop.permute.xlu0 %1984
  %v2002 = vmax.f32 %v1938, %v1955
  %v2003 = vmax.f32 %v1939, %v1957
  %v2004 = vmax.f32 %v1940, %v1959
  %v2005 = vmax.f32 %v1941, %v1961
  %v2006 = vmax.f32 %v1942, %v1963
  %v2007 = vmax.f32 %v1943, %v1965
  %v2008 = vmax.f32 %v1944, %v1967
  %v2009 = vmax.f32 %v1945, %v1969
  %v2010 = vmax.f32 %v1946, %v1971
  %v2011 = vmax.f32 %v1947, %v1973
  %v2012 = vmax.f32 %v1948, %v1975
  %v2013 = vmax.f32 %v1949, %v1977
  %v2014 = vmax.f32 %v1950, %v1979
  %v2015 = vmax.f32 %v1951, %v1981
  %v2016 = vmax.f32 %v1952, %v1983
  %v2017 = vmax.f32 %v1953, %v1985
  %2018 = vrot.lane.b32.xlu0 %v1842, 32
  %v2019 = vpop.permute.xlu0 %2018
  %2020 = vrot.lane.b32.xlu0 %v1843, 32
  %v2021 = vpop.permute.xlu0 %2020
  %2022 = vrot.lane.b32.xlu0 %v1844, 32
  %v2023 = vpop.permute.xlu0 %2022
  %2024 = vrot.lane.b32.xlu0 %v1845, 32
  %v2025 = vpop.permute.xlu0 %2024
  %2026 = vrot.lane.b32.xlu0 %v1846, 32
  %v2027 = vpop.permute.xlu0 %2026
  %2028 = vrot.lane.b32.xlu0 %v1847, 32
  %v2029 = vpop.permute.xlu0 %2028
  %2030 = vrot.lane.b32.xlu0 %v1848, 32
  %v2031 = vpop.permute.xlu0 %2030
  %2032 = vrot.lane.b32.xlu0 %v1849, 32
  %v2033 = vpop.permute.xlu0 %2032
  %2034 = vrot.lane.b32.xlu0 %v1850, 32
  %v2035 = vpop.permute.xlu0 %2034
  %2036 = vrot.lane.b32.xlu0 %v1851, 32
  %v2037 = vpop.permute.xlu0 %2036
  %2038 = vrot.lane.b32.xlu0 %v1852, 32
  %v2039 = vpop.permute.xlu0 %2038
  %2040 = vrot.lane.b32.xlu0 %v1853, 32
  %v2041 = vpop.permute.xlu0 %2040
  %2042 = vrot.lane.b32.xlu0 %v1854, 32
  %v2043 = vpop.permute.xlu0 %2042
  %2044 = vrot.lane.b32.xlu0 %v1855, 32
  %v2045 = vpop.permute.xlu0 %2044
  %2046 = vrot.lane.b32.xlu0 %v1856, 32
  %v2047 = vpop.permute.xlu0 %2046
  %2048 = vrot.lane.b32.xlu0 %v1857, 32
  %v2049 = vpop.permute.xlu0 %2048
  %v2066 = vmax.f32 %v2002, %v2019
  %v2067 = vmax.f32 %v2003, %v2021
  %v2068 = vmax.f32 %v2004, %v2023
  %v2069 = vmax.f32 %v2005, %v2025
  %v2070 = vmax.f32 %v2006, %v2027
  %v2071 = vmax.f32 %v2007, %v2029
  %v2072 = vmax.f32 %v2008, %v2031
  %v2073 = vmax.f32 %v2009, %v2033
  %v2074 = vmax.f32 %v2010, %v2035
  %v2075 = vmax.f32 %v2011, %v2037
  %v2076 = vmax.f32 %v2012, %v2039
  %v2077 = vmax.f32 %v2013, %v2041
  %v2078 = vmax.f32 %v2014, %v2043
  %v2079 = vmax.f32 %v2015, %v2045
  %v2080 = vmax.f32 %v2016, %v2047
  %v2081 = vmax.f32 %v2017, %v2049
  %v2082 = vld [vmem:[%s6] sm:$0xff]
  %v2083 = vld [vmem:[%s6 + $0x8] sm:$0xff]
  %v2084 = vld [vmem:[%s6 + $0x10] sm:$0xff]
  %v2085 = vld [vmem:[%s6 + $0x18] sm:$0xff]
  %v2086 = vld [vmem:[%s7] sm:$0x1]
  %v2088 = vlaneseq
  %v2089 = vshrl.u32 %v2088, 7
  %v2090 = vsub.s32 0, %v2089
  %v2091 = vrot.slane %v2086, %v2090
  %vm2093 = vcmask 261120
  %v2095 = vsel %vm2093, %v2066, 0
  %v2098 = vsel %vm2093, %v2067, 0
  %v2101 = vsel %vm2093, %v2068, 0
  %v2104 = vsel %vm2093, %v2069, 0
  %v2107 = vsel %vm2093, %v2070, 0
  %v2110 = vsel %vm2093, %v2071, 0
  %v2113 = vsel %vm2093, %v2072, 0
  %v2116 = vsel %vm2093, %v2073, 0
  %v2119 = vsel %vm2093, %v2074, 0
  %v2122 = vsel %vm2093, %v2075, 0
  %v2125 = vsel %vm2093, %v2076, 0
  %v2128 = vsel %vm2093, %v2077, 0
  %v2131 = vsel %vm2093, %v2078, 0
  %v2134 = vsel %vm2093, %v2079, 0
  %v2137 = vsel %vm2093, %v2080, 0
  %v2140 = vsel %vm2093, %v2081, 0
  %2142 = vmatprep.subr.mxu0 0.0
  %2143 = vmatpush1.msra.mxu0 %v2082
  %2144 = vmatprep.subr.mxu0 0.0
  %2145 = vmatpush1.msra.mxu0 %v2083
  %2146 = vmatprep.subr.mxu0 0.0
  %2147 = vmatpush1.msra.mxu0 %v2084
  %2148 = vmatprep.subr.mxu0 0.0
  %2149 = vmatpush1.msra.mxu0 %v2085
  %2150 = vmatprep.subr.mxu0 0.0
  %2151 = vmatpush1.msra.mxu0 0.0
  %2152 = vmatprep.subr.mxu0 0.0
  %2153 = vmatpush1.msra.mxu0 0.0
  %2154 = vmatprep.subr.mxu0 0.0
  %2155 = vmatpush1.msra.mxu0 0.0
  %2156 = vmatprep.subr.mxu0 0.0
  %2157 = vmatpush1.msra.mxu0 0.0
  %2158 = vmatprep.subr.mxu0 0.0
  %2159 = vmatpush1.msra.mxu0 0.0
  %2160 = vmatprep.subr.mxu0 0.0
  %2161 = vmatpush1.msra.mxu0 0.0
  %2162 = vmatprep.subr.mxu0 0.0
  %2163 = vmatpush1.msra.mxu0 0.0
  %2164 = vmatprep.subr.mxu0 0.0
  %2165 = vmatpush1.msra.mxu0 0.0
  %2166 = vmatprep.subr.mxu0 0.0
  %2167 = vmatpush1.msra.mxu0 0.0
  %2168 = vmatprep.subr.mxu0 0.0
  %2169 = vmatpush1.msra.mxu0 0.0
  %2170 = vmatprep.subr.mxu0 0.0
  %2171 = vmatpush1.msra.mxu0 0.0
  %2172 = vmatprep.subr.mxu0 0.0
  %2173 = vmatpush1.msra.mxu0 0.0
  %2174 = vmatprep.subr.mxu0 0.0
  %2175 = vmatpush1.msra.mxu0 0.0
  %2176 = vmatprep.subr.mxu0 0.0
  %2177 = vmatpush1.msra.mxu0 0.0
  %2178 = vmatprep.subr.mxu0 0.0
  %2179 = vmatpush1.msra.mxu0 0.0
  %2180 = vmatprep.subr.mxu0 0.0
  %2181 = vmatpush1.msra.mxu0 0.0
  %2182 = vmatprep.subr.mxu0 0.0
  %2183 = vmatpush1.msra.mxu0 0.0
  %2184 = vmatprep.subr.mxu0 0.0
  %2185 = vmatpush1.msra.mxu0 0.0
  %2186 = vmatprep.subr.mxu0 0.0
  %2187 = vmatpush1.msra.mxu0 0.0
  %2188 = vmatprep.subr.mxu0 0.0
  %2189 = vmatpush1.msra.mxu0 0.0
  %2190 = vmatprep.subr.mxu0 0.0
  %2191 = vmatpush1.msra.mxu0 0.0
  %2192 = vmatprep.subr.mxu0 0.0
  %2193 = vmatpush1.msra.mxu0 0.0
  %2194 = vmatprep.subr.mxu0 0.0
  %2195 = vmatpush1.msra.mxu0 0.0
  %2196 = vmatprep.subr.mxu0 0.0
  %2197 = vmatpush1.msra.mxu0 0.0
  %2198 = vmatprep.subr.mxu0 0.0
  %2199 = vmatpush1.msra.mxu0 0.0
  %2200 = vmatprep.subr.mxu0 0.0
  %2201 = vmatpush1.msra.mxu0 0.0
  %2202 = vmatprep.subr.mxu0 0.0
  %2203 = vmatpush1.msra.mxu0 0.0
  %2204 = vmatprep.subr.mxu0 0.0
  %2205 = vmatpush1.msra.mxu0 0.0
  %2206 = vmatprep.mubr.f32.mxu0 0.0
  %2207 = vmatmul.mubr.f32.gmra.mrb[0].mxu0 %v2095
  %v2208 = vpop.f32.mrb[0].mxu0
  %v2209 = vadd.f32 %v2091, %v2208
  %v2210 = vpop.f32.mrb[0].mxu0
  %2211 = vmatprep.mubr.f32.mxu0 0.0
  %2212 = vmatmul.mubr.f32.gmra.mrb[0].mxu0 %v2098
  %v2213 = vpop.f32.mrb[0].mxu0
  %v2214 = vadd.f32 %v2091, %v2213
  %v2215 = vpop.f32.mrb[0].mxu0
  %2216 = vmatprep.mubr.f32.mxu0 0.0
  %2217 = vmatmul.mubr.f32.gmra.mrb[0].mxu0 %v2101
  %v2218 = vpop.f32.mrb[0].mxu0
  %v2219 = vadd.f32 %v2091, %v2218
  %v2220 = vpop.f32.mrb[0].mxu0
  %2221 = vmatprep.mubr.f32.mxu0 0.0
  %2222 = vmatmul.mubr.f32.gmra.mrb[0].mxu0 %v2104
  %v2223 = vpop.f32.mrb[0].mxu0
  %v2224 = vadd.f32 %v2091, %v2223
  %v2225 = vpop.f32.mrb[0].mxu0
  %2226 = vmatprep.mubr.f32.mxu0 0.0
  %2227 = vmatmul.mubr.f32.gmra.mrb[0].mxu0 %v2107
  %v2228 = vpop.f32.mrb[0].mxu0
  %v2229 = vadd.f32 %v2091, %v2228
  %v2230 = vpop.f32.mrb[0].mxu0
  %2231 = vmatprep.mubr.f32.mxu0 0.0
  %2232 = vmatmul.mubr.f32.gmra.mrb[0].mxu0 %v2110
  %v2233 = vpop.f32.mrb[0].mxu0
  %v2234 = vadd.f32 %v2091, %v2233
  %v2235 = vpop.f32.mrb[0].mxu0
  %2236 = vmatprep.mubr.f32.mxu0 0.0
  %2237 = vmatmul.mubr.f32.gmra.mrb[0].mxu0 %v2113
  %v2238 = vpop.f32.mrb[0].mxu0
  %v2239 = vadd.f32 %v2091, %v2238
  %v2240 = vpop.f32.mrb[0].mxu0
  %2241 = vmatprep.mubr.f32.mxu0 0.0
  %2242 = vmatmul.mubr.f32.gmra.mrb[0].mxu0 %v2116
  %v2243 = vpop.f32.mrb[0].mxu0
  %v2244 = vadd.f32 %v2091, %v2243
  %v2245 = vpop.f32.mrb[0].mxu0
  %2246 = vmatprep.mubr.f32.mxu0 0.0
  %2247 = vmatmul.mubr.f32.gmra.mrb[0].mxu0 %v2119
  %v2248 = vpop.f32.mrb[0].mxu0
  %v2249 = vadd.f32 %v2091, %v2248
  %v2250 = vpop.f32.mrb[0].mxu0
  %2251 = vmatprep.mubr.f32.mxu0 0.0
  %2252 = vmatmul.mubr.f32.gmra.mrb[0].mxu0 %v2122
  %v2253 = vpop.f32.mrb[0].mxu0
  %v2254 = vadd.f32 %v2091, %v2253
  %v2255 = vpop.f32.mrb[0].mxu0
  %2256 = vmatprep.mubr.f32.mxu0 0.0
  %2257 = vmatmul.mubr.f32.gmra.mrb[0].mxu0 %v2125
  %v2258 = vpop.f32.mrb[0].mxu0
  %v2259 = vadd.f32 %v2091, %v2258
  %v2260 = vpop.f32.mrb[0].mxu0
  %2261 = vmatprep.mubr.f32.mxu0 0.0
  %2262 = vmatmul.mubr.f32.gmra.mrb[0].mxu0 %v2128
  %v2263 = vpop.f32.mrb[0].mxu0
  %v2264 = vadd.f32 %v2091, %v2263
  %v2265 = vpop.f32.mrb[0].mxu0
  %2266 = vmatprep.mubr.f32.mxu0 0.0
  %2267 = vmatmul.mubr.f32.gmra.mrb[0].mxu0 %v2131
  %v2268 = vpop.f32.mrb[0].mxu0
  %v2269 = vadd.f32 %v2091, %v2268
  %v2270 = vpop.f32.mrb[0].mxu0
  %2271 = vmatprep.mubr.f32.mxu0 0.0
  %2272 = vmatmul.mubr.f32.gmra.mrb[0].mxu0 %v2134
  %v2273 = vpop.f32.mrb[0].mxu0
  %v2274 = vadd.f32 %v2091, %v2273
  %v2275 = vpop.f32.mrb[0].mxu0
  %2276 = vmatprep.mubr.f32.mxu0 0.0
  %2277 = vmatmul.mubr.f32.gmra.mrb[0].mxu0 %v2137
  %v2278 = vpop.f32.mrb[0].mxu0
  %v2279 = vadd.f32 %v2091, %v2278
  %v2280 = vpop.f32.mrb[0].mxu0
  %2281 = vmatprep.mubr.f32.mxu0 0.0
  %2282 = vmatmul.mubr.f32.gmra.mrb[0].mxu0 %v2140
  %v2283 = vpop.f32.mrb[0].mxu0
  %v2284 = vadd.f32 %v2091, %v2283
  %v2285 = vpop.f32.mrb[0].mxu0
  %2286 = vdwg.mxu0
  %v2287 = vmax.f32 %v2209, 0.0
  %v2288 = vmax.f32 %v2214, 0.0
  %v2289 = vmax.f32 %v2219, 0.0
  %v2290 = vmax.f32 %v2224, 0.0
  %v2291 = vmax.f32 %v2229, 0.0
  %v2292 = vmax.f32 %v2234, 0.0
  %v2293 = vmax.f32 %v2239, 0.0
  %v2294 = vmax.f32 %v2244, 0.0
  %v2295 = vmax.f32 %v2249, 0.0
  %v2296 = vmax.f32 %v2254, 0.0
  %v2297 = vmax.f32 %v2259, 0.0
  %v2298 = vmax.f32 %v2264, 0.0
  %v2299 = vmax.f32 %v2269, 0.0
  %v2300 = vmax.f32 %v2274, 0.0
  %v2301 = vmax.f32 %v2279, 0.0
  %v2302 = vmax.f32 %v2284, 0.0
  %2303 = vst.msk [vmem:[%s10] sm:$0xff] %vm2093, %v2287
  %2304 = vst.msk [vmem:[%s10 + $0x8] sm:$0xff] %vm2093, %v2288
  %2305 = vst.msk [vmem:[%s10 + $0x10] sm:$0xff] %vm2093, %v2289
  %2306 = vst.msk [vmem:[%s10 + $0x18] sm:$0xff] %vm2093, %v2290
  %2307 = vst.msk [vmem:[%s10 + $0x20] sm:$0xff] %vm2093, %v2291
  %2308 = vst.msk [vmem:[%s10 + $0x28] sm:$0xff] %vm2093, %v2292
  %2309 = vst.msk [vmem:[%s10 + $0x30] sm:$0xff] %vm2093, %v2293
  %2310 = vst.msk [vmem:[%s10 + $0x38] sm:$0xff] %vm2093, %v2294
  %2311 = vst.msk [vmem:[%s10 + $0x40] sm:$0xff] %vm2093, %v2295
  %2312 = vst.msk [vmem:[%s10 + $0x48] sm:$0xff] %vm2093, %v2296
  %2313 = vst.msk [vmem:[%s10 + $0x50] sm:$0xff] %vm2093, %v2297
  %2314 = vst.msk [vmem:[%s10 + $0x58] sm:$0xff] %vm2093, %v2298
  %2315 = vst.msk [vmem:[%s10 + $0x60] sm:$0xff] %vm2093, %v2299
  %2316 = vst.msk [vmem:[%s10 + $0x68] sm:$0xff] %vm2093, %v2300
  %2317 = vst.msk [vmem:[%s10 + $0x70] sm:$0xff] %vm2093, %v2301
  %2318 = vst.msk [vmem:[%s10 + $0x78] sm:$0xff] %vm2093, %v2302
  // Predicated region
  $region34: #{run.5} parent=0 // pred_check
    _
  $region35: #{run.5} parent=0 // pred_check_branch
    %2320 = sbr.rel (0) target = $region37
  $region36: #{run.5} parent=0 // pred_region
    _
  $region37: #{run.5} parent=0 // pred_fallthru
    _
  // Predicated region
  $region38: #{run.5} parent=0 // pred_check
    _
  $region39: #{run.5} parent=0 // pred_check_branch
    %2322 = sbr.rel (0) target = $region41
  $region40: #{run.5} parent=0 // pred_region
    _
  $region41: #{run.5} parent=0 // pred_fallthru
    _
  // Predicated region
  $region42: #{run.5} parent=0 // pred_check
    _
  $region43: #{run.5} parent=0 // pred_check_branch
    %2324 = sbr.rel (0) target = $region45
  $region44: #{run.5} parent=0 // pred_region
    _
  $region45: #{run.5} parent=0 // pred_fallthru
    _
  // Predicated region
  $region46: #{run.5} parent=0 // pred_check
    _
  $region47: #{run.5} parent=0 // pred_check_branch
    %2326 = sbr.rel (0) target = $region49
  $region48: #{run.5} parent=0 // pred_region
    _
  $region49: #{run.5} parent=0 // pred_fallthru
    _
  // Predicated region
  $region50: #{run.5} parent=0 // pred_check
    _
  $region51: #{run.5} parent=0 // pred_check_branch
    %2328 = sbr.rel (0) target = $region53
  $region52: #{run.5} parent=0 // pred_region
    _
  $region53: #{run.5} parent=0 // pred_fallthru
    _
  // Predicated region
  $region54: #{run.5} parent=0 // pred_check
    _
  $region55: #{run.5} parent=0 // pred_check_branch
    %2330 = sbr.rel (0) target = $region57
  $region56: #{run.5} parent=0 // pred_region
    _
  $region57: #{run.5} parent=0 // pred_fallthru
    _

</llo_original>
